<compile_context>
chip_gen: v7x
topology: tpu7x:2x2x1
jax: 0.10.0
libtpu: 0.0.40
codegen_flags: <defaults>
</compile_context>

<pallas_src>
import functools

import jax
import jax.numpy as jnp
from jax import lax
from jax.experimental import pallas as pl
from jax.experimental.pallas import tpu as pltpu


def _cross_sq_kernel(za_ref, zb_ref, out_ref, acc_ref, *, inv_n):
    """Accumulate lane-dense per-i-tile partial sums of c^2 (c = z_a.T z_b / N)."""
    j = pl.program_id(1)
    k = pl.program_id(2)

    @pl.when((j == 0) & (k == 0))
    def _():
        out_ref[...] = jnp.zeros_like(out_ref)

    @pl.when(k == 0)
    def _():
        acc_ref[...] = jnp.zeros_like(acc_ref)

    # z_a tile is (tk, tm), z_b tile is (tk, tn): contract over the batch axis
    # (axis 0 of both).  MXU takes the native input dtype, accumulates f32.
    # NOTE: the ((0,),(0,)) contraction is the transposed-LHS form; if the XLU
    # ever becomes the binding slot, pre-transpose z_a to (D, N) in the wrapper.
    acc_ref[...] += lax.dot_general(
        za_ref[...],
        zb_ref[...],
        dimension_numbers=(((0,), (0,)), ((), ())),
        preferred_element_type=jnp.float32,
    )

    @pl.when(k == pl.num_programs(2) - 1)
    def _():
        c_tile = acc_ref[...] * inv_n                               # (tm, tn)
        partial = jnp.sum(c_tile * c_tile, axis=0, keepdims=True)   # (1, tn)
        out_ref[...] += partial.reshape(out_ref.shape)


def _diag_kernel(za_ref, zb_ref, diag_ref, *, inv_n):
    """diag(c)[d] = (1/N) * sum_k z_a[k, d] * z_b[k, d]   (O(N*D) pass)."""
    k = pl.program_id(1)

    @pl.when(k == 0)
    def _():
        diag_ref[...] = jnp.zeros_like(diag_ref)

    prod = za_ref[...].astype(jnp.float32) * zb_ref[...].astype(jnp.float32)
    diag_ref[...] += jnp.sum(prod, axis=0, keepdims=True)           # (1, td)

    @pl.when(k == pl.num_programs(1) - 1)
    def _():
        diag_ref[...] = diag_ref[...] * inv_n


def _pick_tile(dim, candidates):
    for c in candidates:
        if dim % c == 0:
            return c
    return dim  # fall back to the full dimension as a single block


def barlow_twins_loss(z, lambda_param=0.005):
    """z is a tuple (z_a, z_b), each of shape (N, D). Returns scalar f32 loss.

    lambda_param and N are static (baked in at trace time), matching the
    PyTorch module's constructor argument.
    """
    z_a, z_b = z
    assert z_a.shape == z_b.shape and z_a.ndim == 2
    n, d = z_a.shape
    inv_n = 1.0 / float(n)

    # MXU-shaped tiles: output tiles in multiples of 128/256 on the lane dims,
    # contraction tile a multiple of 8 sublanes (or the full dim for tiny
    # inputs).  Sizes are modest so they fit v7x's smaller VMEM too.
    tm = _pick_tile(d, (512, 256, 128))
    tn = tm
    tk = _pick_tile(n, (256, 128, 64, 32, 16, 8))
    gi, gj, gk = d // tm, d // tn, n // tk

    itemsize = jnp.dtype(z_a.dtype).itemsize
    cost = pl.CostEstimate(
        flops=2 * n * d * d,
        transcendentals=0,
        bytes_accessed=2 * n * d * itemsize + gi * tn * 4,
    )

    # Kernel 1: sum of c^2, emitted as lane-dense per-i-tile partial rows.
    partials = pl.pallas_call(
        functools.partial(_cross_sq_kernel, inv_n=inv_n),
        out_shape=jax.ShapeDtypeStruct((gi, 1, tn), jnp.float32),
        grid_spec=pltpu.PrefetchScalarGridSpec(
            num_scalar_prefetch=0,
            grid=(gi, gj, gk),
            in_specs=[
                pl.BlockSpec((tk, tm), lambda i, j, k: (k, i)),  # z_a
                pl.BlockSpec((tk, tn), lambda i, j, k: (k, j)),  # z_b
            ],
            out_specs=pl.BlockSpec((1, 1, tn), lambda i, j, k: (i, 0, 0)),
            scratch_shapes=[pltpu.VMEM((tm, tn), jnp.float32)],
        ),
        compiler_params=pltpu.CompilerParams(
            dimension_semantics=("parallel", "arbitrary", "arbitrary"),
            vmem_limit_bytes=32 * 1024 * 1024,
        ),
        cost_estimate=cost,
    )(z_a, z_b)

    # Kernel 2: diag(c) as a (1, D) vector (negligible cost vs the matmul).
    td = _pick_tile(d, (512, 256, 128))
    tkd = _pick_tile(n, (512, 256, 128, 64, 32, 16, 8))
    diag = pl.pallas_call(
        functools.partial(_diag_kernel, inv_n=inv_n),
        out_shape=jax.ShapeDtypeStruct((1, d), jnp.float32),
        grid_spec=pltpu.PrefetchScalarGridSpec(
            num_scalar_prefetch=0,
            grid=(d // td, n // tkd),
            in_specs=[
                pl.BlockSpec((tkd, td), lambda di, k: (k, di)),
                pl.BlockSpec((tkd, td), lambda di, k: (k, di)),
            ],
            out_specs=pl.BlockSpec((1, td), lambda di, k: (0, di)),
        ),
        compiler_params=pltpu.CompilerParams(
            dimension_semantics=("parallel", "arbitrary"),
        ),
    )(z_a, z_b)

    # Tiny final reductions + scalar combination in plain JAX.
    sum_c2 = jnp.sum(partials)               # includes the diagonal
    diag_v = diag[0]
    trace = jnp.sum(diag_v)
    sum_d2 = jnp.sum(diag_v * diag_v)

    lam = jnp.float32(lambda_param)
    loss = (lam * sum_c2
            + (jnp.float32(1.0) - lam) * sum_d2
            - jnp.float32(2.0) * trace
            + jnp.float32(d))
    return loss


def _reference_loss(z, lambda_param=0.005):
    z_a, z_b = z
    n = z_a.shape[0]
    c = (z_a.T.astype(jnp.float32) @ z_b.astype(jnp.float32)) / n
    on_diag = jnp.sum((jnp.diagonal(c) - 1.0) ** 2)
    off = c - jnp.diag(jnp.diagonal(c))
    off_diag = jnp.sum(off ** 2)
    return on_diag + lambda_param * off_diag


if __name__ == "__main__":
    key = jax.random.PRNGKey(0)
    k_a, k_b = jax.random.split(key)

    # Small but tiling-exercising shapes: batch N=512, embedding dim D=512
    # -> grid (2, 2, 2) in the matmul kernel.
    N, D = 512, 512
    z_a = jax.random.normal(k_a, (N, D), dtype=jnp.float32)
    z_b = jax.random.normal(k_b, (N, D), dtype=jnp.float32)

    loss = jax.block_until_ready(barlow_twins_loss((z_a, z_b), lambda_param=0.005))
    ref = jax.block_until_ready(_reference_loss((z_a, z_b), lambda_param=0.005))

    assert jnp.allclose(loss, ref, rtol=5e-4, atol=1e-2), (loss, ref)
    print("KERNEL_OK")
</pallas_src>

<mosaic_0001>
module attributes {stable_mosaic.version = 11 : i64} {
  func.func @_cross_sq_kernel(%arg0: i32, %arg1: i32, %arg2: i32, %arg3: memref<256x512xf32, #tpu.memory_space<vmem>>, %arg4: memref<256x512xf32, #tpu.memory_space<vmem>>, %arg5: memref<1x1x512xf32, #tpu.memory_space<vmem>>, %arg6: memref<512x512xf32, #tpu.memory_space<vmem>>) attributes {dimension_semantics = [#tpu.dimension_semantics<parallel>, #tpu.dimension_semantics<arbitrary>, #tpu.dimension_semantics<arbitrary>], iteration_bounds = array<i64: 1, 1, 2>, scalar_prefetch = 0 : i64, scratch_operands = 1 : i64, tpu.core_type = #tpu.core_type<tc>, window_params = [{transform_indices = @transform_0, window_bounds = array<i64: 256, 512>}, {transform_indices = @transform_1, window_bounds = array<i64: 256, 512>}, {transform_indices = @transform_2, window_bounds = array<i64: 1, 1, 512>}]} {
    %c0_i32 = arith.constant 0 : i32
    %0 = arith.cmpi eq, %arg1, %c0_i32 : i32
    %c0_i32_0 = arith.constant 0 : i32
    %1 = arith.cmpi eq, %arg2, %c0_i32_0 : i32
    %2 = arith.andi %0, %1 : i1
    %3 = arith.extui %2 : i1 to i32
    %c0_i32_1 = arith.constant 0 : i32
    %4 = arith.cmpi ne, %3, %c0_i32_1 : i32
    scf.if %4 {
      %cst_12 = arith.constant 0.000000e+00 : f32
      %17 = vector.broadcast %cst_12 : f32 to vector<1x1x512xf32>
      %c0_13 = arith.constant 0 : index
      %c0_14 = arith.constant 0 : index
      %c0_15 = arith.constant 0 : index
      %18 = vector.load %arg5[%c0_13, %c0_14, %c0_15] : memref<1x1x512xf32, #tpu.memory_space<vmem>>, vector<1x1x512xf32>
      tpu.vector_store %arg5[%c0_13, %c0_14, %c0_15], %17 {strides = array<i32>} : memref<1x1x512xf32, #tpu.memory_space<vmem>>, vector<1x1x512xf32>,
    } else {
    }
    %c0_i32_2 = arith.constant 0 : i32
    %5 = arith.cmpi eq, %arg2, %c0_i32_2 : i32
    %6 = arith.extui %5 : i1 to i32
    %c0_i32_3 = arith.constant 0 : i32
    %7 = arith.cmpi ne, %6, %c0_i32_3 : i32
    scf.if %7 {
      %cst_12 = arith.constant 0.000000e+00 : f32
      %17 = vector.broadcast %cst_12 : f32 to vector<512x512xf32>
      %c0_13 = arith.constant 0 : index
      %c0_14 = arith.constant 0 : index
      %18 = vector.load %arg6[%c0_13, %c0_14] : memref<512x512xf32, #tpu.memory_space<vmem>>, vector<512x512xf32>
      tpu.vector_store %arg6[%c0_13, %c0_14], %17 {strides = array<i32>} : memref<512x512xf32, #tpu.memory_space<vmem>>, vector<512x512xf32>,
    } else {
    }
    %c0 = arith.constant 0 : index
    %c0_4 = arith.constant 0 : index
    %8 = vector.load %arg6[%c0, %c0_4] : memref<512x512xf32, #tpu.memory_space<vmem>>, vector<512x512xf32>
    %c0_5 = arith.constant 0 : index
    %c0_6 = arith.constant 0 : index
    %9 = vector.load %arg3[%c0_5, %c0_6] : memref<256x512xf32, #tpu.memory_space<vmem>>, vector<256x512xf32>
    %c0_7 = arith.constant 0 : index
    %c0_8 = arith.constant 0 : index
    %10 = vector.load %arg4[%c0_7, %c0_8] : memref<256x512xf32, #tpu.memory_space<vmem>>, vector<256x512xf32>
    %cst = arith.constant dense<0.000000e+00> : vector<512x512xf32>
    %11 = tpu.matmul %9, %10, %cst {dimension_numbers = #tpu.dot_dimension_numbers<[0], [0], [1], [1], [0, 1, 1, 1], [], []>} : vector<256x512xf32>, vector<256x512xf32>, vector<512x512xf32> -> vector<512x512xf32>
    %12 = arith.addf %8, %11 : vector<512x512xf32>
    %c0_9 = arith.constant 0 : index
    %c0_10 = arith.constant 0 : index
    %13 = vector.load %arg6[%c0_9, %c0_10] : memref<512x512xf32, #tpu.memory_space<vmem>>, vector<512x512xf32>
    tpu.vector_store %arg6[%c0_9, %c0_10], %12 {strides = array<i32>} : memref<512x512xf32, #tpu.memory_space<vmem>>, vector<512x512xf32>,
    %c1_i32 = arith.constant 1 : i32
    %14 = arith.cmpi eq, %arg2, %c1_i32 : i32
    %15 = arith.extui %14 : i1 to i32
    %c0_i32_11 = arith.constant 0 : i32
    %16 = arith.cmpi ne, %15, %c0_i32_11 : i32
    scf.if %16 {
      %c0_12 = arith.constant 0 : index
      %c0_13 = arith.constant 0 : index
      %17 = vector.load %arg6[%c0_12, %c0_13] : memref<512x512xf32, #tpu.memory_space<vmem>>, vector<512x512xf32>
      %cst_14 = arith.constant 0.001953125 : f32
      %18 = vector.broadcast %cst_14 : f32 to vector<512x512xf32>
      %19 = arith.mulf %17, %18 : vector<512x512xf32>
      %20 = arith.mulf %19, %19 : vector<512x512xf32>
      %cst_15 = arith.constant dense<0.000000e+00> : vector<512xf32>
      %21 = vector.multi_reduction <add>, %20, %cst_15 [0] : vector<512x512xf32> to vector<512xf32>
      %22 = vector.shape_cast %21 : vector<512xf32> to vector<1x512xf32>
      %c0_16 = arith.constant 0 : index
      %c0_17 = arith.constant 0 : index
      %c0_18 = arith.constant 0 : index
      %23 = vector.load %arg5[%c0_16, %c0_17, %c0_18] : memref<1x1x512xf32, #tpu.memory_space<vmem>>, vector<1x1x512xf32>
      %24 = vector.shape_cast %22 : vector<1x512xf32> to vector<1x1x512xf32>
      %25 = arith.addf %23, %24 : vector<1x1x512xf32>
      %c0_19 = arith.constant 0 : index
      %c0_20 = arith.constant 0 : index
      %c0_21 = arith.constant 0 : index
      %26 = vector.load %arg5[%c0_19, %c0_20, %c0_21] : memref<1x1x512xf32, #tpu.memory_space<vmem>>, vector<1x1x512xf32>
      tpu.vector_store %arg5[%c0_19, %c0_20, %c0_21], %25 {strides = array<i32>} : memref<1x1x512xf32, #tpu.memory_space<vmem>>, vector<1x1x512xf32>,
    } else {
    }
    return
  }
  func.func @transform_0(%arg0: i32, %arg1: i32, %arg2: i32) -> (i32, i32) {
    %c0_i32 = arith.constant 0 : i32
    return %arg2, %arg0 : i32, i32
  }
  func.func @transform_1(%arg0: i32, %arg1: i32, %arg2: i32) -> (i32, i32) {
    %c0_i32 = arith.constant 0 : i32
    return %arg2, %arg1 : i32, i32
  }
  func.func @transform_2(%arg0: i32, %arg1: i32, %arg2: i32) -> (i32, i32, i32) {
    %c0_i32 = arith.constant 0 : i32
    %c0_i32_0 = arith.constant 0 : i32
    %c0_i32_1 = arith.constant 0 : i32
    return %arg0, %c0_i32, %c0_i32_0 : i32, i32, i32
  }
}

</mosaic_0001>

<llo_original>
// kernel: tpu_custom_call.1
$region0: #{tpu_custom_call.1}
  #allocation0 [shape = 'u32[]', space=smem, size = 0x4, offset = 0x4, fixed_abs, tag = 'smem constant byte address 0x4 - core index']
  #allocation1 [shape = 'u32[144,128]{1,0:T(1,128)}', space=vmem, size = 0x12000, scoped, tag = 'internal scratch']
  #allocation2 [shape = 'f32[512,512]{1,0:T(8,128)}', space=vmem, size = 0x100000, scoped, tag = 'scratch operand']
  %s0 = inlined_call_operand.hbm [shape: f32[512,512], index: 0, kind: input, shape index: {}]
  %s1 = inlined_call_operand.hbm [shape: f32[512,512], index: 1, kind: input, shape index: {}]
  %s2 = inlined_call_operand.hbm [shape: f32[1,1,512], index: 2, kind: output, shape index: {}]
  %s3 = sld [smem:[#allocation0]]
  $region61: #{tpu_custom_call.1} parent=0
    _
  %s5 = ssub.s32 1, %s3
  %s6 = scalar_select 0, %s5, %s3
  $region1: #{tpu_custom_call.1} parent=0
    #allocation3 [shape = 'u8[1048576]{0}', space=vmem, size = 0x100000, scoped, tag = 'input window, operand 0']
    #allocation4 [shape = 's32[2]{0}', space=sflag, size = 0x8, scoped, tag = 'scoped memory for tpu_custom_call.1']
    #allocation5 [shape = 's32[2]{0}', space=sflag, size = 0x8, scoped, tag = 'scoped memory for tpu_custom_call.1']
    #allocation6 [shape = 'u8[1048576]{0}', space=vmem, size = 0x100000, scoped, tag = 'input window, operand 1']
    #allocation7 [shape = 's32[2]{0}', space=sflag, size = 0x8, scoped, tag = 'scoped memory for tpu_custom_call.1']
    #allocation8 [shape = 'u8[2048]{0}', space=vmem, size = 0x800, scoped, tag = 'output window, operand 0, single buffered']
    %7 = vsyncpa [#allocation4], 0
    %s8 = scalar_lea.sflag [#allocation4], 1
    %9 = vsyncpa %s8, 0
    %10 = vsyncpa [#allocation7], 0
    %s11 = scalar_lea.sflag [#allocation7], 1
    %12 = vsyncpa %s11, 0
    %13 = vsyncpa [#allocation5], 0
    loop: start=0, step=1, limit=4
    $region2: #{tpu_custom_call.1} parent=1 // loop_pre_header
      _
    $region3: #{tpu_custom_call.1} parent=1 // loop_header
      %s15 = sphi 0, %s19
      %p16 = scmp.ge.s32.totalorder %s15, 4
      %s22 = sphi 0, %s41
      %s23 = sphi 0, %s37
      %s24 = sphi 0, %s33
      %s25 = sphi 0, %s22
      %s26 = sphi 0, %s23
      %s27 = sphi 0, %s24
      %s28 = sphi 0, %s25
      %s29 = sphi 0, %s26
      %s30 = sphi 0, %s27
      %s46 = sphi 0, %s48
      %s49 = sphi 0, %s46
      %s50 = sphi 0, %s49
      %s66 = sphi 0, %s50
      %s74 = sphi 0, %s76
      %s77 = sphi 0, %s74
      %s78 = sphi 0, %s77
      %s94 = sphi 0, %s78
      %s100 = sphi 0, %s102
      %s103 = sphi 0, %s100
      %s104 = sphi 0, %s103
      %s120 = sphi 0, %s104
    $region4: #{tpu_custom_call.1} parent=1 // loop_header_branch
      %18 = sbr.rel (%p16) target = $region8
    $region5: #{tpu_custom_call.1} parent=1 // loop_body
      %s20 = ssub.s32 %s15, 1
      %s21 = ssub.s32 %s15, 2
      %s31 = sadd.s32 1, %s24
      %p32 = scmp.ge.s32.totalorder %s31, 2
      %s33 = scalar_select %p32, 0, %s31
      %s34 = sadd.s32 1, %s23
      %s35 = scalar_select %p32, %s34, %s23
      %p36 = scmp.ge.s32.totalorder %s35, 1
      %s37 = scalar_select %p36, 0, %s35
      %s38 = sadd.s32 1, %s22
      %s39 = scalar_select %p36, %s38, %s22
      %p40 = scmp.ge.s32.totalorder %s39, 1
      %s41 = scalar_select %p40, 0, %s39
      %s42 = ssub.s32 %s24, %s33
      %s43 = ssub.s32 %s22, %s41
      %s44 = sor.u32 %s42, %s43
      %p45 = scmp.eq.s32.totalorder %s44, 0
      %s47 = sadd.s32 %s46, 1
      %s48 = scalar_select %p45, %s46, %s47
      %p51 = pneg %p45
      %p52 = scmp.eq.s32.totalorder %s15, 1
      %p53 = por %p51, %p52
      %p54 = scmp.ne.s32.totalorder %s46, %s49
      %p55 = scmp.eq.s32.totalorder %s15, 0
      %p56 = por %p54, %p55
      %p57 = scmp.ne.s32.totalorder %s46, %s49
      %p58 = scmp.eq.s32.totalorder %s20, 1
      %p59 = por %p57, %p58
      %p60 = scmp.ne.s32.totalorder %s49, %s50
      %p61 = scmp.eq.s32.totalorder %s20, 0
      %p62 = por %p60, %p61
      %p63 = scmp.ne.s32.totalorder %s49, %s50
      %p64 = scmp.eq.s32.totalorder %s21, 1
      %p65 = por %p63, %p64
      %p67 = scmp.ne.s32.totalorder %s50, %s66
      %p68 = scmp.eq.s32.totalorder %s21, 0
      %p69 = por %p67, %p68
      %s70 = ssub.s32 %s24, %s33
      %s71 = ssub.s32 %s23, %s37
      %s72 = sor.u32 %s70, %s71
      %p73 = scmp.eq.s32.totalorder %s72, 0
      %s75 = sadd.s32 %s74, 1
      %s76 = scalar_select %p73, %s74, %s75
      %p79 = pneg %p73
      %p80 = scmp.eq.s32.totalorder %s15, 1
      %p81 = por %p79, %p80
      %p82 = scmp.ne.s32.totalorder %s74, %s77
      %p83 = scmp.eq.s32.totalorder %s15, 0
      %p84 = por %p82, %p83
      %p85 = scmp.ne.s32.totalorder %s74, %s77
      %p86 = scmp.eq.s32.totalorder %s20, 1
      %p87 = por %p85, %p86
      %p88 = scmp.ne.s32.totalorder %s77, %s78
      %p89 = scmp.eq.s32.totalorder %s20, 0
      %p90 = por %p88, %p89
      %p91 = scmp.ne.s32.totalorder %s77, %s78
      %p92 = scmp.eq.s32.totalorder %s21, 1
      %p93 = por %p91, %p92
      %p95 = scmp.ne.s32.totalorder %s78, %s94
      %p96 = scmp.eq.s32.totalorder %s21, 0
      %p97 = por %p95, %p96
      %s98 = ssub.s32 %s22, %s41
      %p99 = scmp.eq.s32.totalorder %s98, 0
      %s101 = sadd.s32 %s100, 1
      %s102 = scalar_select %p99, %s100, %s101
      %p105 = pneg %p99
      %p106 = scmp.eq.s32.totalorder %s15, 1
      %p107 = por %p105, %p106
      %p108 = scmp.ne.s32.totalorder %s100, %s103
      %p109 = scmp.eq.s32.totalorder %s15, 0
      %p110 = por %p108, %p109
      %p111 = scmp.ne.s32.totalorder %s100, %s103
      %p112 = scmp.eq.s32.totalorder %s20, 1
      %p113 = por %p111, %p112
      %p114 = scmp.ne.s32.totalorder %s103, %s104
      %p115 = scmp.eq.s32.totalorder %s20, 0
      %p116 = por %p114, %p115
      %p117 = scmp.ne.s32.totalorder %s103, %s104
      %p118 = scmp.eq.s32.totalorder %s21, 1
      %p119 = por %p117, %p118
      %p121 = scmp.ne.s32.totalorder %s104, %s120
      %p122 = scmp.eq.s32.totalorder %s21, 0
      %p123 = por %p121, %p122
      %p124 = scmp.le.s32.totalorder 1, %s15
      %p125 = scmp.lt.s32.totalorder %s15, 3
      %p126 = pnand %p124, %p125
      %p127 = pneg %p126
      // Predicated region
      $region9: #{tpu_custom_call.1} parent=5 // pred_check
        _
      $region10: #{tpu_custom_call.1} parent=5 // pred_check_branch
        %129 = sbr.rel (%p126) target = $region12
      $region11: #{tpu_custom_call.1} parent=5 // pred_region
        %s130 = ssub.s32 %s15, 1
      $region12: #{tpu_custom_call.1} parent=5 // pred_fallthru
        _
      %p131 = scmp.lt.s32.totalorder %s15, 2
      // Predicated region
      $region13: #{tpu_custom_call.1} parent=5 // pred_check
        %p132 = pneg %p131
      $region14: #{tpu_custom_call.1} parent=5 // pred_check_branch
        %134 = sbr.rel (%p132) target = $region16
      $region15: #{tpu_custom_call.1} parent=5 // pred_region
        // Predicated region
        $region17: #{tpu_custom_call.1} parent=15 // pred_check
          %p135 = pneg %p56
        $region18: #{tpu_custom_call.1} parent=15 // pred_check_branch
          %137 = sbr.rel (%p135) target = $region20
        $region19: #{tpu_custom_call.1} parent=15 // pred_region
          %s138 = sand.u32 %s46, 1
          %s139 = scalar_lea.sflag [#allocation4], %s138
          %s140 = sand.u32 %s46, 1
          %s141 = smul.addr %s140, 1024
          %s142 = scalar_lea.vmem [#allocation3], %s141
          %s143 = smul.u32 32, %s24
          %s144 = smul.u32 4, %s22
          %s146 = ssub.s32 16384, 16384
          %147 = vsyncadd %s139, %s146
          %s148 = smul.addr %s143, 4
          %s149 = sadd.s32 %s144, %s148
          %s150 = smul.addr %s149, 128
          %s151 = scalar_lea.hbm %s0, %s150
          %s152 = sshll.u32 %s142, 4
          %s153 = int_to_ptr.vmem [resolvable:$true] %s152
          %158 = dma.hbm_to_vmem [thread:$0]  %s151, 16384, %s153, %s139, 512, 512, 32
        $region20: #{tpu_custom_call.1} parent=15 // pred_fallthru
          _
        // Predicated region
        $region21: #{tpu_custom_call.1} parent=15 // pred_check
          %p159 = pneg %p84
        $region22: #{tpu_custom_call.1} parent=15 // pred_check_branch
          %161 = sbr.rel (%p159) target = $region24
        $region23: #{tpu_custom_call.1} parent=15 // pred_region
          %s162 = sand.u32 %s74, 1
          %s163 = scalar_lea.sflag [#allocation7], %s162
          %s164 = sand.u32 %s74, 1
          %s165 = smul.addr %s164, 1024
          %s166 = scalar_lea.vmem [#allocation6], %s165
          %s167 = smul.u32 32, %s24
          %s168 = smul.u32 4, %s23
          %s170 = ssub.s32 16384, 16384
          %171 = vsyncadd %s163, %s170
          %s172 = smul.addr %s167, 4
          %s173 = sadd.s32 %s168, %s172
          %s174 = smul.addr %s173, 128
          %s175 = scalar_lea.hbm %s1, %s174
          %s176 = sshll.u32 %s166, 4
          %s177 = int_to_ptr.vmem [resolvable:$true] %s176
          %182 = dma.hbm_to_vmem [thread:$0]  %s175, 16384, %s177, %s163, 512, 512, 32
        $region24: #{tpu_custom_call.1} parent=15 // pred_fallthru
          _
      $region16: #{tpu_custom_call.1} parent=5 // pred_fallthru
        _
      %p183 = scmp.le.s32.totalorder 1, %s15
      %p184 = scmp.lt.s32.totalorder %s15, 3
      %p185 = pnand %p183, %p184
      %p186 = pneg %p185
      // Predicated region
      $region25: #{tpu_custom_call.1} parent=5 // pred_check
        _
      $region26: #{tpu_custom_call.1} parent=5 // pred_check_branch
        %188 = sbr.rel (%p185) target = $region28
      $region27: #{tpu_custom_call.1} parent=5 // pred_region
        %s189 = ssub.s32 %s15, 1
        %s190 = sand.u32 %s49, 1
        %s191 = scalar_lea.sflag [#allocation4], %s190
        %s192 = sand.u32 %s49, 1
        %s193 = smul.addr %s192, 1024
        %s194 = scalar_lea.vmem [#allocation3], %s193
        // Predicated region
        $region29: #{tpu_custom_call.1} parent=27 // pred_check
          %p195 = pneg %p62
        $region30: #{tpu_custom_call.1} parent=27 // pred_check_branch
          %197 = sbr.rel (%p195) target = $region32
        $region31: #{tpu_custom_call.1} parent=27 // pred_region
          %198 = dma.done %s191, 16384
        $region32: #{tpu_custom_call.1} parent=27 // pred_fallthru
          _
        %s199 = sand.u32 %s77, 1
        %s200 = scalar_lea.sflag [#allocation7], %s199
        %s201 = sand.u32 %s77, 1
        %s202 = smul.addr %s201, 1024
        %s203 = scalar_lea.vmem [#allocation6], %s202
        // Predicated region
        $region33: #{tpu_custom_call.1} parent=27 // pred_check
          %p204 = pneg %p90
        $region34: #{tpu_custom_call.1} parent=27 // pred_check_branch
          %206 = sbr.rel (%p204) target = $region36
        $region35: #{tpu_custom_call.1} parent=27 // pred_region
          %207 = dma.done %s200, 16384
        $region36: #{tpu_custom_call.1} parent=27 // pred_fallthru
          _
        %s208 = sand.u32 %s49, 1
        %s209 = scalar_lea.sflag [#allocation4], %s208
        %s210 = sand.u32 %s49, 1
        %s211 = smul.addr %s210, 1024
        %s212 = scalar_lea.vmem [#allocation3], %s211
        %p213 = pneg %p62
        %p214 = pneg %p59
        %s215 = sand.u32 %s77, 1
        %s216 = scalar_lea.sflag [#allocation7], %s215
        %s217 = sand.u32 %s77, 1
        %s218 = smul.addr %s217, 1024
        %s219 = scalar_lea.vmem [#allocation6], %s218
        %p220 = pneg %p90
        %p221 = pneg %p87
        %p222 = pneg %p116
        %p223 = pneg %p113
        %s224 = smul.u32 32, %s27
        %s225 = smul.u32 4, %s25
        %s226 = smul.u32 32, %s27
        %s227 = smul.u32 4, %s26
        %p228 = scmp.eq.s32.totalorder %s26, 0
        %p229 = scmp.eq.s32.totalorder %s27, 0
        %p230 = pnand %p228, %p229
        %p231 = pneg %p230
        // Predicated region
        $region37: #{tpu_custom_call.1} parent=27 // pred_check
          _
        $region38: #{tpu_custom_call.1} parent=27 // pred_check_branch
          %233 = sbr.rel (%p230) target = $region40
        $region39: #{tpu_custom_call.1} parent=27 // pred_region
          %v234 = vlaneseq
          %vm235 = vcmp.ge.s32.totalorder %v234, 0
          %vm236 = vcmp.lt.s32.totalorder %v234, 512
          %vm237 = vmand %vm235, %vm236
          %238 = vst.msk [vmem:[#allocation8] sm:$0xf] %vm237, 0.0
        $region40: #{tpu_custom_call.1} parent=27 // pred_fallthru
          _
        // Predicated region
        $region41: #{tpu_custom_call.1} parent=27 // pred_check
          %p239 = pneg %p229
        $region42: #{tpu_custom_call.1} parent=27 // pred_check_branch
          %241 = sbr.rel (%p239) target = $region44
        $region43: #{tpu_custom_call.1} parent=27 // pred_region
          %242 = vst [vmem:[#allocation2] sm:$0xff] 0.0
          %243 = vst [vmem:[#allocation2 + $0x8] sm:$0xff] 0.0
          %244 = vst [vmem:[#allocation2 + $0x10] sm:$0xff] 0.0
          %245 = vst [vmem:[#allocation2 + $0x18] sm:$0xff] 0.0
          %246 = vst [vmem:[#allocation2 + $0x20] sm:$0xff] 0.0
          %247 = vst [vmem:[#allocation2 + $0x28] sm:$0xff] 0.0
          %248 = vst [vmem:[#allocation2 + $0x30] sm:$0xff] 0.0
          %249 = vst [vmem:[#allocation2 + $0x38] sm:$0xff] 0.0
          %250 = vst [vmem:[#allocation2 + $0x40] sm:$0xff] 0.0
          %251 = vst [vmem:[#allocation2 + $0x48] sm:$0xff] 0.0
          %252 = vst [vmem:[#allocation2 + $0x50] sm:$0xff] 0.0
          %253 = vst [vmem:[#allocation2 + $0x58] sm:$0xff] 0.0
          %254 = vst [vmem:[#allocation2 + $0x60] sm:$0xff] 0.0
          %255 = vst [vmem:[#allocation2 + $0x68] sm:$0xff] 0.0
          %256 = vst [vmem:[#allocation2 + $0x70] sm:$0xff] 0.0
          %257 = vst [vmem:[#allocation2 + $0x78] sm:$0xff] 0.0
          %258 = vst [vmem:[#allocation2 + $0x80] sm:$0xff] 0.0
          %259 = vst [vmem:[#allocation2 + $0x88] sm:$0xff] 0.0
          %260 = vst [vmem:[#allocation2 + $0x90] sm:$0xff] 0.0
          %261 = vst [vmem:[#allocation2 + $0x98] sm:$0xff] 0.0
          %262 = vst [vmem:[#allocation2 + $0xa0] sm:$0xff] 0.0
          %263 = vst [vmem:[#allocation2 + $0xa8] sm:$0xff] 0.0
          %264 = vst [vmem:[#allocation2 + $0xb0] sm:$0xff] 0.0
          %265 = vst [vmem:[#allocation2 + $0xb8] sm:$0xff] 0.0
          %266 = vst [vmem:[#allocation2 + $0xc0] sm:$0xff] 0.0
          %267 = vst [vmem:[#allocation2 + $0xc8] sm:$0xff] 0.0
          %268 = vst [vmem:[#allocation2 + $0xd0] sm:$0xff] 0.0
          %269 = vst [vmem:[#allocation2 + $0xd8] sm:$0xff] 0.0
          %270 = vst [vmem:[#allocation2 + $0xe0] sm:$0xff] 0.0
          %271 = vst [vmem:[#allocation2 + $0xe8] sm:$0xff] 0.0
          %272 = vst [vmem:[#allocation2 + $0xf0] sm:$0xff] 0.0
          %273 = vst [vmem:[#allocation2 + $0xf8] sm:$0xff] 0.0
          %274 = vst [vmem:[#allocation2 + $0x100] sm:$0xff] 0.0
          %275 = vst [vmem:[#allocation2 + $0x108] sm:$0xff] 0.0
          %276 = vst [vmem:[#allocation2 + $0x110] sm:$0xff] 0.0
          %277 = vst [vmem:[#allocation2 + $0x118] sm:$0xff] 0.0
          %278 = vst [vmem:[#allocation2 + $0x120] sm:$0xff] 0.0
          %279 = vst [vmem:[#allocation2 + $0x128] sm:$0xff] 0.0
          %280 = vst [vmem:[#allocation2 + $0x130] sm:$0xff] 0.0
          %281 = vst [vmem:[#allocation2 + $0x138] sm:$0xff] 0.0
          %282 = vst [vmem:[#allocation2 + $0x140] sm:$0xff] 0.0
          %283 = vst [vmem:[#allocation2 + $0x148] sm:$0xff] 0.0
          %284 = vst [vmem:[#allocation2 + $0x150] sm:$0xff] 0.0
          %285 = vst [vmem:[#allocation2 + $0x158] sm:$0xff] 0.0
          %286 = vst [vmem:[#allocation2 + $0x160] sm:$0xff] 0.0
          %287 = vst [vmem:[#allocation2 + $0x168] sm:$0xff] 0.0
          %288 = vst [vmem:[#allocation2 + $0x170] sm:$0xff] 0.0
          %289 = vst [vmem:[#allocation2 + $0x178] sm:$0xff] 0.0
          %290 = vst [vmem:[#allocation2 + $0x180] sm:$0xff] 0.0
          %291 = vst [vmem:[#allocation2 + $0x188] sm:$0xff] 0.0
          %292 = vst [vmem:[#allocation2 + $0x190] sm:$0xff] 0.0
          %293 = vst [vmem:[#allocation2 + $0x198] sm:$0xff] 0.0
          %294 = vst [vmem:[#allocation2 + $0x1a0] sm:$0xff] 0.0
          %295 = vst [vmem:[#allocation2 + $0x1a8] sm:$0xff] 0.0
          %296 = vst [vmem:[#allocation2 + $0x1b0] sm:$0xff] 0.0
          %297 = vst [vmem:[#allocation2 + $0x1b8] sm:$0xff] 0.0
          %298 = vst [vmem:[#allocation2 + $0x1c0] sm:$0xff] 0.0
          %299 = vst [vmem:[#allocation2 + $0x1c8] sm:$0xff] 0.0
          %300 = vst [vmem:[#allocation2 + $0x1d0] sm:$0xff] 0.0
          %301 = vst [vmem:[#allocation2 + $0x1d8] sm:$0xff] 0.0
          %302 = vst [vmem:[#allocation2 + $0x1e0] sm:$0xff] 0.0
          %303 = vst [vmem:[#allocation2 + $0x1e8] sm:$0xff] 0.0
          %304 = vst [vmem:[#allocation2 + $0x1f0] sm:$0xff] 0.0
          %305 = vst [vmem:[#allocation2 + $0x1f8] sm:$0xff] 0.0
          %306 = vst [vmem:[#allocation2 + $0x200] sm:$0xff] 0.0
          %307 = vst [vmem:[#allocation2 + $0x208] sm:$0xff] 0.0
          %308 = vst [vmem:[#allocation2 + $0x210] sm:$0xff] 0.0
          %309 = vst [vmem:[#allocation2 + $0x218] sm:$0xff] 0.0
          %310 = vst [vmem:[#allocation2 + $0x220] sm:$0xff] 0.0
          %311 = vst [vmem:[#allocation2 + $0x228] sm:$0xff] 0.0
          %312 = vst [vmem:[#allocation2 + $0x230] sm:$0xff] 0.0
          %313 = vst [vmem:[#allocation2 + $0x238] sm:$0xff] 0.0
          %314 = vst [vmem:[#allocation2 + $0x240] sm:$0xff] 0.0
          %315 = vst [vmem:[#allocation2 + $0x248] sm:$0xff] 0.0
          %316 = vst [vmem:[#allocation2 + $0x250] sm:$0xff] 0.0
          %317 = vst [vmem:[#allocation2 + $0x258] sm:$0xff] 0.0
          %318 = vst [vmem:[#allocation2 + $0x260] sm:$0xff] 0.0
          %319 = vst [vmem:[#allocation2 + $0x268] sm:$0xff] 0.0
          %320 = vst [vmem:[#allocation2 + $0x270] sm:$0xff] 0.0
          %321 = vst [vmem:[#allocation2 + $0x278] sm:$0xff] 0.0
          %322 = vst [vmem:[#allocation2 + $0x280] sm:$0xff] 0.0
          %323 = vst [vmem:[#allocation2 + $0x288] sm:$0xff] 0.0
          %324 = vst [vmem:[#allocation2 + $0x290] sm:$0xff] 0.0
          %325 = vst [vmem:[#allocation2 + $0x298] sm:$0xff] 0.0
          %326 = vst [vmem:[#allocation2 + $0x2a0] sm:$0xff] 0.0
          %327 = vst [vmem:[#allocation2 + $0x2a8] sm:$0xff] 0.0
          %328 = vst [vmem:[#allocation2 + $0x2b0] sm:$0xff] 0.0
          %329 = vst [vmem:[#allocation2 + $0x2b8] sm:$0xff] 0.0
          %330 = vst [vmem:[#allocation2 + $0x2c0] sm:$0xff] 0.0
          %331 = vst [vmem:[#allocation2 + $0x2c8] sm:$0xff] 0.0
          %332 = vst [vmem:[#allocation2 + $0x2d0] sm:$0xff] 0.0
          %333 = vst [vmem:[#allocation2 + $0x2d8] sm:$0xff] 0.0
          %334 = vst [vmem:[#allocation2 + $0x2e0] sm:$0xff] 0.0
          %335 = vst [vmem:[#allocation2 + $0x2e8] sm:$0xff] 0.0
          %336 = vst [vmem:[#allocation2 + $0x2f0] sm:$0xff] 0.0
          %337 = vst [vmem:[#allocation2 + $0x2f8] sm:$0xff] 0.0
          %338 = vst [vmem:[#allocation2 + $0x300] sm:$0xff] 0.0
          %339 = vst [vmem:[#allocation2 + $0x308] sm:$0xff] 0.0
          %340 = vst [vmem:[#allocation2 + $0x310] sm:$0xff] 0.0
          %341 = vst [vmem:[#allocation2 + $0x318] sm:$0xff] 0.0
          %342 = vst [vmem:[#allocation2 + $0x320] sm:$0xff] 0.0
          %343 = vst [vmem:[#allocation2 + $0x328] sm:$0xff] 0.0
          %344 = vst [vmem:[#allocation2 + $0x330] sm:$0xff] 0.0
          %345 = vst [vmem:[#allocation2 + $0x338] sm:$0xff] 0.0
          %346 = vst [vmem:[#allocation2 + $0x340] sm:$0xff] 0.0
          %347 = vst [vmem:[#allocation2 + $0x348] sm:$0xff] 0.0
          %348 = vst [vmem:[#allocation2 + $0x350] sm:$0xff] 0.0
          %349 = vst [vmem:[#allocation2 + $0x358] sm:$0xff] 0.0
          %350 = vst [vmem:[#allocation2 + $0x360] sm:$0xff] 0.0
          %351 = vst [vmem:[#allocation2 + $0x368] sm:$0xff] 0.0
          %352 = vst [vmem:[#allocation2 + $0x370] sm:$0xff] 0.0
          %353 = vst [vmem:[#allocation2 + $0x378] sm:$0xff] 0.0
          %354 = vst [vmem:[#allocation2 + $0x380] sm:$0xff] 0.0
          %355 = vst [vmem:[#allocation2 + $0x388] sm:$0xff] 0.0
          %356 = vst [vmem:[#allocation2 + $0x390] sm:$0xff] 0.0
          %357 = vst [vmem:[#allocation2 + $0x398] sm:$0xff] 0.0
          %358 = vst [vmem:[#allocation2 + $0x3a0] sm:$0xff] 0.0
          %359 = vst [vmem:[#allocation2 + $0x3a8] sm:$0xff] 0.0
          %360 = vst [vmem:[#allocation2 + $0x3b0] sm:$0xff] 0.0
          %361 = vst [vmem:[#allocation2 + $0x3b8] sm:$0xff] 0.0
          %362 = vst [vmem:[#allocation2 + $0x3c0] sm:$0xff] 0.0
          %363 = vst [vmem:[#allocation2 + $0x3c8] sm:$0xff] 0.0
          %364 = vst [vmem:[#allocation2 + $0x3d0] sm:$0xff] 0.0
          %365 = vst [vmem:[#allocation2 + $0x3d8] sm:$0xff] 0.0
          %366 = vst [vmem:[#allocation2 + $0x3e0] sm:$0xff] 0.0
          %367 = vst [vmem:[#allocation2 + $0x3e8] sm:$0xff] 0.0
          %368 = vst [vmem:[#allocation2 + $0x3f0] sm:$0xff] 0.0
          %369 = vst [vmem:[#allocation2 + $0x3f8] sm:$0xff] 0.0
          %370 = vst [vmem:[#allocation2 + $0x400] sm:$0xff] 0.0
          %371 = vst [vmem:[#allocation2 + $0x408] sm:$0xff] 0.0
          %372 = vst [vmem:[#allocation2 + $0x410] sm:$0xff] 0.0
          %373 = vst [vmem:[#allocation2 + $0x418] sm:$0xff] 0.0
          %374 = vst [vmem:[#allocation2 + $0x420] sm:$0xff] 0.0
          %375 = vst [vmem:[#allocation2 + $0x428] sm:$0xff] 0.0
          %376 = vst [vmem:[#allocation2 + $0x430] sm:$0xff] 0.0
          %377 = vst [vmem:[#allocation2 + $0x438] sm:$0xff] 0.0
          %378 = vst [vmem:[#allocation2 + $0x440] sm:$0xff] 0.0
          %379 = vst [vmem:[#allocation2 + $0x448] sm:$0xff] 0.0
          %380 = vst [vmem:[#allocation2 + $0x450] sm:$0xff] 0.0
          %381 = vst [vmem:[#allocation2 + $0x458] sm:$0xff] 0.0
          %382 = vst [vmem:[#allocation2 + $0x460] sm:$0xff] 0.0
          %383 = vst [vmem:[#allocation2 + $0x468] sm:$0xff] 0.0
          %384 = vst [vmem:[#allocation2 + $0x470] sm:$0xff] 0.0
          %385 = vst [vmem:[#allocation2 + $0x478] sm:$0xff] 0.0
          %386 = vst [vmem:[#allocation2 + $0x480] sm:$0xff] 0.0
          %387 = vst [vmem:[#allocation2 + $0x488] sm:$0xff] 0.0
          %388 = vst [vmem:[#allocation2 + $0x490] sm:$0xff] 0.0
          %389 = vst [vmem:[#allocation2 + $0x498] sm:$0xff] 0.0
          %390 = vst [vmem:[#allocation2 + $0x4a0] sm:$0xff] 0.0
          %391 = vst [vmem:[#allocation2 + $0x4a8] sm:$0xff] 0.0
          %392 = vst [vmem:[#allocation2 + $0x4b0] sm:$0xff] 0.0
          %393 = vst [vmem:[#allocation2 + $0x4b8] sm:$0xff] 0.0
          %394 = vst [vmem:[#allocation2 + $0x4c0] sm:$0xff] 0.0
          %395 = vst [vmem:[#allocation2 + $0x4c8] sm:$0xff] 0.0
          %396 = vst [vmem:[#allocation2 + $0x4d0] sm:$0xff] 0.0
          %397 = vst [vmem:[#allocation2 + $0x4d8] sm:$0xff] 0.0
          %398 = vst [vmem:[#allocation2 + $0x4e0] sm:$0xff] 0.0
          %399 = vst [vmem:[#allocation2 + $0x4e8] sm:$0xff] 0.0
          %400 = vst [vmem:[#allocation2 + $0x4f0] sm:$0xff] 0.0
          %401 = vst [vmem:[#allocation2 + $0x4f8] sm:$0xff] 0.0
          %402 = vst [vmem:[#allocation2 + $0x500] sm:$0xff] 0.0
          %403 = vst [vmem:[#allocation2 + $0x508] sm:$0xff] 0.0
          %404 = vst [vmem:[#allocation2 + $0x510] sm:$0xff] 0.0
          %405 = vst [vmem:[#allocation2 + $0x518] sm:$0xff] 0.0
          %406 = vst [vmem:[#allocation2 + $0x520] sm:$0xff] 0.0
          %407 = vst [vmem:[#allocation2 + $0x528] sm:$0xff] 0.0
          %408 = vst [vmem:[#allocation2 + $0x530] sm:$0xff] 0.0
          %409 = vst [vmem:[#allocation2 + $0x538] sm:$0xff] 0.0
          %410 = vst [vmem:[#allocation2 + $0x540] sm:$0xff] 0.0
          %411 = vst [vmem:[#allocation2 + $0x548] sm:$0xff] 0.0
          %412 = vst [vmem:[#allocation2 + $0x550] sm:$0xff] 0.0
          %413 = vst [vmem:[#allocation2 + $0x558] sm:$0xff] 0.0
          %414 = vst [vmem:[#allocation2 + $0x560] sm:$0xff] 0.0
          %415 = vst [vmem:[#allocation2 + $0x568] sm:$0xff] 0.0
          %416 = vst [vmem:[#allocation2 + $0x570] sm:$0xff] 0.0
          %417 = vst [vmem:[#allocation2 + $0x578] sm:$0xff] 0.0
          %418 = vst [vmem:[#allocation2 + $0x580] sm:$0xff] 0.0
          %419 = vst [vmem:[#allocation2 + $0x588] sm:$0xff] 0.0
          %420 = vst [vmem:[#allocation2 + $0x590] sm:$0xff] 0.0
          %421 = vst [vmem:[#allocation2 + $0x598] sm:$0xff] 0.0
          %422 = vst [vmem:[#allocation2 + $0x5a0] sm:$0xff] 0.0
          %423 = vst [vmem:[#allocation2 + $0x5a8] sm:$0xff] 0.0
          %424 = vst [vmem:[#allocation2 + $0x5b0] sm:$0xff] 0.0
          %425 = vst [vmem:[#allocation2 + $0x5b8] sm:$0xff] 0.0
          %426 = vst [vmem:[#allocation2 + $0x5c0] sm:$0xff] 0.0
          %427 = vst [vmem:[#allocation2 + $0x5c8] sm:$0xff] 0.0
          %428 = vst [vmem:[#allocation2 + $0x5d0] sm:$0xff] 0.0
          %429 = vst [vmem:[#allocation2 + $0x5d8] sm:$0xff] 0.0
          %430 = vst [vmem:[#allocation2 + $0x5e0] sm:$0xff] 0.0
          %431 = vst [vmem:[#allocation2 + $0x5e8] sm:$0xff] 0.0
          %432 = vst [vmem:[#allocation2 + $0x5f0] sm:$0xff] 0.0
          %433 = vst [vmem:[#allocation2 + $0x5f8] sm:$0xff] 0.0
          %434 = vst [vmem:[#allocation2 + $0x600] sm:$0xff] 0.0
          %435 = vst [vmem:[#allocation2 + $0x608] sm:$0xff] 0.0
          %436 = vst [vmem:[#allocation2 + $0x610] sm:$0xff] 0.0
          %437 = vst [vmem:[#allocation2 + $0x618] sm:$0xff] 0.0
          %438 = vst [vmem:[#allocation2 + $0x620] sm:$0xff] 0.0
          %439 = vst [vmem:[#allocation2 + $0x628] sm:$0xff] 0.0
          %440 = vst [vmem:[#allocation2 + $0x630] sm:$0xff] 0.0
          %441 = vst [vmem:[#allocation2 + $0x638] sm:$0xff] 0.0
          %442 = vst [vmem:[#allocation2 + $0x640] sm:$0xff] 0.0
          %443 = vst [vmem:[#allocation2 + $0x648] sm:$0xff] 0.0
          %444 = vst [vmem:[#allocation2 + $0x650] sm:$0xff] 0.0
          %445 = vst [vmem:[#allocation2 + $0x658] sm:$0xff] 0.0
          %446 = vst [vmem:[#allocation2 + $0x660] sm:$0xff] 0.0
          %447 = vst [vmem:[#allocation2 + $0x668] sm:$0xff] 0.0
          %448 = vst [vmem:[#allocation2 + $0x670] sm:$0xff] 0.0
          %449 = vst [vmem:[#allocation2 + $0x678] sm:$0xff] 0.0
          %450 = vst [vmem:[#allocation2 + $0x680] sm:$0xff] 0.0
          %451 = vst [vmem:[#allocation2 + $0x688] sm:$0xff] 0.0
          %452 = vst [vmem:[#allocation2 + $0x690] sm:$0xff] 0.0
          %453 = vst [vmem:[#allocation2 + $0x698] sm:$0xff] 0.0
          %454 = vst [vmem:[#allocation2 + $0x6a0] sm:$0xff] 0.0
          %455 = vst [vmem:[#allocation2 + $0x6a8] sm:$0xff] 0.0
          %456 = vst [vmem:[#allocation2 + $0x6b0] sm:$0xff] 0.0
          %457 = vst [vmem:[#allocation2 + $0x6b8] sm:$0xff] 0.0
          %458 = vst [vmem:[#allocation2 + $0x6c0] sm:$0xff] 0.0
          %459 = vst [vmem:[#allocation2 + $0x6c8] sm:$0xff] 0.0
          %460 = vst [vmem:[#allocation2 + $0x6d0] sm:$0xff] 0.0
          %461 = vst [vmem:[#allocation2 + $0x6d8] sm:$0xff] 0.0
          %462 = vst [vmem:[#allocation2 + $0x6e0] sm:$0xff] 0.0
          %463 = vst [vmem:[#allocation2 + $0x6e8] sm:$0xff] 0.0
          %464 = vst [vmem:[#allocation2 + $0x6f0] sm:$0xff] 0.0
          %465 = vst [vmem:[#allocation2 + $0x6f8] sm:$0xff] 0.0
          %466 = vst [vmem:[#allocation2 + $0x700] sm:$0xff] 0.0
          %467 = vst [vmem:[#allocation2 + $0x708] sm:$0xff] 0.0
          %468 = vst [vmem:[#allocation2 + $0x710] sm:$0xff] 0.0
          %469 = vst [vmem:[#allocation2 + $0x718] sm:$0xff] 0.0
          %470 = vst [vmem:[#allocation2 + $0x720] sm:$0xff] 0.0
          %471 = vst [vmem:[#allocation2 + $0x728] sm:$0xff] 0.0
          %472 = vst [vmem:[#allocation2 + $0x730] sm:$0xff] 0.0
          %473 = vst [vmem:[#allocation2 + $0x738] sm:$0xff] 0.0
          %474 = vst [vmem:[#allocation2 + $0x740] sm:$0xff] 0.0
          %475 = vst [vmem:[#allocation2 + $0x748] sm:$0xff] 0.0
          %476 = vst [vmem:[#allocation2 + $0x750] sm:$0xff] 0.0
          %477 = vst [vmem:[#allocation2 + $0x758] sm:$0xff] 0.0
          %478 = vst [vmem:[#allocation2 + $0x760] sm:$0xff] 0.0
          %479 = vst [vmem:[#allocation2 + $0x768] sm:$0xff] 0.0
          %480 = vst [vmem:[#allocation2 + $0x770] sm:$0xff] 0.0
          %481 = vst [vmem:[#allocation2 + $0x778] sm:$0xff] 0.0
          %482 = vst [vmem:[#allocation2 + $0x780] sm:$0xff] 0.0
          %483 = vst [vmem:[#allocation2 + $0x788] sm:$0xff] 0.0
          %484 = vst [vmem:[#allocation2 + $0x790] sm:$0xff] 0.0
          %485 = vst [vmem:[#allocation2 + $0x798] sm:$0xff] 0.0
          %486 = vst [vmem:[#allocation2 + $0x7a0] sm:$0xff] 0.0
          %487 = vst [vmem:[#allocation2 + $0x7a8] sm:$0xff] 0.0
          %488 = vst [vmem:[#allocation2 + $0x7b0] sm:$0xff] 0.0
          %489 = vst [vmem:[#allocation2 + $0x7b8] sm:$0xff] 0.0
          %490 = vst [vmem:[#allocation2 + $0x7c0] sm:$0xff] 0.0
          %491 = vst [vmem:[#allocation2 + $0x7c8] sm:$0xff] 0.0
          %492 = vst [vmem:[#allocation2 + $0x7d0] sm:$0xff] 0.0
          %493 = vst [vmem:[#allocation2 + $0x7d8] sm:$0xff] 0.0
          %494 = vst [vmem:[#allocation2 + $0x7e0] sm:$0xff] 0.0
          %495 = vst [vmem:[#allocation2 + $0x7e8] sm:$0xff] 0.0
          %496 = vst [vmem:[#allocation2 + $0x7f0] sm:$0xff] 0.0
          %497 = vst [vmem:[#allocation2 + $0x7f8] sm:$0xff] 0.0
        $region44: #{tpu_custom_call.1} parent=27 // pred_fallthru
          _
        %v498 = vld [vmem:[#allocation2] sm:$0xff]
        %v499 = vld [vmem:[#allocation2 + $0x8] sm:$0xff]
        %v500 = vld [vmem:[#allocation2 + $0x10] sm:$0xff]
        %v501 = vld [vmem:[#allocation2 + $0x18] sm:$0xff]
        %v502 = vld [vmem:[#allocation2 + $0x20] sm:$0xff]
        %v503 = vld [vmem:[#allocation2 + $0x28] sm:$0xff]
        %v504 = vld [vmem:[#allocation2 + $0x30] sm:$0xff]
        %v505 = vld [vmem:[#allocation2 + $0x38] sm:$0xff]
        %v506 = vld [vmem:[#allocation2 + $0x40] sm:$0xff]
        %v507 = vld [vmem:[#allocation2 + $0x48] sm:$0xff]
        %v508 = vld [vmem:[#allocation2 + $0x50] sm:$0xff]
        %v509 = vld [vmem:[#allocation2 + $0x58] sm:$0xff]
        %v510 = vld [vmem:[#allocation2 + $0x60] sm:$0xff]
        %v511 = vld [vmem:[#allocation2 + $0x68] sm:$0xff]
        %v512 = vld [vmem:[#allocation2 + $0x70] sm:$0xff]
        %v513 = vld [vmem:[#allocation2 + $0x78] sm:$0xff]
        %v514 = vld [vmem:[#allocation2 + $0x80] sm:$0xff]
        %v515 = vld [vmem:[#allocation2 + $0x88] sm:$0xff]
        %v516 = vld [vmem:[#allocation2 + $0x90] sm:$0xff]
        %v517 = vld [vmem:[#allocation2 + $0x98] sm:$0xff]
        %v518 = vld [vmem:[#allocation2 + $0xa0] sm:$0xff]
        %v519 = vld [vmem:[#allocation2 + $0xa8] sm:$0xff]
        %v520 = vld [vmem:[#allocation2 + $0xb0] sm:$0xff]
        %v521 = vld [vmem:[#allocation2 + $0xb8] sm:$0xff]
        %v522 = vld [vmem:[#allocation2 + $0xc0] sm:$0xff]
        %v523 = vld [vmem:[#allocation2 + $0xc8] sm:$0xff]
        %v524 = vld [vmem:[#allocation2 + $0xd0] sm:$0xff]
        %v525 = vld [vmem:[#allocation2 + $0xd8] sm:$0xff]
        %v526 = vld [vmem:[#allocation2 + $0xe0] sm:$0xff]
        %v527 = vld [vmem:[#allocation2 + $0xe8] sm:$0xff]
        %v528 = vld [vmem:[#allocation2 + $0xf0] sm:$0xff]
        %v529 = vld [vmem:[#allocation2 + $0xf8] sm:$0xff]
        %v530 = vld [vmem:[#allocation2 + $0x100] sm:$0xff]
        %v531 = vld [vmem:[#allocation2 + $0x108] sm:$0xff]
        %v532 = vld [vmem:[#allocation2 + $0x110] sm:$0xff]
        %v533 = vld [vmem:[#allocation2 + $0x118] sm:$0xff]
        %v534 = vld [vmem:[#allocation2 + $0x120] sm:$0xff]
        %v535 = vld [vmem:[#allocation2 + $0x128] sm:$0xff]
        %v536 = vld [vmem:[#allocation2 + $0x130] sm:$0xff]
        %v537 = vld [vmem:[#allocation2 + $0x138] sm:$0xff]
        %v538 = vld [vmem:[#allocation2 + $0x140] sm:$0xff]
        %v539 = vld [vmem:[#allocation2 + $0x148] sm:$0xff]
        %v540 = vld [vmem:[#allocation2 + $0x150] sm:$0xff]
        %v541 = vld [vmem:[#allocation2 + $0x158] sm:$0xff]
        %v542 = vld [vmem:[#allocation2 + $0x160] sm:$0xff]
        %v543 = vld [vmem:[#allocation2 + $0x168] sm:$0xff]
        %v544 = vld [vmem:[#allocation2 + $0x170] sm:$0xff]
        %v545 = vld [vmem:[#allocation2 + $0x178] sm:$0xff]
        %v546 = vld [vmem:[#allocation2 + $0x180] sm:$0xff]
        %v547 = vld [vmem:[#allocation2 + $0x188] sm:$0xff]
        %v548 = vld [vmem:[#allocation2 + $0x190] sm:$0xff]
        %v549 = vld [vmem:[#allocation2 + $0x198] sm:$0xff]
        %v550 = vld [vmem:[#allocation2 + $0x1a0] sm:$0xff]
        %v551 = vld [vmem:[#allocation2 + $0x1a8] sm:$0xff]
        %v552 = vld [vmem:[#allocation2 + $0x1b0] sm:$0xff]
        %v553 = vld [vmem:[#allocation2 + $0x1b8] sm:$0xff]
        %v554 = vld [vmem:[#allocation2 + $0x1c0] sm:$0xff]
        %v555 = vld [vmem:[#allocation2 + $0x1c8] sm:$0xff]
        %v556 = vld [vmem:[#allocation2 + $0x1d0] sm:$0xff]
        %v557 = vld [vmem:[#allocation2 + $0x1d8] sm:$0xff]
        %v558 = vld [vmem:[#allocation2 + $0x1e0] sm:$0xff]
        %v559 = vld [vmem:[#allocation2 + $0x1e8] sm:$0xff]
        %v560 = vld [vmem:[#allocation2 + $0x1f0] sm:$0xff]
        %v561 = vld [vmem:[#allocation2 + $0x1f8] sm:$0xff]
        %v562 = vld [vmem:[#allocation2 + $0x200] sm:$0xff]
        %v563 = vld [vmem:[#allocation2 + $0x208] sm:$0xff]
        %v564 = vld [vmem:[#allocation2 + $0x210] sm:$0xff]
        %v565 = vld [vmem:[#allocation2 + $0x218] sm:$0xff]
        %v566 = vld [vmem:[#allocation2 + $0x220] sm:$0xff]
        %v567 = vld [vmem:[#allocation2 + $0x228] sm:$0xff]
        %v568 = vld [vmem:[#allocation2 + $0x230] sm:$0xff]
        %v569 = vld [vmem:[#allocation2 + $0x238] sm:$0xff]
        %v570 = vld [vmem:[#allocation2 + $0x240] sm:$0xff]
        %v571 = vld [vmem:[#allocation2 + $0x248] sm:$0xff]
        %v572 = vld [vmem:[#allocation2 + $0x250] sm:$0xff]
        %v573 = vld [vmem:[#allocation2 + $0x258] sm:$0xff]
        %v574 = vld [vmem:[#allocation2 + $0x260] sm:$0xff]
        %v575 = vld [vmem:[#allocation2 + $0x268] sm:$0xff]
        %v576 = vld [vmem:[#allocation2 + $0x270] sm:$0xff]
        %v577 = vld [vmem:[#allocation2 + $0x278] sm:$0xff]
        %v578 = vld [vmem:[#allocation2 + $0x280] sm:$0xff]
        %v579 = vld [vmem:[#allocation2 + $0x288] sm:$0xff]
        %v580 = vld [vmem:[#allocation2 + $0x290] sm:$0xff]
        %v581 = vld [vmem:[#allocation2 + $0x298] sm:$0xff]
        %v582 = vld [vmem:[#allocation2 + $0x2a0] sm:$0xff]
        %v583 = vld [vmem:[#allocation2 + $0x2a8] sm:$0xff]
        %v584 = vld [vmem:[#allocation2 + $0x2b0] sm:$0xff]
        %v585 = vld [vmem:[#allocation2 + $0x2b8] sm:$0xff]
        %v586 = vld [vmem:[#allocation2 + $0x2c0] sm:$0xff]
        %v587 = vld [vmem:[#allocation2 + $0x2c8] sm:$0xff]
        %v588 = vld [vmem:[#allocation2 + $0x2d0] sm:$0xff]
        %v589 = vld [vmem:[#allocation2 + $0x2d8] sm:$0xff]
        %v590 = vld [vmem:[#allocation2 + $0x2e0] sm:$0xff]
        %v591 = vld [vmem:[#allocation2 + $0x2e8] sm:$0xff]
        %v592 = vld [vmem:[#allocation2 + $0x2f0] sm:$0xff]
        %v593 = vld [vmem:[#allocation2 + $0x2f8] sm:$0xff]
        %v594 = vld [vmem:[#allocation2 + $0x300] sm:$0xff]
        %v595 = vld [vmem:[#allocation2 + $0x308] sm:$0xff]
        %v596 = vld [vmem:[#allocation2 + $0x310] sm:$0xff]
        %v597 = vld [vmem:[#allocation2 + $0x318] sm:$0xff]
        %v598 = vld [vmem:[#allocation2 + $0x320] sm:$0xff]
        %v599 = vld [vmem:[#allocation2 + $0x328] sm:$0xff]
        %v600 = vld [vmem:[#allocation2 + $0x330] sm:$0xff]
        %v601 = vld [vmem:[#allocation2 + $0x338] sm:$0xff]
        %v602 = vld [vmem:[#allocation2 + $0x340] sm:$0xff]
        %v603 = vld [vmem:[#allocation2 + $0x348] sm:$0xff]
        %v604 = vld [vmem:[#allocation2 + $0x350] sm:$0xff]
        %v605 = vld [vmem:[#allocation2 + $0x358] sm:$0xff]
        %v606 = vld [vmem:[#allocation2 + $0x360] sm:$0xff]
        %v607 = vld [vmem:[#allocation2 + $0x368] sm:$0xff]
        %v608 = vld [vmem:[#allocation2 + $0x370] sm:$0xff]
        %v609 = vld [vmem:[#allocation2 + $0x378] sm:$0xff]
        %v610 = vld [vmem:[#allocation2 + $0x380] sm:$0xff]
        %v611 = vld [vmem:[#allocation2 + $0x388] sm:$0xff]
        %v612 = vld [vmem:[#allocation2 + $0x390] sm:$0xff]
        %v613 = vld [vmem:[#allocation2 + $0x398] sm:$0xff]
        %v614 = vld [vmem:[#allocation2 + $0x3a0] sm:$0xff]
        %v615 = vld [vmem:[#allocation2 + $0x3a8] sm:$0xff]
        %v616 = vld [vmem:[#allocation2 + $0x3b0] sm:$0xff]
        %v617 = vld [vmem:[#allocation2 + $0x3b8] sm:$0xff]
        %v618 = vld [vmem:[#allocation2 + $0x3c0] sm:$0xff]
        %v619 = vld [vmem:[#allocation2 + $0x3c8] sm:$0xff]
        %v620 = vld [vmem:[#allocation2 + $0x3d0] sm:$0xff]
        %v621 = vld [vmem:[#allocation2 + $0x3d8] sm:$0xff]
        %v622 = vld [vmem:[#allocation2 + $0x3e0] sm:$0xff]
        %v623 = vld [vmem:[#allocation2 + $0x3e8] sm:$0xff]
        %v624 = vld [vmem:[#allocation2 + $0x3f0] sm:$0xff]
        %v625 = vld [vmem:[#allocation2 + $0x3f8] sm:$0xff]
        %v626 = vld [vmem:[#allocation2 + $0x400] sm:$0xff]
        %v627 = vld [vmem:[#allocation2 + $0x408] sm:$0xff]
        %v628 = vld [vmem:[#allocation2 + $0x410] sm:$0xff]
        %v629 = vld [vmem:[#allocation2 + $0x418] sm:$0xff]
        %v630 = vld [vmem:[#allocation2 + $0x420] sm:$0xff]
        %v631 = vld [vmem:[#allocation2 + $0x428] sm:$0xff]
        %v632 = vld [vmem:[#allocation2 + $0x430] sm:$0xff]
        %v633 = vld [vmem:[#allocation2 + $0x438] sm:$0xff]
        %v634 = vld [vmem:[#allocation2 + $0x440] sm:$0xff]
        %v635 = vld [vmem:[#allocation2 + $0x448] sm:$0xff]
        %v636 = vld [vmem:[#allocation2 + $0x450] sm:$0xff]
        %v637 = vld [vmem:[#allocation2 + $0x458] sm:$0xff]
        %v638 = vld [vmem:[#allocation2 + $0x460] sm:$0xff]
        %v639 = vld [vmem:[#allocation2 + $0x468] sm:$0xff]
        %v640 = vld [vmem:[#allocation2 + $0x470] sm:$0xff]
        %v641 = vld [vmem:[#allocation2 + $0x478] sm:$0xff]
        %v642 = vld [vmem:[#allocation2 + $0x480] sm:$0xff]
        %v643 = vld [vmem:[#allocation2 + $0x488] sm:$0xff]
        %v644 = vld [vmem:[#allocation2 + $0x490] sm:$0xff]
        %v645 = vld [vmem:[#allocation2 + $0x498] sm:$0xff]
        %v646 = vld [vmem:[#allocation2 + $0x4a0] sm:$0xff]
        %v647 = vld [vmem:[#allocation2 + $0x4a8] sm:$0xff]
        %v648 = vld [vmem:[#allocation2 + $0x4b0] sm:$0xff]
        %v649 = vld [vmem:[#allocation2 + $0x4b8] sm:$0xff]
        %v650 = vld [vmem:[#allocation2 + $0x4c0] sm:$0xff]
        %v651 = vld [vmem:[#allocation2 + $0x4c8] sm:$0xff]
        %v652 = vld [vmem:[#allocation2 + $0x4d0] sm:$0xff]
        %v653 = vld [vmem:[#allocation2 + $0x4d8] sm:$0xff]
        %v654 = vld [vmem:[#allocation2 + $0x4e0] sm:$0xff]
        %v655 = vld [vmem:[#allocation2 + $0x4e8] sm:$0xff]
        %v656 = vld [vmem:[#allocation2 + $0x4f0] sm:$0xff]
        %v657 = vld [vmem:[#allocation2 + $0x4f8] sm:$0xff]
        %v658 = vld [vmem:[#allocation2 + $0x500] sm:$0xff]
        %v659 = vld [vmem:[#allocation2 + $0x508] sm:$0xff]
        %v660 = vld [vmem:[#allocation2 + $0x510] sm:$0xff]
        %v661 = vld [vmem:[#allocation2 + $0x518] sm:$0xff]
        %v662 = vld [vmem:[#allocation2 + $0x520] sm:$0xff]
        %v663 = vld [vmem:[#allocation2 + $0x528] sm:$0xff]
        %v664 = vld [vmem:[#allocation2 + $0x530] sm:$0xff]
        %v665 = vld [vmem:[#allocation2 + $0x538] sm:$0xff]
        %v666 = vld [vmem:[#allocation2 + $0x540] sm:$0xff]
        %v667 = vld [vmem:[#allocation2 + $0x548] sm:$0xff]
        %v668 = vld [vmem:[#allocation2 + $0x550] sm:$0xff]
        %v669 = vld [vmem:[#allocation2 + $0x558] sm:$0xff]
        %v670 = vld [vmem:[#allocation2 + $0x560] sm:$0xff]
        %v671 = vld [vmem:[#allocation2 + $0x568] sm:$0xff]
        %v672 = vld [vmem:[#allocation2 + $0x570] sm:$0xff]
        %v673 = vld [vmem:[#allocation2 + $0x578] sm:$0xff]
        %v674 = vld [vmem:[#allocation2 + $0x580] sm:$0xff]
        %v675 = vld [vmem:[#allocation2 + $0x588] sm:$0xff]
        %v676 = vld [vmem:[#allocation2 + $0x590] sm:$0xff]
        %v677 = vld [vmem:[#allocation2 + $0x598] sm:$0xff]
        %v678 = vld [vmem:[#allocation2 + $0x5a0] sm:$0xff]
        %v679 = vld [vmem:[#allocation2 + $0x5a8] sm:$0xff]
        %v680 = vld [vmem:[#allocation2 + $0x5b0] sm:$0xff]
        %v681 = vld [vmem:[#allocation2 + $0x5b8] sm:$0xff]
        %v682 = vld [vmem:[#allocation2 + $0x5c0] sm:$0xff]
        %v683 = vld [vmem:[#allocation2 + $0x5c8] sm:$0xff]
        %v684 = vld [vmem:[#allocation2 + $0x5d0] sm:$0xff]
        %v685 = vld [vmem:[#allocation2 + $0x5d8] sm:$0xff]
        %v686 = vld [vmem:[#allocation2 + $0x5e0] sm:$0xff]
        %v687 = vld [vmem:[#allocation2 + $0x5e8] sm:$0xff]
        %v688 = vld [vmem:[#allocation2 + $0x5f0] sm:$0xff]
        %v689 = vld [vmem:[#allocation2 + $0x5f8] sm:$0xff]
        %v690 = vld [vmem:[#allocation2 + $0x600] sm:$0xff]
        %v691 = vld [vmem:[#allocation2 + $0x608] sm:$0xff]
        %v692 = vld [vmem:[#allocation2 + $0x610] sm:$0xff]
        %v693 = vld [vmem:[#allocation2 + $0x618] sm:$0xff]
        %v694 = vld [vmem:[#allocation2 + $0x620] sm:$0xff]
        %v695 = vld [vmem:[#allocation2 + $0x628] sm:$0xff]
        %v696 = vld [vmem:[#allocation2 + $0x630] sm:$0xff]
        %v697 = vld [vmem:[#allocation2 + $0x638] sm:$0xff]
        %v698 = vld [vmem:[#allocation2 + $0x640] sm:$0xff]
        %v699 = vld [vmem:[#allocation2 + $0x648] sm:$0xff]
        %v700 = vld [vmem:[#allocation2 + $0x650] sm:$0xff]
        %v701 = vld [vmem:[#allocation2 + $0x658] sm:$0xff]
        %v702 = vld [vmem:[#allocation2 + $0x660] sm:$0xff]
        %v703 = vld [vmem:[#allocation2 + $0x668] sm:$0xff]
        %v704 = vld [vmem:[#allocation2 + $0x670] sm:$0xff]
        %v705 = vld [vmem:[#allocation2 + $0x678] sm:$0xff]
        %v706 = vld [vmem:[#allocation2 + $0x680] sm:$0xff]
        %v707 = vld [vmem:[#allocation2 + $0x688] sm:$0xff]
        %v708 = vld [vmem:[#allocation2 + $0x690] sm:$0xff]
        %v709 = vld [vmem:[#allocation2 + $0x698] sm:$0xff]
        %v710 = vld [vmem:[#allocation2 + $0x6a0] sm:$0xff]
        %v711 = vld [vmem:[#allocation2 + $0x6a8] sm:$0xff]
        %v712 = vld [vmem:[#allocation2 + $0x6b0] sm:$0xff]
        %v713 = vld [vmem:[#allocation2 + $0x6b8] sm:$0xff]
        %v714 = vld [vmem:[#allocation2 + $0x6c0] sm:$0xff]
        %v715 = vld [vmem:[#allocation2 + $0x6c8] sm:$0xff]
        %v716 = vld [vmem:[#allocation2 + $0x6d0] sm:$0xff]
        %v717 = vld [vmem:[#allocation2 + $0x6d8] sm:$0xff]
        %v718 = vld [vmem:[#allocation2 + $0x6e0] sm:$0xff]
        %v719 = vld [vmem:[#allocation2 + $0x6e8] sm:$0xff]
        %v720 = vld [vmem:[#allocation2 + $0x6f0] sm:$0xff]
        %v721 = vld [vmem:[#allocation2 + $0x6f8] sm:$0xff]
        %v722 = vld [vmem:[#allocation2 + $0x700] sm:$0xff]
        %v723 = vld [vmem:[#allocation2 + $0x708] sm:$0xff]
        %v724 = vld [vmem:[#allocation2 + $0x710] sm:$0xff]
        %v725 = vld [vmem:[#allocation2 + $0x718] sm:$0xff]
        %v726 = vld [vmem:[#allocation2 + $0x720] sm:$0xff]
        %v727 = vld [vmem:[#allocation2 + $0x728] sm:$0xff]
        %v728 = vld [vmem:[#allocation2 + $0x730] sm:$0xff]
        %v729 = vld [vmem:[#allocation2 + $0x738] sm:$0xff]
        %v730 = vld [vmem:[#allocation2 + $0x740] sm:$0xff]
        %v731 = vld [vmem:[#allocation2 + $0x748] sm:$0xff]
        %v732 = vld [vmem:[#allocation2 + $0x750] sm:$0xff]
        %v733 = vld [vmem:[#allocation2 + $0x758] sm:$0xff]
        %v734 = vld [vmem:[#allocation2 + $0x760] sm:$0xff]
        %v735 = vld [vmem:[#allocation2 + $0x768] sm:$0xff]
        %v736 = vld [vmem:[#allocation2 + $0x770] sm:$0xff]
        %v737 = vld [vmem:[#allocation2 + $0x778] sm:$0xff]
        %v738 = vld [vmem:[#allocation2 + $0x780] sm:$0xff]
        %v739 = vld [vmem:[#allocation2 + $0x788] sm:$0xff]
        %v740 = vld [vmem:[#allocation2 + $0x790] sm:$0xff]
        %v741 = vld [vmem:[#allocation2 + $0x798] sm:$0xff]
        %v742 = vld [vmem:[#allocation2 + $0x7a0] sm:$0xff]
        %v743 = vld [vmem:[#allocation2 + $0x7a8] sm:$0xff]
        %v744 = vld [vmem:[#allocation2 + $0x7b0] sm:$0xff]
        %v745 = vld [vmem:[#allocation2 + $0x7b8] sm:$0xff]
        %v746 = vld [vmem:[#allocation2 + $0x7c0] sm:$0xff]
        %v747 = vld [vmem:[#allocation2 + $0x7c8] sm:$0xff]
        %v748 = vld [vmem:[#allocation2 + $0x7d0] sm:$0xff]
        %v749 = vld [vmem:[#allocation2 + $0x7d8] sm:$0xff]
        %v750 = vld [vmem:[#allocation2 + $0x7e0] sm:$0xff]
        %v751 = vld [vmem:[#allocation2 + $0x7e8] sm:$0xff]
        %v752 = vld [vmem:[#allocation2 + $0x7f0] sm:$0xff]
        %v753 = vld [vmem:[#allocation2 + $0x7f8] sm:$0xff]
        %v754 = vld [vmem:[%s194] sm:$0xff]
        %v755 = vld [vmem:[%s194 + $0x8] sm:$0xff]
        %v756 = vld [vmem:[%s194 + $0x10] sm:$0xff]
        %v757 = vld [vmem:[%s194 + $0x18] sm:$0xff]
        %v758 = vld [vmem:[%s194 + $0x20] sm:$0xff]
        %v759 = vld [vmem:[%s194 + $0x28] sm:$0xff]
        %v760 = vld [vmem:[%s194 + $0x30] sm:$0xff]
        %v761 = vld [vmem:[%s194 + $0x38] sm:$0xff]
        %v762 = vld [vmem:[%s194 + $0x40] sm:$0xff]
        %v763 = vld [vmem:[%s194 + $0x48] sm:$0xff]
        %v764 = vld [vmem:[%s194 + $0x50] sm:$0xff]
        %v765 = vld [vmem:[%s194 + $0x58] sm:$0xff]
        %v766 = vld [vmem:[%s194 + $0x60] sm:$0xff]
        %v767 = vld [vmem:[%s194 + $0x68] sm:$0xff]
        %v768 = vld [vmem:[%s194 + $0x70] sm:$0xff]
        %v769 = vld [vmem:[%s194 + $0x78] sm:$0xff]
        %v770 = vld [vmem:[%s194 + $0x80] sm:$0xff]
        %v771 = vld [vmem:[%s194 + $0x88] sm:$0xff]
        %v772 = vld [vmem:[%s194 + $0x90] sm:$0xff]
        %v773 = vld [vmem:[%s194 + $0x98] sm:$0xff]
        %v774 = vld [vmem:[%s194 + $0xa0] sm:$0xff]
        %v775 = vld [vmem:[%s194 + $0xa8] sm:$0xff]
        %v776 = vld [vmem:[%s194 + $0xb0] sm:$0xff]
        %v777 = vld [vmem:[%s194 + $0xb8] sm:$0xff]
        %v778 = vld [vmem:[%s194 + $0xc0] sm:$0xff]
        %v779 = vld [vmem:[%s194 + $0xc8] sm:$0xff]
        %v780 = vld [vmem:[%s194 + $0xd0] sm:$0xff]
        %v781 = vld [vmem:[%s194 + $0xd8] sm:$0xff]
        %v782 = vld [vmem:[%s194 + $0xe0] sm:$0xff]
        %v783 = vld [vmem:[%s194 + $0xe8] sm:$0xff]
        %v784 = vld [vmem:[%s194 + $0xf0] sm:$0xff]
        %v785 = vld [vmem:[%s194 + $0xf8] sm:$0xff]
        %v786 = vld [vmem:[%s194 + $0x100] sm:$0xff]
        %v787 = vld [vmem:[%s194 + $0x108] sm:$0xff]
        %v788 = vld [vmem:[%s194 + $0x110] sm:$0xff]
        %v789 = vld [vmem:[%s194 + $0x118] sm:$0xff]
        %v790 = vld [vmem:[%s194 + $0x120] sm:$0xff]
        %v791 = vld [vmem:[%s194 + $0x128] sm:$0xff]
        %v792 = vld [vmem:[%s194 + $0x130] sm:$0xff]
        %v793 = vld [vmem:[%s194 + $0x138] sm:$0xff]
        %v794 = vld [vmem:[%s194 + $0x140] sm:$0xff]
        %v795 = vld [vmem:[%s194 + $0x148] sm:$0xff]
        %v796 = vld [vmem:[%s194 + $0x150] sm:$0xff]
        %v797 = vld [vmem:[%s194 + $0x158] sm:$0xff]
        %v798 = vld [vmem:[%s194 + $0x160] sm:$0xff]
        %v799 = vld [vmem:[%s194 + $0x168] sm:$0xff]
        %v800 = vld [vmem:[%s194 + $0x170] sm:$0xff]
        %v801 = vld [vmem:[%s194 + $0x178] sm:$0xff]
        %v802 = vld [vmem:[%s194 + $0x180] sm:$0xff]
        %v803 = vld [vmem:[%s194 + $0x188] sm:$0xff]
        %v804 = vld [vmem:[%s194 + $0x190] sm:$0xff]
        %v805 = vld [vmem:[%s194 + $0x198] sm:$0xff]
        %v806 = vld [vmem:[%s194 + $0x1a0] sm:$0xff]
        %v807 = vld [vmem:[%s194 + $0x1a8] sm:$0xff]
        %v808 = vld [vmem:[%s194 + $0x1b0] sm:$0xff]
        %v809 = vld [vmem:[%s194 + $0x1b8] sm:$0xff]
        %v810 = vld [vmem:[%s194 + $0x1c0] sm:$0xff]
        %v811 = vld [vmem:[%s194 + $0x1c8] sm:$0xff]
        %v812 = vld [vmem:[%s194 + $0x1d0] sm:$0xff]
        %v813 = vld [vmem:[%s194 + $0x1d8] sm:$0xff]
        %v814 = vld [vmem:[%s194 + $0x1e0] sm:$0xff]
        %v815 = vld [vmem:[%s194 + $0x1e8] sm:$0xff]
        %v816 = vld [vmem:[%s194 + $0x1f0] sm:$0xff]
        %v817 = vld [vmem:[%s194 + $0x1f8] sm:$0xff]
        %v818 = vld [vmem:[%s194 + $0x200] sm:$0xff]
        %v819 = vld [vmem:[%s194 + $0x208] sm:$0xff]
        %v820 = vld [vmem:[%s194 + $0x210] sm:$0xff]
        %v821 = vld [vmem:[%s194 + $0x218] sm:$0xff]
        %v822 = vld [vmem:[%s194 + $0x220] sm:$0xff]
        %v823 = vld [vmem:[%s194 + $0x228] sm:$0xff]
        %v824 = vld [vmem:[%s194 + $0x230] sm:$0xff]
        %v825 = vld [vmem:[%s194 + $0x238] sm:$0xff]
        %v826 = vld [vmem:[%s194 + $0x240] sm:$0xff]
        %v827 = vld [vmem:[%s194 + $0x248] sm:$0xff]
        %v828 = vld [vmem:[%s194 + $0x250] sm:$0xff]
        %v829 = vld [vmem:[%s194 + $0x258] sm:$0xff]
        %v830 = vld [vmem:[%s194 + $0x260] sm:$0xff]
        %v831 = vld [vmem:[%s194 + $0x268] sm:$0xff]
        %v832 = vld [vmem:[%s194 + $0x270] sm:$0xff]
        %v833 = vld [vmem:[%s194 + $0x278] sm:$0xff]
        %v834 = vld [vmem:[%s194 + $0x280] sm:$0xff]
        %v835 = vld [vmem:[%s194 + $0x288] sm:$0xff]
        %v836 = vld [vmem:[%s194 + $0x290] sm:$0xff]
        %v837 = vld [vmem:[%s194 + $0x298] sm:$0xff]
        %v838 = vld [vmem:[%s194 + $0x2a0] sm:$0xff]
        %v839 = vld [vmem:[%s194 + $0x2a8] sm:$0xff]
        %v840 = vld [vmem:[%s194 + $0x2b0] sm:$0xff]
        %v841 = vld [vmem:[%s194 + $0x2b8] sm:$0xff]
        %v842 = vld [vmem:[%s194 + $0x2c0] sm:$0xff]
        %v843 = vld [vmem:[%s194 + $0x2c8] sm:$0xff]
        %v844 = vld [vmem:[%s194 + $0x2d0] sm:$0xff]
        %v845 = vld [vmem:[%s194 + $0x2d8] sm:$0xff]
        %v846 = vld [vmem:[%s194 + $0x2e0] sm:$0xff]
        %v847 = vld [vmem:[%s194 + $0x2e8] sm:$0xff]
        %v848 = vld [vmem:[%s194 + $0x2f0] sm:$0xff]
        %v849 = vld [vmem:[%s194 + $0x2f8] sm:$0xff]
        %v850 = vld [vmem:[%s194 + $0x300] sm:$0xff]
        %v851 = vld [vmem:[%s194 + $0x308] sm:$0xff]
        %v852 = vld [vmem:[%s194 + $0x310] sm:$0xff]
        %v853 = vld [vmem:[%s194 + $0x318] sm:$0xff]
        %v854 = vld [vmem:[%s194 + $0x320] sm:$0xff]
        %v855 = vld [vmem:[%s194 + $0x328] sm:$0xff]
        %v856 = vld [vmem:[%s194 + $0x330] sm:$0xff]
        %v857 = vld [vmem:[%s194 + $0x338] sm:$0xff]
        %v858 = vld [vmem:[%s194 + $0x340] sm:$0xff]
        %v859 = vld [vmem:[%s194 + $0x348] sm:$0xff]
        %v860 = vld [vmem:[%s194 + $0x350] sm:$0xff]
        %v861 = vld [vmem:[%s194 + $0x358] sm:$0xff]
        %v862 = vld [vmem:[%s194 + $0x360] sm:$0xff]
        %v863 = vld [vmem:[%s194 + $0x368] sm:$0xff]
        %v864 = vld [vmem:[%s194 + $0x370] sm:$0xff]
        %v865 = vld [vmem:[%s194 + $0x378] sm:$0xff]
        %v866 = vld [vmem:[%s194 + $0x380] sm:$0xff]
        %v867 = vld [vmem:[%s194 + $0x388] sm:$0xff]
        %v868 = vld [vmem:[%s194 + $0x390] sm:$0xff]
        %v869 = vld [vmem:[%s194 + $0x398] sm:$0xff]
        %v870 = vld [vmem:[%s194 + $0x3a0] sm:$0xff]
        %v871 = vld [vmem:[%s194 + $0x3a8] sm:$0xff]
        %v872 = vld [vmem:[%s194 + $0x3b0] sm:$0xff]
        %v873 = vld [vmem:[%s194 + $0x3b8] sm:$0xff]
        %v874 = vld [vmem:[%s194 + $0x3c0] sm:$0xff]
        %v875 = vld [vmem:[%s194 + $0x3c8] sm:$0xff]
        %v876 = vld [vmem:[%s194 + $0x3d0] sm:$0xff]
        %v877 = vld [vmem:[%s194 + $0x3d8] sm:$0xff]
        %v878 = vld [vmem:[%s194 + $0x3e0] sm:$0xff]
        %v879 = vld [vmem:[%s194 + $0x3e8] sm:$0xff]
        %v880 = vld [vmem:[%s194 + $0x3f0] sm:$0xff]
        %v881 = vld [vmem:[%s194 + $0x3f8] sm:$0xff]
        %v882 = vld [vmem:[%s203] sm:$0xff]
        %v883 = vld [vmem:[%s203 + $0x8] sm:$0xff]
        %v884 = vld [vmem:[%s203 + $0x10] sm:$0xff]
        %v885 = vld [vmem:[%s203 + $0x18] sm:$0xff]
        %v886 = vld [vmem:[%s203 + $0x20] sm:$0xff]
        %v887 = vld [vmem:[%s203 + $0x28] sm:$0xff]
        %v888 = vld [vmem:[%s203 + $0x30] sm:$0xff]
        %v889 = vld [vmem:[%s203 + $0x38] sm:$0xff]
        %v890 = vld [vmem:[%s203 + $0x40] sm:$0xff]
        %v891 = vld [vmem:[%s203 + $0x48] sm:$0xff]
        %v892 = vld [vmem:[%s203 + $0x50] sm:$0xff]
        %v893 = vld [vmem:[%s203 + $0x58] sm:$0xff]
        %v894 = vld [vmem:[%s203 + $0x60] sm:$0xff]
        %v895 = vld [vmem:[%s203 + $0x68] sm:$0xff]
        %v896 = vld [vmem:[%s203 + $0x70] sm:$0xff]
        %v897 = vld [vmem:[%s203 + $0x78] sm:$0xff]
        %v898 = vld [vmem:[%s203 + $0x80] sm:$0xff]
        %v899 = vld [vmem:[%s203 + $0x88] sm:$0xff]
        %v900 = vld [vmem:[%s203 + $0x90] sm:$0xff]
        %v901 = vld [vmem:[%s203 + $0x98] sm:$0xff]
        %v902 = vld [vmem:[%s203 + $0xa0] sm:$0xff]
        %v903 = vld [vmem:[%s203 + $0xa8] sm:$0xff]
        %v904 = vld [vmem:[%s203 + $0xb0] sm:$0xff]
        %v905 = vld [vmem:[%s203 + $0xb8] sm:$0xff]
        %v906 = vld [vmem:[%s203 + $0xc0] sm:$0xff]
        %v907 = vld [vmem:[%s203 + $0xc8] sm:$0xff]
        %v908 = vld [vmem:[%s203 + $0xd0] sm:$0xff]
        %v909 = vld [vmem:[%s203 + $0xd8] sm:$0xff]
        %v910 = vld [vmem:[%s203 + $0xe0] sm:$0xff]
        %v911 = vld [vmem:[%s203 + $0xe8] sm:$0xff]
        %v912 = vld [vmem:[%s203 + $0xf0] sm:$0xff]
        %v913 = vld [vmem:[%s203 + $0xf8] sm:$0xff]
        %v914 = vld [vmem:[%s203 + $0x100] sm:$0xff]
        %v915 = vld [vmem:[%s203 + $0x108] sm:$0xff]
        %v916 = vld [vmem:[%s203 + $0x110] sm:$0xff]
        %v917 = vld [vmem:[%s203 + $0x118] sm:$0xff]
        %v918 = vld [vmem:[%s203 + $0x120] sm:$0xff]
        %v919 = vld [vmem:[%s203 + $0x128] sm:$0xff]
        %v920 = vld [vmem:[%s203 + $0x130] sm:$0xff]
        %v921 = vld [vmem:[%s203 + $0x138] sm:$0xff]
        %v922 = vld [vmem:[%s203 + $0x140] sm:$0xff]
        %v923 = vld [vmem:[%s203 + $0x148] sm:$0xff]
        %v924 = vld [vmem:[%s203 + $0x150] sm:$0xff]
        %v925 = vld [vmem:[%s203 + $0x158] sm:$0xff]
        %v926 = vld [vmem:[%s203 + $0x160] sm:$0xff]
        %v927 = vld [vmem:[%s203 + $0x168] sm:$0xff]
        %v928 = vld [vmem:[%s203 + $0x170] sm:$0xff]
        %v929 = vld [vmem:[%s203 + $0x178] sm:$0xff]
        %v930 = vld [vmem:[%s203 + $0x180] sm:$0xff]
        %v931 = vld [vmem:[%s203 + $0x188] sm:$0xff]
        %v932 = vld [vmem:[%s203 + $0x190] sm:$0xff]
        %v933 = vld [vmem:[%s203 + $0x198] sm:$0xff]
        %v934 = vld [vmem:[%s203 + $0x1a0] sm:$0xff]
        %v935 = vld [vmem:[%s203 + $0x1a8] sm:$0xff]
        %v936 = vld [vmem:[%s203 + $0x1b0] sm:$0xff]
        %v937 = vld [vmem:[%s203 + $0x1b8] sm:$0xff]
        %v938 = vld [vmem:[%s203 + $0x1c0] sm:$0xff]
        %v939 = vld [vmem:[%s203 + $0x1c8] sm:$0xff]
        %v940 = vld [vmem:[%s203 + $0x1d0] sm:$0xff]
        %v941 = vld [vmem:[%s203 + $0x1d8] sm:$0xff]
        %v942 = vld [vmem:[%s203 + $0x1e0] sm:$0xff]
        %v943 = vld [vmem:[%s203 + $0x1e8] sm:$0xff]
        %v944 = vld [vmem:[%s203 + $0x1f0] sm:$0xff]
        %v945 = vld [vmem:[%s203 + $0x1f8] sm:$0xff]
        %v946 = vld [vmem:[%s203 + $0x200] sm:$0xff]
        %v947 = vld [vmem:[%s203 + $0x208] sm:$0xff]
        %v948 = vld [vmem:[%s203 + $0x210] sm:$0xff]
        %v949 = vld [vmem:[%s203 + $0x218] sm:$0xff]
        %v950 = vld [vmem:[%s203 + $0x220] sm:$0xff]
        %v951 = vld [vmem:[%s203 + $0x228] sm:$0xff]
        %v952 = vld [vmem:[%s203 + $0x230] sm:$0xff]
        %v953 = vld [vmem:[%s203 + $0x238] sm:$0xff]
        %v954 = vld [vmem:[%s203 + $0x240] sm:$0xff]
        %v955 = vld [vmem:[%s203 + $0x248] sm:$0xff]
        %v956 = vld [vmem:[%s203 + $0x250] sm:$0xff]
        %v957 = vld [vmem:[%s203 + $0x258] sm:$0xff]
        %v958 = vld [vmem:[%s203 + $0x260] sm:$0xff]
        %v959 = vld [vmem:[%s203 + $0x268] sm:$0xff]
        %v960 = vld [vmem:[%s203 + $0x270] sm:$0xff]
        %v961 = vld [vmem:[%s203 + $0x278] sm:$0xff]
        %v962 = vld [vmem:[%s203 + $0x280] sm:$0xff]
        %v963 = vld [vmem:[%s203 + $0x288] sm:$0xff]
        %v964 = vld [vmem:[%s203 + $0x290] sm:$0xff]
        %v965 = vld [vmem:[%s203 + $0x298] sm:$0xff]
        %v966 = vld [vmem:[%s203 + $0x2a0] sm:$0xff]
        %v967 = vld [vmem:[%s203 + $0x2a8] sm:$0xff]
        %v968 = vld [vmem:[%s203 + $0x2b0] sm:$0xff]
        %v969 = vld [vmem:[%s203 + $0x2b8] sm:$0xff]
        %v970 = vld [vmem:[%s203 + $0x2c0] sm:$0xff]
        %v971 = vld [vmem:[%s203 + $0x2c8] sm:$0xff]
        %v972 = vld [vmem:[%s203 + $0x2d0] sm:$0xff]
        %v973 = vld [vmem:[%s203 + $0x2d8] sm:$0xff]
        %v974 = vld [vmem:[%s203 + $0x2e0] sm:$0xff]
        %v975 = vld [vmem:[%s203 + $0x2e8] sm:$0xff]
        %v976 = vld [vmem:[%s203 + $0x2f0] sm:$0xff]
        %v977 = vld [vmem:[%s203 + $0x2f8] sm:$0xff]
        %v978 = vld [vmem:[%s203 + $0x300] sm:$0xff]
        %v979 = vld [vmem:[%s203 + $0x308] sm:$0xff]
        %v980 = vld [vmem:[%s203 + $0x310] sm:$0xff]
        %v981 = vld [vmem:[%s203 + $0x318] sm:$0xff]
        %v982 = vld [vmem:[%s203 + $0x320] sm:$0xff]
        %v983 = vld [vmem:[%s203 + $0x328] sm:$0xff]
        %v984 = vld [vmem:[%s203 + $0x330] sm:$0xff]
        %v985 = vld [vmem:[%s203 + $0x338] sm:$0xff]
        %v986 = vld [vmem:[%s203 + $0x340] sm:$0xff]
        %v987 = vld [vmem:[%s203 + $0x348] sm:$0xff]
        %v988 = vld [vmem:[%s203 + $0x350] sm:$0xff]
        %v989 = vld [vmem:[%s203 + $0x358] sm:$0xff]
        %v990 = vld [vmem:[%s203 + $0x360] sm:$0xff]
        %v991 = vld [vmem:[%s203 + $0x368] sm:$0xff]
        %v992 = vld [vmem:[%s203 + $0x370] sm:$0xff]
        %v993 = vld [vmem:[%s203 + $0x378] sm:$0xff]
        %v994 = vld [vmem:[%s203 + $0x380] sm:$0xff]
        %v995 = vld [vmem:[%s203 + $0x388] sm:$0xff]
        %v996 = vld [vmem:[%s203 + $0x390] sm:$0xff]
        %v997 = vld [vmem:[%s203 + $0x398] sm:$0xff]
        %v998 = vld [vmem:[%s203 + $0x3a0] sm:$0xff]
        %v999 = vld [vmem:[%s203 + $0x3a8] sm:$0xff]
        %v1000 = vld [vmem:[%s203 + $0x3b0] sm:$0xff]
        %v1001 = vld [vmem:[%s203 + $0x3b8] sm:$0xff]
        %v1002 = vld [vmem:[%s203 + $0x3c0] sm:$0xff]
        %v1003 = vld [vmem:[%s203 + $0x3c8] sm:$0xff]
        %v1004 = vld [vmem:[%s203 + $0x3d0] sm:$0xff]
        %v1005 = vld [vmem:[%s203 + $0x3d8] sm:$0xff]
        %v1006 = vld [vmem:[%s203 + $0x3e0] sm:$0xff]
        %v1007 = vld [vmem:[%s203 + $0x3e8] sm:$0xff]
        %v1008 = vld [vmem:[%s203 + $0x3f0] sm:$0xff]
        %v1009 = vld [vmem:[%s203 + $0x3f8] sm:$0xff]
        %1010 = vxpose.xlu0.b32.start [1/16] %v754, 128
        %1011 = vxpose.xlu0.b32.cont [2/16] %v758, 128
        %1012 = vxpose.xlu0.b32.cont [3/16] %v762, 128
        %1013 = vxpose.xlu0.b32.cont [4/16] %v766, 128
        %1014 = vxpose.xlu0.b32.cont [5/16] %v770, 128
        %1015 = vxpose.xlu0.b32.cont [6/16] %v774, 128
        %1016 = vxpose.xlu0.b32.cont [7/16] %v778, 128
        %1017 = vxpose.xlu0.b32.cont [8/16] %v782, 128
        %1018 = vxpose.xlu0.b32.cont [9/16] %v786, 128
        %1019 = vxpose.xlu0.b32.cont [10/16] %v790, 128
        %1020 = vxpose.xlu0.b32.cont [11/16] %v794, 128
        %1021 = vxpose.xlu0.b32.cont [12/16] %v798, 128
        %1022 = vxpose.xlu0.b32.cont [13/16] %v802, 128
        %1023 = vxpose.xlu0.b32.cont [14/16] %v806, 128
        %1024 = vxpose.xlu0.b32.cont [15/16] %v810, 128
        %1025 = vxpose.xlu0.b32.end [16/16] %v814, 128
        %v1026 = vpop.trf.xlu0
        %v1027 = vpop.trf.xlu0
        %v1028 = vpop.trf.xlu0
        %v1029 = vpop.trf.xlu0
        %v1030 = vpop.trf.xlu0
        %v1031 = vpop.trf.xlu0
        %v1032 = vpop.trf.xlu0
        %v1033 = vpop.trf.xlu0
        %v1034 = vpop.trf.xlu0
        %v1035 = vpop.trf.xlu0
        %v1036 = vpop.trf.xlu0
        %v1037 = vpop.trf.xlu0
        %v1038 = vpop.trf.xlu0
        %v1039 = vpop.trf.xlu0
        %v1040 = vpop.trf.xlu0
        %v1041 = vpop.trf.xlu0
        %1042 = vxpose.xlu0.b32.start [1/16] %v755, 128
        %1043 = vxpose.xlu0.b32.cont [2/16] %v759, 128
        %1044 = vxpose.xlu0.b32.cont [3/16] %v763, 128
        %1045 = vxpose.xlu0.b32.cont [4/16] %v767, 128
        %1046 = vxpose.xlu0.b32.cont [5/16] %v771, 128
        %1047 = vxpose.xlu0.b32.cont [6/16] %v775, 128
        %1048 = vxpose.xlu0.b32.cont [7/16] %v779, 128
        %1049 = vxpose.xlu0.b32.cont [8/16] %v783, 128
        %1050 = vxpose.xlu0.b32.cont [9/16] %v787, 128
        %1051 = vxpose.xlu0.b32.cont [10/16] %v791, 128
        %1052 = vxpose.xlu0.b32.cont [11/16] %v795, 128
        %1053 = vxpose.xlu0.b32.cont [12/16] %v799, 128
        %1054 = vxpose.xlu0.b32.cont [13/16] %v803, 128
        %1055 = vxpose.xlu0.b32.cont [14/16] %v807, 128
        %1056 = vxpose.xlu0.b32.cont [15/16] %v811, 128
        %1057 = vxpose.xlu0.b32.end [16/16] %v815, 128
        %v1058 = vpop.trf.xlu0
        %v1059 = vpop.trf.xlu0
        %v1060 = vpop.trf.xlu0
        %v1061 = vpop.trf.xlu0
        %v1062 = vpop.trf.xlu0
        %v1063 = vpop.trf.xlu0
        %v1064 = vpop.trf.xlu0
        %v1065 = vpop.trf.xlu0
        %v1066 = vpop.trf.xlu0
        %v1067 = vpop.trf.xlu0
        %v1068 = vpop.trf.xlu0
        %v1069 = vpop.trf.xlu0
        %v1070 = vpop.trf.xlu0
        %v1071 = vpop.trf.xlu0
        %v1072 = vpop.trf.xlu0
        %v1073 = vpop.trf.xlu0
        %1074 = vxpose.xlu0.b32.start [1/16] %v756, 128
        %1075 = vxpose.xlu0.b32.cont [2/16] %v760, 128
        %1076 = vxpose.xlu0.b32.cont [3/16] %v764, 128
        %1077 = vxpose.xlu0.b32.cont [4/16] %v768, 128
        %1078 = vxpose.xlu0.b32.cont [5/16] %v772, 128
        %1079 = vxpose.xlu0.b32.cont [6/16] %v776, 128
        %1080 = vxpose.xlu0.b32.cont [7/16] %v780, 128
        %1081 = vxpose.xlu0.b32.cont [8/16] %v784, 128
        %1082 = vxpose.xlu0.b32.cont [9/16] %v788, 128
        %1083 = vxpose.xlu0.b32.cont [10/16] %v792, 128
        %1084 = vxpose.xlu0.b32.cont [11/16] %v796, 128
        %1085 = vxpose.xlu0.b32.cont [12/16] %v800, 128
        %1086 = vxpose.xlu0.b32.cont [13/16] %v804, 128
        %1087 = vxpose.xlu0.b32.cont [14/16] %v808, 128
        %1088 = vxpose.xlu0.b32.cont [15/16] %v812, 128
        %1089 = vxpose.xlu0.b32.end [16/16] %v816, 128
        %v1090 = vpop.trf.xlu0
        %v1091 = vpop.trf.xlu0
        %v1092 = vpop.trf.xlu0
        %v1093 = vpop.trf.xlu0
        %v1094 = vpop.trf.xlu0
        %v1095 = vpop.trf.xlu0
        %v1096 = vpop.trf.xlu0
        %v1097 = vpop.trf.xlu0
        %v1098 = vpop.trf.xlu0
        %v1099 = vpop.trf.xlu0
        %v1100 = vpop.trf.xlu0
        %v1101 = vpop.trf.xlu0
        %v1102 = vpop.trf.xlu0
        %v1103 = vpop.trf.xlu0
        %v1104 = vpop.trf.xlu0
        %v1105 = vpop.trf.xlu0
        %1106 = vxpose.xlu0.b32.start [1/16] %v757, 128
        %1107 = vxpose.xlu0.b32.cont [2/16] %v761, 128
        %1108 = vxpose.xlu0.b32.cont [3/16] %v765, 128
        %1109 = vxpose.xlu0.b32.cont [4/16] %v769, 128
        %1110 = vxpose.xlu0.b32.cont [5/16] %v773, 128
        %1111 = vxpose.xlu0.b32.cont [6/16] %v777, 128
        %1112 = vxpose.xlu0.b32.cont [7/16] %v781, 128
        %1113 = vxpose.xlu0.b32.cont [8/16] %v785, 128
        %1114 = vxpose.xlu0.b32.cont [9/16] %v789, 128
        %1115 = vxpose.xlu0.b32.cont [10/16] %v793, 128
        %1116 = vxpose.xlu0.b32.cont [11/16] %v797, 128
        %1117 = vxpose.xlu0.b32.cont [12/16] %v801, 128
        %1118 = vxpose.xlu0.b32.cont [13/16] %v805, 128
        %1119 = vxpose.xlu0.b32.cont [14/16] %v809, 128
        %1120 = vxpose.xlu0.b32.cont [15/16] %v813, 128
        %1121 = vxpose.xlu0.b32.end [16/16] %v817, 128
        %v1122 = vpop.trf.xlu0
        %v1123 = vpop.trf.xlu0
        %v1124 = vpop.trf.xlu0
        %v1125 = vpop.trf.xlu0
        %v1126 = vpop.trf.xlu0
        %v1127 = vpop.trf.xlu0
        %v1128 = vpop.trf.xlu0
        %v1129 = vpop.trf.xlu0
        %v1130 = vpop.trf.xlu0
        %v1131 = vpop.trf.xlu0
        %v1132 = vpop.trf.xlu0
        %v1133 = vpop.trf.xlu0
        %v1134 = vpop.trf.xlu0
        %v1135 = vpop.trf.xlu0
        %v1136 = vpop.trf.xlu0
        %v1137 = vpop.trf.xlu0
        %1138 = vxpose.xlu0.b32.start [1/16] %v818, 128
        %1139 = vxpose.xlu0.b32.cont [2/16] %v822, 128
        %1140 = vxpose.xlu0.b32.cont [3/16] %v826, 128
        %1141 = vxpose.xlu0.b32.cont [4/16] %v830, 128
        %1142 = vxpose.xlu0.b32.cont [5/16] %v834, 128
        %1143 = vxpose.xlu0.b32.cont [6/16] %v838, 128
        %1144 = vxpose.xlu0.b32.cont [7/16] %v842, 128
        %1145 = vxpose.xlu0.b32.cont [8/16] %v846, 128
        %1146 = vxpose.xlu0.b32.cont [9/16] %v850, 128
        %1147 = vxpose.xlu0.b32.cont [10/16] %v854, 128
        %1148 = vxpose.xlu0.b32.cont [11/16] %v858, 128
        %1149 = vxpose.xlu0.b32.cont [12/16] %v862, 128
        %1150 = vxpose.xlu0.b32.cont [13/16] %v866, 128
        %1151 = vxpose.xlu0.b32.cont [14/16] %v870, 128
        %1152 = vxpose.xlu0.b32.cont [15/16] %v874, 128
        %1153 = vxpose.xlu0.b32.end [16/16] %v878, 128
        %v1154 = vpop.trf.xlu0
        %v1155 = vpop.trf.xlu0
        %v1156 = vpop.trf.xlu0
        %v1157 = vpop.trf.xlu0
        %v1158 = vpop.trf.xlu0
        %v1159 = vpop.trf.xlu0
        %v1160 = vpop.trf.xlu0
        %v1161 = vpop.trf.xlu0
        %v1162 = vpop.trf.xlu0
        %v1163 = vpop.trf.xlu0
        %v1164 = vpop.trf.xlu0
        %v1165 = vpop.trf.xlu0
        %v1166 = vpop.trf.xlu0
        %v1167 = vpop.trf.xlu0
        %v1168 = vpop.trf.xlu0
        %v1169 = vpop.trf.xlu0
        %1170 = vxpose.xlu0.b32.start [1/16] %v819, 128
        %1171 = vxpose.xlu0.b32.cont [2/16] %v823, 128
        %1172 = vxpose.xlu0.b32.cont [3/16] %v827, 128
        %1173 = vxpose.xlu0.b32.cont [4/16] %v831, 128
        %1174 = vxpose.xlu0.b32.cont [5/16] %v835, 128
        %1175 = vxpose.xlu0.b32.cont [6/16] %v839, 128
        %1176 = vxpose.xlu0.b32.cont [7/16] %v843, 128
        %1177 = vxpose.xlu0.b32.cont [8/16] %v847, 128
        %1178 = vxpose.xlu0.b32.cont [9/16] %v851, 128
        %1179 = vxpose.xlu0.b32.cont [10/16] %v855, 128
        %1180 = vxpose.xlu0.b32.cont [11/16] %v859, 128
        %1181 = vxpose.xlu0.b32.cont [12/16] %v863, 128
        %1182 = vxpose.xlu0.b32.cont [13/16] %v867, 128
        %1183 = vxpose.xlu0.b32.cont [14/16] %v871, 128
        %1184 = vxpose.xlu0.b32.cont [15/16] %v875, 128
        %1185 = vxpose.xlu0.b32.end [16/16] %v879, 128
        %v1186 = vpop.trf.xlu0
        %v1187 = vpop.trf.xlu0
        %v1188 = vpop.trf.xlu0
        %v1189 = vpop.trf.xlu0
        %v1190 = vpop.trf.xlu0
        %v1191 = vpop.trf.xlu0
        %v1192 = vpop.trf.xlu0
        %v1193 = vpop.trf.xlu0
        %v1194 = vpop.trf.xlu0
        %v1195 = vpop.trf.xlu0
        %v1196 = vpop.trf.xlu0
        %v1197 = vpop.trf.xlu0
        %v1198 = vpop.trf.xlu0
        %v1199 = vpop.trf.xlu0
        %v1200 = vpop.trf.xlu0
        %v1201 = vpop.trf.xlu0
        %1202 = vxpose.xlu0.b32.start [1/16] %v820, 128
        %1203 = vxpose.xlu0.b32.cont [2/16] %v824, 128
        %1204 = vxpose.xlu0.b32.cont [3/16] %v828, 128
        %1205 = vxpose.xlu0.b32.cont [4/16] %v832, 128
        %1206 = vxpose.xlu0.b32.cont [5/16] %v836, 128
        %1207 = vxpose.xlu0.b32.cont [6/16] %v840, 128
        %1208 = vxpose.xlu0.b32.cont [7/16] %v844, 128
        %1209 = vxpose.xlu0.b32.cont [8/16] %v848, 128
        %1210 = vxpose.xlu0.b32.cont [9/16] %v852, 128
        %1211 = vxpose.xlu0.b32.cont [10/16] %v856, 128
        %1212 = vxpose.xlu0.b32.cont [11/16] %v860, 128
        %1213 = vxpose.xlu0.b32.cont [12/16] %v864, 128
        %1214 = vxpose.xlu0.b32.cont [13/16] %v868, 128
        %1215 = vxpose.xlu0.b32.cont [14/16] %v872, 128
        %1216 = vxpose.xlu0.b32.cont [15/16] %v876, 128
        %1217 = vxpose.xlu0.b32.end [16/16] %v880, 128
        %v1218 = vpop.trf.xlu0
        %v1219 = vpop.trf.xlu0
        %v1220 = vpop.trf.xlu0
        %v1221 = vpop.trf.xlu0
        %v1222 = vpop.trf.xlu0
        %v1223 = vpop.trf.xlu0
        %v1224 = vpop.trf.xlu0
        %v1225 = vpop.trf.xlu0
        %v1226 = vpop.trf.xlu0
        %v1227 = vpop.trf.xlu0
        %v1228 = vpop.trf.xlu0
        %v1229 = vpop.trf.xlu0
        %v1230 = vpop.trf.xlu0
        %v1231 = vpop.trf.xlu0
        %v1232 = vpop.trf.xlu0
        %v1233 = vpop.trf.xlu0
        %1234 = vxpose.xlu0.b32.start [1/16] %v821, 128
        %1235 = vxpose.xlu0.b32.cont [2/16] %v825, 128
        %1236 = vxpose.xlu0.b32.cont [3/16] %v829, 128
        %1237 = vxpose.xlu0.b32.cont [4/16] %v833, 128
        %1238 = vxpose.xlu0.b32.cont [5/16] %v837, 128
        %1239 = vxpose.xlu0.b32.cont [6/16] %v841, 128
        %1240 = vxpose.xlu0.b32.cont [7/16] %v845, 128
        %1241 = vxpose.xlu0.b32.cont [8/16] %v849, 128
        %1242 = vxpose.xlu0.b32.cont [9/16] %v853, 128
        %1243 = vxpose.xlu0.b32.cont [10/16] %v857, 128
        %1244 = vxpose.xlu0.b32.cont [11/16] %v861, 128
        %1245 = vxpose.xlu0.b32.cont [12/16] %v865, 128
        %1246 = vxpose.xlu0.b32.cont [13/16] %v869, 128
        %1247 = vxpose.xlu0.b32.cont [14/16] %v873, 128
        %1248 = vxpose.xlu0.b32.cont [15/16] %v877, 128
        %1249 = vxpose.xlu0.b32.end [16/16] %v881, 128
        %v1250 = vpop.trf.xlu0
        %v1251 = vpop.trf.xlu0
        %v1252 = vpop.trf.xlu0
        %v1253 = vpop.trf.xlu0
        %v1254 = vpop.trf.xlu0
        %v1255 = vpop.trf.xlu0
        %v1256 = vpop.trf.xlu0
        %v1257 = vpop.trf.xlu0
        %v1258 = vpop.trf.xlu0
        %v1259 = vpop.trf.xlu0
        %v1260 = vpop.trf.xlu0
        %v1261 = vpop.trf.xlu0
        %v1262 = vpop.trf.xlu0
        %v1263 = vpop.trf.xlu0
        %v1264 = vpop.trf.xlu0
        %v1265 = vpop.trf.xlu0
        %1266 = vmatprep.subr.mxu0 %v883
        %1267 = vmatpush1.msra.mxu0 %v882
        %1268 = vmatprep.subr.mxu0 %v887
        %1269 = vmatpush1.msra.mxu0 %v886
        %1270 = vmatprep.subr.mxu0 %v891
        %1271 = vmatpush1.msra.mxu0 %v890
        %1272 = vmatprep.subr.mxu0 %v895
        %1273 = vmatpush1.msra.mxu0 %v894
        %1274 = vmatprep.subr.mxu0 %v899
        %1275 = vmatpush1.msra.mxu0 %v898
        %1276 = vmatprep.subr.mxu0 %v903
        %1277 = vmatpush1.msra.mxu0 %v902
        %1278 = vmatprep.subr.mxu0 %v907
        %1279 = vmatpush1.msra.mxu0 %v906
        %1280 = vmatprep.subr.mxu0 %v911
        %1281 = vmatpush1.msra.mxu0 %v910
        %1282 = vmatprep.subr.mxu0 %v915
        %1283 = vmatpush1.msra.mxu0 %v914
        %1284 = vmatprep.subr.mxu0 %v919
        %1285 = vmatpush1.msra.mxu0 %v918
        %1286 = vmatprep.subr.mxu0 %v923
        %1287 = vmatpush1.msra.mxu0 %v922
        %1288 = vmatprep.subr.mxu0 %v927
        %1289 = vmatpush1.msra.mxu0 %v926
        %1290 = vmatprep.subr.mxu0 %v931
        %1291 = vmatpush1.msra.mxu0 %v930
        %1292 = vmatprep.subr.mxu0 %v935
        %1293 = vmatpush1.msra.mxu0 %v934
        %1294 = vmatprep.subr.mxu0 %v939
        %1295 = vmatpush1.msra.mxu0 %v938
        %1296 = vmatprep.subr.mxu0 %v943
        %1297 = vmatpush1.msra.mxu0 %v942
        %1298 = vmatprep.subr.mxu0 %v947
        %1299 = vmatpush1.msra.mxu0 %v946
        %1300 = vmatprep.subr.mxu0 %v951
        %1301 = vmatpush1.msra.mxu0 %v950
        %1302 = vmatprep.subr.mxu0 %v955
        %1303 = vmatpush1.msra.mxu0 %v954
        %1304 = vmatprep.subr.mxu0 %v959
        %1305 = vmatpush1.msra.mxu0 %v958
        %1306 = vmatprep.subr.mxu0 %v963
        %1307 = vmatpush1.msra.mxu0 %v962
        %1308 = vmatprep.subr.mxu0 %v967
        %1309 = vmatpush1.msra.mxu0 %v966
        %1310 = vmatprep.subr.mxu0 %v971
        %1311 = vmatpush1.msra.mxu0 %v970
        %1312 = vmatprep.subr.mxu0 %v975
        %1313 = vmatpush1.msra.mxu0 %v974
        %1314 = vmatprep.subr.mxu0 %v979
        %1315 = vmatpush1.msra.mxu0 %v978
        %1316 = vmatprep.subr.mxu0 %v983
        %1317 = vmatpush1.msra.mxu0 %v982
        %1318 = vmatprep.subr.mxu0 %v987
        %1319 = vmatpush1.msra.mxu0 %v986
        %1320 = vmatprep.subr.mxu0 %v991
        %1321 = vmatpush1.msra.mxu0 %v990
        %1322 = vmatprep.subr.mxu0 %v995
        %1323 = vmatpush1.msra.mxu0 %v994
        %1324 = vmatprep.subr.mxu0 %v999
        %1325 = vmatpush1.msra.mxu0 %v998
        %1326 = vmatprep.subr.mxu0 %v1003
        %1327 = vmatpush1.msra.mxu0 %v1002
        %1328 = vmatprep.subr.mxu0 %v1007
        %1329 = vmatpush1.msra.mxu0 %v1006
        %1330 = vmatprep.mubr.f32.mxu0 %v1154
        %1331 = vmatmul.mubr.f32.gmra.mrb[0].mxu0 %v1026
        %v1332 = vpop.f32.mrb[0].mxu0
        %v1333 = vadd.f32 0.0, %v1332
        %v1334 = vpop.f32.mrb[0].mxu0
        %v1335 = vadd.f32 0.0, %v1334
        %1336 = vmatprep.mubr.f32.mxu0 %v1155
        %1337 = vmatmul.mubr.f32.gmra.mrb[0].mxu0 %v1027
        %v1338 = vpop.f32.mrb[0].mxu0
        %v1339 = vadd.f32 0.0, %v1338
        %v1340 = vpop.f32.mrb[0].mxu0
        %v1341 = vadd.f32 0.0, %v1340
        %1342 = vmatprep.mubr.f32.mxu0 %v1156
        %1343 = vmatmul.mubr.f32.gmra.mrb[0].mxu0 %v1028
        %v1344 = vpop.f32.mrb[0].mxu0
        %v1345 = vadd.f32 0.0, %v1344
        %v1346 = vpop.f32.mrb[0].mxu0
        %v1347 = vadd.f32 0.0, %v1346
        %1348 = vmatprep.mubr.f32.mxu0 %v1157
        %1349 = vmatmul.mubr.f32.gmra.mrb[0].mxu0 %v1029
        %v1350 = vpop.f32.mrb[0].mxu0
        %v1351 = vadd.f32 0.0, %v1350
        %v1352 = vpop.f32.mrb[0].mxu0
        %v1353 = vadd.f32 0.0, %v1352
        %1354 = vmatprep.mubr.f32.mxu0 %v1158
        %1355 = vmatmul.mubr.f32.gmra.mrb[0].mxu0 %v1030
        %v1356 = vpop.f32.mrb[0].mxu0
        %v1357 = vadd.f32 0.0, %v1356
        %v1358 = vpop.f32.mrb[0].mxu0
        %v1359 = vadd.f32 0.0, %v1358
        %1360 = vmatprep.mubr.f32.mxu0 %v1159
        %1361 = vmatmul.mubr.f32.gmra.mrb[0].mxu0 %v1031
        %v1362 = vpop.f32.mrb[0].mxu0
        %v1363 = vadd.f32 0.0, %v1362
        %v1364 = vpop.f32.mrb[0].mxu0
        %v1365 = vadd.f32 0.0, %v1364
        %1366 = vmatprep.mubr.f32.mxu0 %v1160
        %1367 = vmatmul.mubr.f32.gmra.mrb[0].mxu0 %v1032
        %v1368 = vpop.f32.mrb[0].mxu0
        %v1369 = vadd.f32 0.0, %v1368
        %v1370 = vpop.f32.mrb[0].mxu0
        %v1371 = vadd.f32 0.0, %v1370
        %1372 = vmatprep.mubr.f32.mxu0 %v1161
        %1373 = vmatmul.mubr.f32.gmra.mrb[0].mxu0 %v1033
        %v1374 = vpop.f32.mrb[0].mxu0
        %v1375 = vadd.f32 0.0, %v1374
        %v1376 = vpop.f32.mrb[0].mxu0
        %v1377 = vadd.f32 0.0, %v1376
        %1378 = vmatprep.mubr.f32.mxu0 %v1162
        %1379 = vmatmul.mubr.f32.gmra.mrb[0].mxu0 %v1034
        %v1380 = vpop.f32.mrb[0].mxu0
        %v1381 = vadd.f32 0.0, %v1380
        %v1382 = vpop.f32.mrb[0].mxu0
        %v1383 = vadd.f32 0.0, %v1382
        %1384 = vmatprep.mubr.f32.mxu0 %v1163
        %1385 = vmatmul.mubr.f32.gmra.mrb[0].mxu0 %v1035
        %v1386 = vpop.f32.mrb[0].mxu0
        %v1387 = vadd.f32 0.0, %v1386
        %v1388 = vpop.f32.mrb[0].mxu0
        %v1389 = vadd.f32 0.0, %v1388
        %1390 = vmatprep.mubr.f32.mxu0 %v1164
        %1391 = vmatmul.mubr.f32.gmra.mrb[0].mxu0 %v1036
        %v1392 = vpop.f32.mrb[0].mxu0
        %v1393 = vadd.f32 0.0, %v1392
        %v1394 = vpop.f32.mrb[0].mxu0
        %v1395 = vadd.f32 0.0, %v1394
        %1396 = vmatprep.mubr.f32.mxu0 %v1165
        %1397 = vmatmul.mubr.f32.gmra.mrb[0].mxu0 %v1037
        %v1398 = vpop.f32.mrb[0].mxu0
        %v1399 = vadd.f32 0.0, %v1398
        %v1400 = vpop.f32.mrb[0].mxu0
        %v1401 = vadd.f32 0.0, %v1400
        %1402 = vmatprep.mubr.f32.mxu0 %v1166
        %1403 = vmatmul.mubr.f32.gmra.mrb[0].mxu0 %v1038
        %v1404 = vpop.f32.mrb[0].mxu0
        %v1405 = vadd.f32 0.0, %v1404
        %v1406 = vpop.f32.mrb[0].mxu0
        %v1407 = vadd.f32 0.0, %v1406
        %1408 = vmatprep.mubr.f32.mxu0 %v1167
        %1409 = vmatmul.mubr.f32.gmra.mrb[0].mxu0 %v1039
        %v1410 = vpop.f32.mrb[0].mxu0
        %v1411 = vadd.f32 0.0, %v1410
        %v1412 = vpop.f32.mrb[0].mxu0
        %v1413 = vadd.f32 0.0, %v1412
        %1414 = vmatprep.mubr.f32.mxu0 %v1168
        %1415 = vmatmul.mubr.f32.gmra.mrb[0].mxu0 %v1040
        %v1416 = vpop.f32.mrb[0].mxu0
        %v1417 = vadd.f32 0.0, %v1416
        %v1418 = vpop.f32.mrb[0].mxu0
        %v1419 = vadd.f32 0.0, %v1418
        %1420 = vmatprep.mubr.f32.mxu0 %v1169
        %1421 = vmatmul.mubr.f32.gmra.mrb[0].mxu0 %v1041
        %v1422 = vpop.f32.mrb[0].mxu0
        %v1423 = vadd.f32 0.0, %v1422
        %v1424 = vpop.f32.mrb[0].mxu0
        %v1425 = vadd.f32 0.0, %v1424
        %1426 = vmatprep.mubr.f32.mxu0 %v1186
        %1427 = vmatmul.mubr.f32.gmra.mrb[0].mxu0 %v1058
        %v1428 = vpop.f32.mrb[0].mxu0
        %v1429 = vadd.f32 0.0, %v1428
        %v1430 = vpop.f32.mrb[0].mxu0
        %v1431 = vadd.f32 0.0, %v1430
        %1432 = vmatprep.mubr.f32.mxu0 %v1187
        %1433 = vmatmul.mubr.f32.gmra.mrb[0].mxu0 %v1059
        %v1434 = vpop.f32.mrb[0].mxu0
        %v1435 = vadd.f32 0.0, %v1434
        %v1436 = vpop.f32.mrb[0].mxu0
        %v1437 = vadd.f32 0.0, %v1436
        %1438 = vmatprep.mubr.f32.mxu0 %v1188
        %1439 = vmatmul.mubr.f32.gmra.mrb[0].mxu0 %v1060
        %v1440 = vpop.f32.mrb[0].mxu0
        %v1441 = vadd.f32 0.0, %v1440
        %v1442 = vpop.f32.mrb[0].mxu0
        %v1443 = vadd.f32 0.0, %v1442
        %1444 = vmatprep.mubr.f32.mxu0 %v1189
        %1445 = vmatmul.mubr.f32.gmra.mrb[0].mxu0 %v1061
        %v1446 = vpop.f32.mrb[0].mxu0
        %v1447 = vadd.f32 0.0, %v1446
        %v1448 = vpop.f32.mrb[0].mxu0
        %v1449 = vadd.f32 0.0, %v1448
        %1450 = vmatprep.mubr.f32.mxu0 %v1190
        %1451 = vmatmul.mubr.f32.gmra.mrb[0].mxu0 %v1062
        %v1452 = vpop.f32.mrb[0].mxu0
        %v1453 = vadd.f32 0.0, %v1452
        %v1454 = vpop.f32.mrb[0].mxu0
        %v1455 = vadd.f32 0.0, %v1454
        %1456 = vmatprep.mubr.f32.mxu0 %v1191
        %1457 = vmatmul.mubr.f32.gmra.mrb[0].mxu0 %v1063
        %v1458 = vpop.f32.mrb[0].mxu0
        %v1459 = vadd.f32 0.0, %v1458
        %v1460 = vpop.f32.mrb[0].mxu0
        %v1461 = vadd.f32 0.0, %v1460
        %1462 = vmatprep.mubr.f32.mxu0 %v1192
        %1463 = vmatmul.mubr.f32.gmra.mrb[0].mxu0 %v1064
        %v1464 = vpop.f32.mrb[0].mxu0
        %v1465 = vadd.f32 0.0, %v1464
        %v1466 = vpop.f32.mrb[0].mxu0
        %v1467 = vadd.f32 0.0, %v1466
        %1468 = vmatprep.mubr.f32.mxu0 %v1193
        %1469 = vmatmul.mubr.f32.gmra.mrb[0].mxu0 %v1065
        %v1470 = vpop.f32.mrb[0].mxu0
        %v1471 = vadd.f32 0.0, %v1470
        %v1472 = vpop.f32.mrb[0].mxu0
        %v1473 = vadd.f32 0.0, %v1472
        %1474 = vmatprep.mubr.f32.mxu0 %v1194
        %1475 = vmatmul.mubr.f32.gmra.mrb[0].mxu0 %v1066
        %v1476 = vpop.f32.mrb[0].mxu0
        %v1477 = vadd.f32 0.0, %v1476
        %v1478 = vpop.f32.mrb[0].mxu0
        %v1479 = vadd.f32 0.0, %v1478
        %1480 = vmatprep.mubr.f32.mxu0 %v1195
        %1481 = vmatmul.mubr.f32.gmra.mrb[0].mxu0 %v1067
        %v1482 = vpop.f32.mrb[0].mxu0
        %v1483 = vadd.f32 0.0, %v1482
        %v1484 = vpop.f32.mrb[0].mxu0
        %v1485 = vadd.f32 0.0, %v1484
        %1486 = vmatprep.mubr.f32.mxu0 %v1196
        %1487 = vmatmul.mubr.f32.gmra.mrb[0].mxu0 %v1068
        %v1488 = vpop.f32.mrb[0].mxu0
        %v1489 = vadd.f32 0.0, %v1488
        %v1490 = vpop.f32.mrb[0].mxu0
        %v1491 = vadd.f32 0.0, %v1490
        %1492 = vmatprep.mubr.f32.mxu0 %v1197
        %1493 = vmatmul.mubr.f32.gmra.mrb[0].mxu0 %v1069
        %v1494 = vpop.f32.mrb[0].mxu0
        %v1495 = vadd.f32 0.0, %v1494
        %v1496 = vpop.f32.mrb[0].mxu0
        %v1497 = vadd.f32 0.0, %v1496
        %1498 = vmatprep.mubr.f32.mxu0 %v1198
        %1499 = vmatmul.mubr.f32.gmra.mrb[0].mxu0 %v1070
        %v1500 = vpop.f32.mrb[0].mxu0
        %v1501 = vadd.f32 0.0, %v1500
        %v1502 = vpop.f32.mrb[0].mxu0
        %v1503 = vadd.f32 0.0, %v1502
        %1504 = vmatprep.mubr.f32.mxu0 %v1199
        %1505 = vmatmul.mubr.f32.gmra.mrb[0].mxu0 %v1071
        %v1506 = vpop.f32.mrb[0].mxu0
        %v1507 = vadd.f32 0.0, %v1506
        %v1508 = vpop.f32.mrb[0].mxu0
        %v1509 = vadd.f32 0.0, %v1508
        %1510 = vmatprep.mubr.f32.mxu0 %v1200
        %1511 = vmatmul.mubr.f32.gmra.mrb[0].mxu0 %v1072
        %v1512 = vpop.f32.mrb[0].mxu0
        %v1513 = vadd.f32 0.0, %v1512
        %v1514 = vpop.f32.mrb[0].mxu0
        %v1515 = vadd.f32 0.0, %v1514
        %1516 = vmatprep.mubr.f32.mxu0 %v1201
        %1517 = vmatmul.mubr.f32.gmra.mrb[0].mxu0 %v1073
        %v1518 = vpop.f32.mrb[0].mxu0
        %v1519 = vadd.f32 0.0, %v1518
        %v1520 = vpop.f32.mrb[0].mxu0
        %v1521 = vadd.f32 0.0, %v1520
        %1522 = vmatprep.mubr.f32.mxu0 %v1218
        %1523 = vmatmul.mubr.f32.gmra.mrb[0].mxu0 %v1090
        %v1524 = vpop.f32.mrb[0].mxu0
        %v1525 = vadd.f32 0.0, %v1524
        %v1526 = vpop.f32.mrb[0].mxu0
        %v1527 = vadd.f32 0.0, %v1526
        %1528 = vmatprep.mubr.f32.mxu0 %v1219
        %1529 = vmatmul.mubr.f32.gmra.mrb[0].mxu0 %v1091
        %v1530 = vpop.f32.mrb[0].mxu0
        %v1531 = vadd.f32 0.0, %v1530
        %v1532 = vpop.f32.mrb[0].mxu0
        %v1533 = vadd.f32 0.0, %v1532
        %1534 = vmatprep.mubr.f32.mxu0 %v1220
        %1535 = vmatmul.mubr.f32.gmra.mrb[0].mxu0 %v1092
        %v1536 = vpop.f32.mrb[0].mxu0
        %v1537 = vadd.f32 0.0, %v1536
        %v1538 = vpop.f32.mrb[0].mxu0
        %v1539 = vadd.f32 0.0, %v1538
        %1540 = vmatprep.mubr.f32.mxu0 %v1221
        %1541 = vmatmul.mubr.f32.gmra.mrb[0].mxu0 %v1093
        %v1542 = vpop.f32.mrb[0].mxu0
        %v1543 = vadd.f32 0.0, %v1542
        %v1544 = vpop.f32.mrb[0].mxu0
        %v1545 = vadd.f32 0.0, %v1544
        %1546 = vmatprep.mubr.f32.mxu0 %v1222
        %1547 = vmatmul.mubr.f32.gmra.mrb[0].mxu0 %v1094
        %v1548 = vpop.f32.mrb[0].mxu0
        %v1549 = vadd.f32 0.0, %v1548
        %v1550 = vpop.f32.mrb[0].mxu0
        %v1551 = vadd.f32 0.0, %v1550
        %1552 = vmatprep.mubr.f32.mxu0 %v1223
        %1553 = vmatmul.mubr.f32.gmra.mrb[0].mxu0 %v1095
        %v1554 = vpop.f32.mrb[0].mxu0
        %v1555 = vadd.f32 0.0, %v1554
        %v1556 = vpop.f32.mrb[0].mxu0
        %v1557 = vadd.f32 0.0, %v1556
        %1558 = vmatprep.mubr.f32.mxu0 %v1224
        %1559 = vmatmul.mubr.f32.gmra.mrb[0].mxu0 %v1096
        %v1560 = vpop.f32.mrb[0].mxu0
        %v1561 = vadd.f32 0.0, %v1560
        %v1562 = vpop.f32.mrb[0].mxu0
        %v1563 = vadd.f32 0.0, %v1562
        %1564 = vmatprep.mubr.f32.mxu0 %v1225
        %1565 = vmatmul.mubr.f32.gmra.mrb[0].mxu0 %v1097
        %v1566 = vpop.f32.mrb[0].mxu0
        %v1567 = vadd.f32 0.0, %v1566
        %v1568 = vpop.f32.mrb[0].mxu0
        %v1569 = vadd.f32 0.0, %v1568
        %1570 = vmatprep.mubr.f32.mxu0 %v1226
        %1571 = vmatmul.mubr.f32.gmra.mrb[0].mxu0 %v1098
        %v1572 = vpop.f32.mrb[0].mxu0
        %v1573 = vadd.f32 0.0, %v1572
        %v1574 = vpop.f32.mrb[0].mxu0
        %v1575 = vadd.f32 0.0, %v1574
        %1576 = vmatprep.mubr.f32.mxu0 %v1227
        %1577 = vmatmul.mubr.f32.gmra.mrb[0].mxu0 %v1099
        %v1578 = vpop.f32.mrb[0].mxu0
        %v1579 = vadd.f32 0.0, %v1578
        %v1580 = vpop.f32.mrb[0].mxu0
        %v1581 = vadd.f32 0.0, %v1580
        %1582 = vmatprep.mubr.f32.mxu0 %v1228
        %1583 = vmatmul.mubr.f32.gmra.mrb[0].mxu0 %v1100
        %v1584 = vpop.f32.mrb[0].mxu0
        %v1585 = vadd.f32 0.0, %v1584
        %v1586 = vpop.f32.mrb[0].mxu0
        %v1587 = vadd.f32 0.0, %v1586
        %1588 = vmatprep.mubr.f32.mxu0 %v1229
        %1589 = vmatmul.mubr.f32.gmra.mrb[0].mxu0 %v1101
        %v1590 = vpop.f32.mrb[0].mxu0
        %v1591 = vadd.f32 0.0, %v1590
        %v1592 = vpop.f32.mrb[0].mxu0
        %v1593 = vadd.f32 0.0, %v1592
        %1594 = vmatprep.mubr.f32.mxu0 %v1230
        %1595 = vmatmul.mubr.f32.gmra.mrb[0].mxu0 %v1102
        %v1596 = vpop.f32.mrb[0].mxu0
        %v1597 = vadd.f32 0.0, %v1596
        %v1598 = vpop.f32.mrb[0].mxu0
        %v1599 = vadd.f32 0.0, %v1598
        %1600 = vmatprep.mubr.f32.mxu0 %v1231
        %1601 = vmatmul.mubr.f32.gmra.mrb[0].mxu0 %v1103
        %v1602 = vpop.f32.mrb[0].mxu0
        %v1603 = vadd.f32 0.0, %v1602
        %v1604 = vpop.f32.mrb[0].mxu0
        %v1605 = vadd.f32 0.0, %v1604
        %1606 = vmatprep.mubr.f32.mxu0 %v1232
        %1607 = vmatmul.mubr.f32.gmra.mrb[0].mxu0 %v1104
        %v1608 = vpop.f32.mrb[0].mxu0
        %v1609 = vadd.f32 0.0, %v1608
        %v1610 = vpop.f32.mrb[0].mxu0
        %v1611 = vadd.f32 0.0, %v1610
        %1612 = vmatprep.mubr.f32.mxu0 %v1233
        %1613 = vmatmul.mubr.f32.gmra.mrb[0].mxu0 %v1105
        %v1614 = vpop.f32.mrb[0].mxu0
        %v1615 = vadd.f32 0.0, %v1614
        %v1616 = vpop.f32.mrb[0].mxu0
        %v1617 = vadd.f32 0.0, %v1616
        %1618 = vmatprep.mubr.f32.mxu0 %v1250
        %1619 = vmatmul.mubr.f32.gmra.mrb[0].mxu0 %v1122
        %v1620 = vpop.f32.mrb[0].mxu0
        %v1621 = vadd.f32 0.0, %v1620
        %v1622 = vpop.f32.mrb[0].mxu0
        %v1623 = vadd.f32 0.0, %v1622
        %1624 = vmatprep.mubr.f32.mxu0 %v1251
        %1625 = vmatmul.mubr.f32.gmra.mrb[0].mxu0 %v1123
        %v1626 = vpop.f32.mrb[0].mxu0
        %v1627 = vadd.f32 0.0, %v1626
        %v1628 = vpop.f32.mrb[0].mxu0
        %v1629 = vadd.f32 0.0, %v1628
        %1630 = vmatprep.mubr.f32.mxu0 %v1252
        %1631 = vmatmul.mubr.f32.gmra.mrb[0].mxu0 %v1124
        %v1632 = vpop.f32.mrb[0].mxu0
        %v1633 = vadd.f32 0.0, %v1632
        %v1634 = vpop.f32.mrb[0].mxu0
        %v1635 = vadd.f32 0.0, %v1634
        %1636 = vmatprep.mubr.f32.mxu0 %v1253
        %1637 = vmatmul.mubr.f32.gmra.mrb[0].mxu0 %v1125
        %v1638 = vpop.f32.mrb[0].mxu0
        %v1639 = vadd.f32 0.0, %v1638
        %v1640 = vpop.f32.mrb[0].mxu0
        %v1641 = vadd.f32 0.0, %v1640
        %1642 = vmatprep.mubr.f32.mxu0 %v1254
        %1643 = vmatmul.mubr.f32.gmra.mrb[0].mxu0 %v1126
        %v1644 = vpop.f32.mrb[0].mxu0
        %v1645 = vadd.f32 0.0, %v1644
        %v1646 = vpop.f32.mrb[0].mxu0
        %v1647 = vadd.f32 0.0, %v1646
        %1648 = vmatprep.mubr.f32.mxu0 %v1255
        %1649 = vmatmul.mubr.f32.gmra.mrb[0].mxu0 %v1127
        %v1650 = vpop.f32.mrb[0].mxu0
        %v1651 = vadd.f32 0.0, %v1650
        %v1652 = vpop.f32.mrb[0].mxu0
        %v1653 = vadd.f32 0.0, %v1652
        %1654 = vmatprep.mubr.f32.mxu0 %v1256
        %1655 = vmatmul.mubr.f32.gmra.mrb[0].mxu0 %v1128
        %v1656 = vpop.f32.mrb[0].mxu0
        %v1657 = vadd.f32 0.0, %v1656
        %v1658 = vpop.f32.mrb[0].mxu0
        %v1659 = vadd.f32 0.0, %v1658
        %1660 = vmatprep.mubr.f32.mxu0 %v1257
        %1661 = vmatmul.mubr.f32.gmra.mrb[0].mxu0 %v1129
        %v1662 = vpop.f32.mrb[0].mxu0
        %v1663 = vadd.f32 0.0, %v1662
        %v1664 = vpop.f32.mrb[0].mxu0
        %v1665 = vadd.f32 0.0, %v1664
        %1666 = vmatprep.mubr.f32.mxu0 %v1258
        %1667 = vmatmul.mubr.f32.gmra.mrb[0].mxu0 %v1130
        %v1668 = vpop.f32.mrb[0].mxu0
        %v1669 = vadd.f32 0.0, %v1668
        %v1670 = vpop.f32.mrb[0].mxu0
        %v1671 = vadd.f32 0.0, %v1670
        %1672 = vmatprep.mubr.f32.mxu0 %v1259
        %1673 = vmatmul.mubr.f32.gmra.mrb[0].mxu0 %v1131
        %v1674 = vpop.f32.mrb[0].mxu0
        %v1675 = vadd.f32 0.0, %v1674
        %v1676 = vpop.f32.mrb[0].mxu0
        %v1677 = vadd.f32 0.0, %v1676
        %1678 = vmatprep.mubr.f32.mxu0 %v1260
        %1679 = vmatmul.mubr.f32.gmra.mrb[0].mxu0 %v1132
        %v1680 = vpop.f32.mrb[0].mxu0
        %v1681 = vadd.f32 0.0, %v1680
        %v1682 = vpop.f32.mrb[0].mxu0
        %v1683 = vadd.f32 0.0, %v1682
        %1684 = vmatprep.mubr.f32.mxu0 %v1261
        %1685 = vmatmul.mubr.f32.gmra.mrb[0].mxu0 %v1133
        %v1686 = vpop.f32.mrb[0].mxu0
        %v1687 = vadd.f32 0.0, %v1686
        %v1688 = vpop.f32.mrb[0].mxu0
        %v1689 = vadd.f32 0.0, %v1688
        %1690 = vmatprep.mubr.f32.mxu0 %v1262
        %1691 = vmatmul.mubr.f32.gmra.mrb[0].mxu0 %v1134
        %v1692 = vpop.f32.mrb[0].mxu0
        %v1693 = vadd.f32 0.0, %v1692
        %v1694 = vpop.f32.mrb[0].mxu0
        %v1695 = vadd.f32 0.0, %v1694
        %1696 = vmatprep.mubr.f32.mxu0 %v1263
        %1697 = vmatmul.mubr.f32.gmra.mrb[0].mxu0 %v1135
        %v1698 = vpop.f32.mrb[0].mxu0
        %v1699 = vadd.f32 0.0, %v1698
        %v1700 = vpop.f32.mrb[0].mxu0
        %v1701 = vadd.f32 0.0, %v1700
        %1702 = vmatprep.mubr.f32.mxu0 %v1264
        %1703 = vmatmul.mubr.f32.gmra.mrb[0].mxu0 %v1136
        %v1704 = vpop.f32.mrb[0].mxu0
        %v1705 = vadd.f32 0.0, %v1704
        %v1706 = vpop.f32.mrb[0].mxu0
        %v1707 = vadd.f32 0.0, %v1706
        %1708 = vmatprep.mubr.f32.mxu0 %v1265
        %1709 = vmatmul.mubr.f32.gmra.mrb[0].mxu0 %v1137
        %v1710 = vpop.f32.mrb[0].mxu0
        %v1711 = vadd.f32 0.0, %v1710
        %v1712 = vpop.f32.mrb[0].mxu0
        %v1713 = vadd.f32 0.0, %v1712
        %1714 = vdwg.mxu0
        %1715 = vmatprep.subr.mxu0 %v885
        %1716 = vmatpush1.msra.mxu0 %v884
        %1717 = vmatprep.subr.mxu0 %v889
        %1718 = vmatpush1.msra.mxu0 %v888
        %1719 = vmatprep.subr.mxu0 %v893
        %1720 = vmatpush1.msra.mxu0 %v892
        %1721 = vmatprep.subr.mxu0 %v897
        %1722 = vmatpush1.msra.mxu0 %v896
        %1723 = vmatprep.subr.mxu0 %v901
        %1724 = vmatpush1.msra.mxu0 %v900
        %1725 = vmatprep.subr.mxu0 %v905
        %1726 = vmatpush1.msra.mxu0 %v904
        %1727 = vmatprep.subr.mxu0 %v909
        %1728 = vmatpush1.msra.mxu0 %v908
        %1729 = vmatprep.subr.mxu0 %v913
        %1730 = vmatpush1.msra.mxu0 %v912
        %1731 = vmatprep.subr.mxu0 %v917
        %1732 = vmatpush1.msra.mxu0 %v916
        %1733 = vmatprep.subr.mxu0 %v921
        %1734 = vmatpush1.msra.mxu0 %v920
        %1735 = vmatprep.subr.mxu0 %v925
        %1736 = vmatpush1.msra.mxu0 %v924
        %1737 = vmatprep.subr.mxu0 %v929
        %1738 = vmatpush1.msra.mxu0 %v928
        %1739 = vmatprep.subr.mxu0 %v933
        %1740 = vmatpush1.msra.mxu0 %v932
        %1741 = vmatprep.subr.mxu0 %v937
        %1742 = vmatpush1.msra.mxu0 %v936
        %1743 = vmatprep.subr.mxu0 %v941
        %1744 = vmatpush1.msra.mxu0 %v940
        %1745 = vmatprep.subr.mxu0 %v945
        %1746 = vmatpush1.msra.mxu0 %v944
        %1747 = vmatprep.subr.mxu0 %v949
        %1748 = vmatpush1.msra.mxu0 %v948
        %1749 = vmatprep.subr.mxu0 %v953
        %1750 = vmatpush1.msra.mxu0 %v952
        %1751 = vmatprep.subr.mxu0 %v957
        %1752 = vmatpush1.msra.mxu0 %v956
        %1753 = vmatprep.subr.mxu0 %v961
        %1754 = vmatpush1.msra.mxu0 %v960
        %1755 = vmatprep.subr.mxu0 %v965
        %1756 = vmatpush1.msra.mxu0 %v964
        %1757 = vmatprep.subr.mxu0 %v969
        %1758 = vmatpush1.msra.mxu0 %v968
        %1759 = vmatprep.subr.mxu0 %v973
        %1760 = vmatpush1.msra.mxu0 %v972
        %1761 = vmatprep.subr.mxu0 %v977
        %1762 = vmatpush1.msra.mxu0 %v976
        %1763 = vmatprep.subr.mxu0 %v981
        %1764 = vmatpush1.msra.mxu0 %v980
        %1765 = vmatprep.subr.mxu0 %v985
        %1766 = vmatpush1.msra.mxu0 %v984
        %1767 = vmatprep.subr.mxu0 %v989
        %1768 = vmatpush1.msra.mxu0 %v988
        %1769 = vmatprep.subr.mxu0 %v993
        %1770 = vmatpush1.msra.mxu0 %v992
        %1771 = vmatprep.subr.mxu0 %v997
        %1772 = vmatpush1.msra.mxu0 %v996
        %1773 = vmatprep.subr.mxu0 %v1001
        %1774 = vmatpush1.msra.mxu0 %v1000
        %1775 = vmatprep.subr.mxu0 %v1005
        %1776 = vmatpush1.msra.mxu0 %v1004
        %1777 = vmatprep.subr.mxu0 %v1009
        %1778 = vmatpush1.msra.mxu0 %v1008
        %1779 = vmatprep.mubr.f32.mxu0 %v1154
        %1780 = vmatmul.mubr.f32.gmra.mrb[0].mxu0 %v1026
        %v1781 = vpop.f32.mrb[0].mxu0
        %v1782 = vadd.f32 0.0, %v1781
        %v1783 = vpop.f32.mrb[0].mxu0
        %v1784 = vadd.f32 0.0, %v1783
        %1785 = vmatprep.mubr.f32.mxu0 %v1155
        %1786 = vmatmul.mubr.f32.gmra.mrb[0].mxu0 %v1027
        %v1787 = vpop.f32.mrb[0].mxu0
        %v1788 = vadd.f32 0.0, %v1787
        %v1789 = vpop.f32.mrb[0].mxu0
        %v1790 = vadd.f32 0.0, %v1789
        %1791 = vmatprep.mubr.f32.mxu0 %v1156
        %1792 = vmatmul.mubr.f32.gmra.mrb[0].mxu0 %v1028
        %v1793 = vpop.f32.mrb[0].mxu0
        %v1794 = vadd.f32 0.0, %v1793
        %v1795 = vpop.f32.mrb[0].mxu0
        %v1796 = vadd.f32 0.0, %v1795
        %1797 = vmatprep.mubr.f32.mxu0 %v1157
        %1798 = vmatmul.mubr.f32.gmra.mrb[0].mxu0 %v1029
        %v1799 = vpop.f32.mrb[0].mxu0
        %v1800 = vadd.f32 0.0, %v1799
        %v1801 = vpop.f32.mrb[0].mxu0
        %v1802 = vadd.f32 0.0, %v1801
        %1803 = vmatprep.mubr.f32.mxu0 %v1158
        %1804 = vmatmul.mubr.f32.gmra.mrb[0].mxu0 %v1030
        %v1805 = vpop.f32.mrb[0].mxu0
        %v1806 = vadd.f32 0.0, %v1805
        %v1807 = vpop.f32.mrb[0].mxu0
        %v1808 = vadd.f32 0.0, %v1807
        %1809 = vmatprep.mubr.f32.mxu0 %v1159
        %1810 = vmatmul.mubr.f32.gmra.mrb[0].mxu0 %v1031
        %v1811 = vpop.f32.mrb[0].mxu0
        %v1812 = vadd.f32 0.0, %v1811
        %v1813 = vpop.f32.mrb[0].mxu0
        %v1814 = vadd.f32 0.0, %v1813
        %1815 = vmatprep.mubr.f32.mxu0 %v1160
        %1816 = vmatmul.mubr.f32.gmra.mrb[0].mxu0 %v1032
        %v1817 = vpop.f32.mrb[0].mxu0
        %v1818 = vadd.f32 0.0, %v1817
        %v1819 = vpop.f32.mrb[0].mxu0
        %v1820 = vadd.f32 0.0, %v1819
        %1821 = vmatprep.mubr.f32.mxu0 %v1161
        %1822 = vmatmul.mubr.f32.gmra.mrb[0].mxu0 %v1033
        %v1823 = vpop.f32.mrb[0].mxu0
        %v1824 = vadd.f32 0.0, %v1823
        %v1825 = vpop.f32.mrb[0].mxu0
        %v1826 = vadd.f32 0.0, %v1825
        %1827 = vmatprep.mubr.f32.mxu0 %v1162
        %1828 = vmatmul.mubr.f32.gmra.mrb[0].mxu0 %v1034
        %v1829 = vpop.f32.mrb[0].mxu0
        %v1830 = vadd.f32 0.0, %v1829
        %v1831 = vpop.f32.mrb[0].mxu0
        %v1832 = vadd.f32 0.0, %v1831
        %1833 = vmatprep.mubr.f32.mxu0 %v1163
        %1834 = vmatmul.mubr.f32.gmra.mrb[0].mxu0 %v1035
        %v1835 = vpop.f32.mrb[0].mxu0
        %v1836 = vadd.f32 0.0, %v1835
        %v1837 = vpop.f32.mrb[0].mxu0
        %v1838 = vadd.f32 0.0, %v1837
        %1839 = vmatprep.mubr.f32.mxu0 %v1164
        %1840 = vmatmul.mubr.f32.gmra.mrb[0].mxu0 %v1036
        %v1841 = vpop.f32.mrb[0].mxu0
        %v1842 = vadd.f32 0.0, %v1841
        %v1843 = vpop.f32.mrb[0].mxu0
        %v1844 = vadd.f32 0.0, %v1843
        %1845 = vmatprep.mubr.f32.mxu0 %v1165
        %1846 = vmatmul.mubr.f32.gmra.mrb[0].mxu0 %v1037
        %v1847 = vpop.f32.mrb[0].mxu0
        %v1848 = vadd.f32 0.0, %v1847
        %v1849 = vpop.f32.mrb[0].mxu0
        %v1850 = vadd.f32 0.0, %v1849
        %1851 = vmatprep.mubr.f32.mxu0 %v1166
        %1852 = vmatmul.mubr.f32.gmra.mrb[0].mxu0 %v1038
        %v1853 = vpop.f32.mrb[0].mxu0
        %v1854 = vadd.f32 0.0, %v1853
        %v1855 = vpop.f32.mrb[0].mxu0
        %v1856 = vadd.f32 0.0, %v1855
        %1857 = vmatprep.mubr.f32.mxu0 %v1167
        %1858 = vmatmul.mubr.f32.gmra.mrb[0].mxu0 %v1039
        %v1859 = vpop.f32.mrb[0].mxu0
        %v1860 = vadd.f32 0.0, %v1859
        %v1861 = vpop.f32.mrb[0].mxu0
        %v1862 = vadd.f32 0.0, %v1861
        %1863 = vmatprep.mubr.f32.mxu0 %v1168
        %1864 = vmatmul.mubr.f32.gmra.mrb[0].mxu0 %v1040
        %v1865 = vpop.f32.mrb[0].mxu0
        %v1866 = vadd.f32 0.0, %v1865
        %v1867 = vpop.f32.mrb[0].mxu0
        %v1868 = vadd.f32 0.0, %v1867
        %1869 = vmatprep.mubr.f32.mxu0 %v1169
        %1870 = vmatmul.mubr.f32.gmra.mrb[0].mxu0 %v1041
        %v1871 = vpop.f32.mrb[0].mxu0
        %v1872 = vadd.f32 0.0, %v1871
        %v1873 = vpop.f32.mrb[0].mxu0
        %v1874 = vadd.f32 0.0, %v1873
        %1875 = vmatprep.mubr.f32.mxu0 %v1186
        %1876 = vmatmul.mubr.f32.gmra.mrb[0].mxu0 %v1058
        %v1877 = vpop.f32.mrb[0].mxu0
        %v1878 = vadd.f32 0.0, %v1877
        %v1879 = vpop.f32.mrb[0].mxu0
        %v1880 = vadd.f32 0.0, %v1879
        %1881 = vmatprep.mubr.f32.mxu0 %v1187
        %1882 = vmatmul.mubr.f32.gmra.mrb[0].mxu0 %v1059
        %v1883 = vpop.f32.mrb[0].mxu0
        %v1884 = vadd.f32 0.0, %v1883
        %v1885 = vpop.f32.mrb[0].mxu0
        %v1886 = vadd.f32 0.0, %v1885
        %1887 = vmatprep.mubr.f32.mxu0 %v1188
        %1888 = vmatmul.mubr.f32.gmra.mrb[0].mxu0 %v1060
        %v1889 = vpop.f32.mrb[0].mxu0
        %v1890 = vadd.f32 0.0, %v1889
        %v1891 = vpop.f32.mrb[0].mxu0
        %v1892 = vadd.f32 0.0, %v1891
        %1893 = vmatprep.mubr.f32.mxu0 %v1189
        %1894 = vmatmul.mubr.f32.gmra.mrb[0].mxu0 %v1061
        %v1895 = vpop.f32.mrb[0].mxu0
        %v1896 = vadd.f32 0.0, %v1895
        %v1897 = vpop.f32.mrb[0].mxu0
        %v1898 = vadd.f32 0.0, %v1897
        %1899 = vmatprep.mubr.f32.mxu0 %v1190
        %1900 = vmatmul.mubr.f32.gmra.mrb[0].mxu0 %v1062
        %v1901 = vpop.f32.mrb[0].mxu0
        %v1902 = vadd.f32 0.0, %v1901
        %v1903 = vpop.f32.mrb[0].mxu0
        %v1904 = vadd.f32 0.0, %v1903
        %1905 = vmatprep.mubr.f32.mxu0 %v1191
        %1906 = vmatmul.mubr.f32.gmra.mrb[0].mxu0 %v1063
        %v1907 = vpop.f32.mrb[0].mxu0
        %v1908 = vadd.f32 0.0, %v1907
        %v1909 = vpop.f32.mrb[0].mxu0
        %v1910 = vadd.f32 0.0, %v1909
        %1911 = vmatprep.mubr.f32.mxu0 %v1192
        %1912 = vmatmul.mubr.f32.gmra.mrb[0].mxu0 %v1064
        %v1913 = vpop.f32.mrb[0].mxu0
        %v1914 = vadd.f32 0.0, %v1913
        %v1915 = vpop.f32.mrb[0].mxu0
        %v1916 = vadd.f32 0.0, %v1915
        %1917 = vmatprep.mubr.f32.mxu0 %v1193
        %1918 = vmatmul.mubr.f32.gmra.mrb[0].mxu0 %v1065
        %v1919 = vpop.f32.mrb[0].mxu0
        %v1920 = vadd.f32 0.0, %v1919
        %v1921 = vpop.f32.mrb[0].mxu0
        %v1922 = vadd.f32 0.0, %v1921
        %1923 = vmatprep.mubr.f32.mxu0 %v1194
        %1924 = vmatmul.mubr.f32.gmra.mrb[0].mxu0 %v1066
        %v1925 = vpop.f32.mrb[0].mxu0
        %v1926 = vadd.f32 0.0, %v1925
        %v1927 = vpop.f32.mrb[0].mxu0
        %v1928 = vadd.f32 0.0, %v1927
        %1929 = vmatprep.mubr.f32.mxu0 %v1195
        %1930 = vmatmul.mubr.f32.gmra.mrb[0].mxu0 %v1067
        %v1931 = vpop.f32.mrb[0].mxu0
        %v1932 = vadd.f32 0.0, %v1931
        %v1933 = vpop.f32.mrb[0].mxu0
        %v1934 = vadd.f32 0.0, %v1933
        %1935 = vmatprep.mubr.f32.mxu0 %v1196
        %1936 = vmatmul.mubr.f32.gmra.mrb[0].mxu0 %v1068
        %v1937 = vpop.f32.mrb[0].mxu0
        %v1938 = vadd.f32 0.0, %v1937
        %v1939 = vpop.f32.mrb[0].mxu0
        %v1940 = vadd.f32 0.0, %v1939
        %1941 = vmatprep.mubr.f32.mxu0 %v1197
        %1942 = vmatmul.mubr.f32.gmra.mrb[0].mxu0 %v1069
        %v1943 = vpop.f32.mrb[0].mxu0
        %v1944 = vadd.f32 0.0, %v1943
        %v1945 = vpop.f32.mrb[0].mxu0
        %v1946 = vadd.f32 0.0, %v1945
        %1947 = vmatprep.mubr.f32.mxu0 %v1198
        %1948 = vmatmul.mubr.f32.gmra.mrb[0].mxu0 %v1070
        %v1949 = vpop.f32.mrb[0].mxu0
        %v1950 = vadd.f32 0.0, %v1949
        %v1951 = vpop.f32.mrb[0].mxu0
        %v1952 = vadd.f32 0.0, %v1951
        %1953 = vmatprep.mubr.f32.mxu0 %v1199
        %1954 = vmatmul.mubr.f32.gmra.mrb[0].mxu0 %v1071
        %v1955 = vpop.f32.mrb[0].mxu0
        %v1956 = vadd.f32 0.0, %v1955
        %v1957 = vpop.f32.mrb[0].mxu0
        %v1958 = vadd.f32 0.0, %v1957
        %1959 = vmatprep.mubr.f32.mxu0 %v1200
        %1960 = vmatmul.mubr.f32.gmra.mrb[0].mxu0 %v1072
        %v1961 = vpop.f32.mrb[0].mxu0
        %v1962 = vadd.f32 0.0, %v1961
        %v1963 = vpop.f32.mrb[0].mxu0
        %v1964 = vadd.f32 0.0, %v1963
        %1965 = vmatprep.mubr.f32.mxu0 %v1201
        %1966 = vmatmul.mubr.f32.gmra.mrb[0].mxu0 %v1073
        %v1967 = vpop.f32.mrb[0].mxu0
        %v1968 = vadd.f32 0.0, %v1967
        %v1969 = vpop.f32.mrb[0].mxu0
        %v1970 = vadd.f32 0.0, %v1969
        %1971 = vmatprep.mubr.f32.mxu0 %v1218
        %1972 = vmatmul.mubr.f32.gmra.mrb[0].mxu0 %v1090
        %v1973 = vpop.f32.mrb[0].mxu0
        %v1974 = vadd.f32 0.0, %v1973
        %v1975 = vpop.f32.mrb[0].mxu0
        %v1976 = vadd.f32 0.0, %v1975
        %1977 = vmatprep.mubr.f32.mxu0 %v1219
        %1978 = vmatmul.mubr.f32.gmra.mrb[0].mxu0 %v1091
        %v1979 = vpop.f32.mrb[0].mxu0
        %v1980 = vadd.f32 0.0, %v1979
        %v1981 = vpop.f32.mrb[0].mxu0
        %v1982 = vadd.f32 0.0, %v1981
        %1983 = vmatprep.mubr.f32.mxu0 %v1220
        %1984 = vmatmul.mubr.f32.gmra.mrb[0].mxu0 %v1092
        %v1985 = vpop.f32.mrb[0].mxu0
        %v1986 = vadd.f32 0.0, %v1985
        %v1987 = vpop.f32.mrb[0].mxu0
        %v1988 = vadd.f32 0.0, %v1987
        %1989 = vmatprep.mubr.f32.mxu0 %v1221
        %1990 = vmatmul.mubr.f32.gmra.mrb[0].mxu0 %v1093
        %v1991 = vpop.f32.mrb[0].mxu0
        %v1992 = vadd.f32 0.0, %v1991
        %v1993 = vpop.f32.mrb[0].mxu0
        %v1994 = vadd.f32 0.0, %v1993
        %1995 = vmatprep.mubr.f32.mxu0 %v1222
        %1996 = vmatmul.mubr.f32.gmra.mrb[0].mxu0 %v1094
        %v1997 = vpop.f32.mrb[0].mxu0
        %v1998 = vadd.f32 0.0, %v1997
        %v1999 = vpop.f32.mrb[0].mxu0
        %v2000 = vadd.f32 0.0, %v1999
        %2001 = vmatprep.mubr.f32.mxu0 %v1223
        %2002 = vmatmul.mubr.f32.gmra.mrb[0].mxu0 %v1095
        %v2003 = vpop.f32.mrb[0].mxu0
        %v2004 = vadd.f32 0.0, %v2003
        %v2005 = vpop.f32.mrb[0].mxu0
        %v2006 = vadd.f32 0.0, %v2005
        %2007 = vmatprep.mubr.f32.mxu0 %v1224
        %2008 = vmatmul.mubr.f32.gmra.mrb[0].mxu0 %v1096
        %v2009 = vpop.f32.mrb[0].mxu0
        %v2010 = vadd.f32 0.0, %v2009
        %v2011 = vpop.f32.mrb[0].mxu0
        %v2012 = vadd.f32 0.0, %v2011
        %2013 = vmatprep.mubr.f32.mxu0 %v1225
        %2014 = vmatmul.mubr.f32.gmra.mrb[0].mxu0 %v1097
        %v2015 = vpop.f32.mrb[0].mxu0
        %v2016 = vadd.f32 0.0, %v2015
        %v2017 = vpop.f32.mrb[0].mxu0
        %v2018 = vadd.f32 0.0, %v2017
        %2019 = vmatprep.mubr.f32.mxu0 %v1226
        %2020 = vmatmul.mubr.f32.gmra.mrb[0].mxu0 %v1098
        %v2021 = vpop.f32.mrb[0].mxu0
        %v2022 = vadd.f32 0.0, %v2021
        %v2023 = vpop.f32.mrb[0].mxu0
        %v2024 = vadd.f32 0.0, %v2023
        %2025 = vmatprep.mubr.f32.mxu0 %v1227
        %2026 = vmatmul.mubr.f32.gmra.mrb[0].mxu0 %v1099
        %v2027 = vpop.f32.mrb[0].mxu0
        %v2028 = vadd.f32 0.0, %v2027
        %v2029 = vpop.f32.mrb[0].mxu0
        %v2030 = vadd.f32 0.0, %v2029
        %2031 = vmatprep.mubr.f32.mxu0 %v1228
        %2032 = vmatmul.mubr.f32.gmra.mrb[0].mxu0 %v1100
        %v2033 = vpop.f32.mrb[0].mxu0
        %v2034 = vadd.f32 0.0, %v2033
        %v2035 = vpop.f32.mrb[0].mxu0
        %v2036 = vadd.f32 0.0, %v2035
        %2037 = vmatprep.mubr.f32.mxu0 %v1229
        %2038 = vmatmul.mubr.f32.gmra.mrb[0].mxu0 %v1101
        %v2039 = vpop.f32.mrb[0].mxu0
        %v2040 = vadd.f32 0.0, %v2039
        %v2041 = vpop.f32.mrb[0].mxu0
        %v2042 = vadd.f32 0.0, %v2041
        %2043 = vmatprep.mubr.f32.mxu0 %v1230
        %2044 = vmatmul.mubr.f32.gmra.mrb[0].mxu0 %v1102
        %v2045 = vpop.f32.mrb[0].mxu0
        %v2046 = vadd.f32 0.0, %v2045
        %v2047 = vpop.f32.mrb[0].mxu0
        %v2048 = vadd.f32 0.0, %v2047
        %2049 = vmatprep.mubr.f32.mxu0 %v1231
        %2050 = vmatmul.mubr.f32.gmra.mrb[0].mxu0 %v1103
        %v2051 = vpop.f32.mrb[0].mxu0
        %v2052 = vadd.f32 0.0, %v2051
        %v2053 = vpop.f32.mrb[0].mxu0
        %v2054 = vadd.f32 0.0, %v2053
        %2055 = vmatprep.mubr.f32.mxu0 %v1232
        %2056 = vmatmul.mubr.f32.gmra.mrb[0].mxu0 %v1104
        %v2057 = vpop.f32.mrb[0].mxu0
        %v2058 = vadd.f32 0.0, %v2057
        %v2059 = vpop.f32.mrb[0].mxu0
        %v2060 = vadd.f32 0.0, %v2059
        %2061 = vmatprep.mubr.f32.mxu0 %v1233
        %2062 = vmatmul.mubr.f32.gmra.mrb[0].mxu0 %v1105
        %v2063 = vpop.f32.mrb[0].mxu0
        %v2064 = vadd.f32 0.0, %v2063
        %v2065 = vpop.f32.mrb[0].mxu0
        %v2066 = vadd.f32 0.0, %v2065
        %2067 = vmatprep.mubr.f32.mxu0 %v1250
        %2068 = vmatmul.mubr.f32.gmra.mrb[0].mxu0 %v1122
        %v2069 = vpop.f32.mrb[0].mxu0
        %v2070 = vadd.f32 0.0, %v2069
        %v2071 = vpop.f32.mrb[0].mxu0
        %v2072 = vadd.f32 0.0, %v2071
        %2073 = vmatprep.mubr.f32.mxu0 %v1251
        %2074 = vmatmul.mubr.f32.gmra.mrb[0].mxu0 %v1123
        %v2075 = vpop.f32.mrb[0].mxu0
        %v2076 = vadd.f32 0.0, %v2075
        %v2077 = vpop.f32.mrb[0].mxu0
        %v2078 = vadd.f32 0.0, %v2077
        %2079 = vmatprep.mubr.f32.mxu0 %v1252
        %2080 = vmatmul.mubr.f32.gmra.mrb[0].mxu0 %v1124
        %v2081 = vpop.f32.mrb[0].mxu0
        %v2082 = vadd.f32 0.0, %v2081
        %v2083 = vpop.f32.mrb[0].mxu0
        %v2084 = vadd.f32 0.0, %v2083
        %2085 = vmatprep.mubr.f32.mxu0 %v1253
        %2086 = vmatmul.mubr.f32.gmra.mrb[0].mxu0 %v1125
        %v2087 = vpop.f32.mrb[0].mxu0
        %v2088 = vadd.f32 0.0, %v2087
        %v2089 = vpop.f32.mrb[0].mxu0
        %v2090 = vadd.f32 0.0, %v2089
        %2091 = vmatprep.mubr.f32.mxu0 %v1254
        %2092 = vmatmul.mubr.f32.gmra.mrb[0].mxu0 %v1126
        %v2093 = vpop.f32.mrb[0].mxu0
        %v2094 = vadd.f32 0.0, %v2093
        %v2095 = vpop.f32.mrb[0].mxu0
        %v2096 = vadd.f32 0.0, %v2095
        %2097 = vmatprep.mubr.f32.mxu0 %v1255
        %2098 = vmatmul.mubr.f32.gmra.mrb[0].mxu0 %v1127
        %v2099 = vpop.f32.mrb[0].mxu0
        %v2100 = vadd.f32 0.0, %v2099
        %v2101 = vpop.f32.mrb[0].mxu0
        %v2102 = vadd.f32 0.0, %v2101
        %2103 = vmatprep.mubr.f32.mxu0 %v1256
        %2104 = vmatmul.mubr.f32.gmra.mrb[0].mxu0 %v1128
        %v2105 = vpop.f32.mrb[0].mxu0
        %v2106 = vadd.f32 0.0, %v2105
        %v2107 = vpop.f32.mrb[0].mxu0
        %v2108 = vadd.f32 0.0, %v2107
        %2109 = vmatprep.mubr.f32.mxu0 %v1257
        %2110 = vmatmul.mubr.f32.gmra.mrb[0].mxu0 %v1129
        %v2111 = vpop.f32.mrb[0].mxu0
        %v2112 = vadd.f32 0.0, %v2111
        %v2113 = vpop.f32.mrb[0].mxu0
        %v2114 = vadd.f32 0.0, %v2113
        %2115 = vmatprep.mubr.f32.mxu0 %v1258
        %2116 = vmatmul.mubr.f32.gmra.mrb[0].mxu0 %v1130
        %v2117 = vpop.f32.mrb[0].mxu0
        %v2118 = vadd.f32 0.0, %v2117
        %v2119 = vpop.f32.mrb[0].mxu0
        %v2120 = vadd.f32 0.0, %v2119
        %2121 = vmatprep.mubr.f32.mxu0 %v1259
        %2122 = vmatmul.mubr.f32.gmra.mrb[0].mxu0 %v1131
        %v2123 = vpop.f32.mrb[0].mxu0
        %v2124 = vadd.f32 0.0, %v2123
        %v2125 = vpop.f32.mrb[0].mxu0
        %v2126 = vadd.f32 0.0, %v2125
        %2127 = vmatprep.mubr.f32.mxu0 %v1260
        %2128 = vmatmul.mubr.f32.gmra.mrb[0].mxu0 %v1132
        %v2129 = vpop.f32.mrb[0].mxu0
        %v2130 = vadd.f32 0.0, %v2129
        %v2131 = vpop.f32.mrb[0].mxu0
        %v2132 = vadd.f32 0.0, %v2131
        %2133 = vmatprep.mubr.f32.mxu0 %v1261
        %2134 = vmatmul.mubr.f32.gmra.mrb[0].mxu0 %v1133
        %v2135 = vpop.f32.mrb[0].mxu0
        %v2136 = vadd.f32 0.0, %v2135
        %v2137 = vpop.f32.mrb[0].mxu0
        %v2138 = vadd.f32 0.0, %v2137
        %2139 = vmatprep.mubr.f32.mxu0 %v1262
        %2140 = vmatmul.mubr.f32.gmra.mrb[0].mxu0 %v1134
        %v2141 = vpop.f32.mrb[0].mxu0
        %v2142 = vadd.f32 0.0, %v2141
        %v2143 = vpop.f32.mrb[0].mxu0
        %v2144 = vadd.f32 0.0, %v2143
        %2145 = vmatprep.mubr.f32.mxu0 %v1263
        %2146 = vmatmul.mubr.f32.gmra.mrb[0].mxu0 %v1135
        %v2147 = vpop.f32.mrb[0].mxu0
        %v2148 = vadd.f32 0.0, %v2147
        %v2149 = vpop.f32.mrb[0].mxu0
        %v2150 = vadd.f32 0.0, %v2149
        %2151 = vmatprep.mubr.f32.mxu0 %v1264
        %2152 = vmatmul.mubr.f32.gmra.mrb[0].mxu0 %v1136
        %v2153 = vpop.f32.mrb[0].mxu0
        %v2154 = vadd.f32 0.0, %v2153
        %v2155 = vpop.f32.mrb[0].mxu0
        %v2156 = vadd.f32 0.0, %v2155
        %2157 = vmatprep.mubr.f32.mxu0 %v1265
        %2158 = vmatmul.mubr.f32.gmra.mrb[0].mxu0 %v1137
        %v2159 = vpop.f32.mrb[0].mxu0
        %v2160 = vadd.f32 0.0, %v2159
        %v2161 = vpop.f32.mrb[0].mxu0
        %v2162 = vadd.f32 0.0, %v2161
        %2163 = vdwg.mxu0
        %v2164 = vadd.f32 %v498, %v1333
        %v2165 = vadd.f32 %v499, %v1335
        %v2166 = vadd.f32 %v500, %v1782
        %v2167 = vadd.f32 %v501, %v1784
        %v2168 = vadd.f32 %v502, %v1339
        %v2169 = vadd.f32 %v503, %v1341
        %v2170 = vadd.f32 %v504, %v1788
        %v2171 = vadd.f32 %v505, %v1790
        %v2172 = vadd.f32 %v506, %v1345
        %v2173 = vadd.f32 %v507, %v1347
        %v2174 = vadd.f32 %v508, %v1794
        %v2175 = vadd.f32 %v509, %v1796
        %v2176 = vadd.f32 %v510, %v1351
        %v2177 = vadd.f32 %v511, %v1353
        %v2178 = vadd.f32 %v512, %v1800
        %v2179 = vadd.f32 %v513, %v1802
        %v2180 = vadd.f32 %v514, %v1357
        %v2181 = vadd.f32 %v515, %v1359
        %v2182 = vadd.f32 %v516, %v1806
        %v2183 = vadd.f32 %v517, %v1808
        %v2184 = vadd.f32 %v518, %v1363
        %v2185 = vadd.f32 %v519, %v1365
        %v2186 = vadd.f32 %v520, %v1812
        %v2187 = vadd.f32 %v521, %v1814
        %v2188 = vadd.f32 %v522, %v1369
        %v2189 = vadd.f32 %v523, %v1371
        %v2190 = vadd.f32 %v524, %v1818
        %v2191 = vadd.f32 %v525, %v1820
        %v2192 = vadd.f32 %v526, %v1375
        %v2193 = vadd.f32 %v527, %v1377
        %v2194 = vadd.f32 %v528, %v1824
        %v2195 = vadd.f32 %v529, %v1826
        %v2196 = vadd.f32 %v530, %v1381
        %v2197 = vadd.f32 %v531, %v1383
        %v2198 = vadd.f32 %v532, %v1830
        %v2199 = vadd.f32 %v533, %v1832
        %v2200 = vadd.f32 %v534, %v1387
        %v2201 = vadd.f32 %v535, %v1389
        %v2202 = vadd.f32 %v536, %v1836
        %v2203 = vadd.f32 %v537, %v1838
        %v2204 = vadd.f32 %v538, %v1393
        %v2205 = vadd.f32 %v539, %v1395
        %v2206 = vadd.f32 %v540, %v1842
        %v2207 = vadd.f32 %v541, %v1844
        %v2208 = vadd.f32 %v542, %v1399
        %v2209 = vadd.f32 %v543, %v1401
        %v2210 = vadd.f32 %v544, %v1848
        %v2211 = vadd.f32 %v545, %v1850
        %v2212 = vadd.f32 %v546, %v1405
        %v2213 = vadd.f32 %v547, %v1407
        %v2214 = vadd.f32 %v548, %v1854
        %v2215 = vadd.f32 %v549, %v1856
        %v2216 = vadd.f32 %v550, %v1411
        %v2217 = vadd.f32 %v551, %v1413
        %v2218 = vadd.f32 %v552, %v1860
        %v2219 = vadd.f32 %v553, %v1862
        %v2220 = vadd.f32 %v554, %v1417
        %v2221 = vadd.f32 %v555, %v1419
        %v2222 = vadd.f32 %v556, %v1866
        %v2223 = vadd.f32 %v557, %v1868
        %v2224 = vadd.f32 %v558, %v1423
        %v2225 = vadd.f32 %v559, %v1425
        %v2226 = vadd.f32 %v560, %v1872
        %v2227 = vadd.f32 %v561, %v1874
        %v2228 = vadd.f32 %v562, %v1429
        %v2229 = vadd.f32 %v563, %v1431
        %v2230 = vadd.f32 %v564, %v1878
        %v2231 = vadd.f32 %v565, %v1880
        %v2232 = vadd.f32 %v566, %v1435
        %v2233 = vadd.f32 %v567, %v1437
        %v2234 = vadd.f32 %v568, %v1884
        %v2235 = vadd.f32 %v569, %v1886
        %v2236 = vadd.f32 %v570, %v1441
        %v2237 = vadd.f32 %v571, %v1443
        %v2238 = vadd.f32 %v572, %v1890
        %v2239 = vadd.f32 %v573, %v1892
        %v2240 = vadd.f32 %v574, %v1447
        %v2241 = vadd.f32 %v575, %v1449
        %v2242 = vadd.f32 %v576, %v1896
        %v2243 = vadd.f32 %v577, %v1898
        %v2244 = vadd.f32 %v578, %v1453
        %v2245 = vadd.f32 %v579, %v1455
        %v2246 = vadd.f32 %v580, %v1902
        %v2247 = vadd.f32 %v581, %v1904
        %v2248 = vadd.f32 %v582, %v1459
        %v2249 = vadd.f32 %v583, %v1461
        %v2250 = vadd.f32 %v584, %v1908
        %v2251 = vadd.f32 %v585, %v1910
        %v2252 = vadd.f32 %v586, %v1465
        %v2253 = vadd.f32 %v587, %v1467
        %v2254 = vadd.f32 %v588, %v1914
        %v2255 = vadd.f32 %v589, %v1916
        %v2256 = vadd.f32 %v590, %v1471
        %v2257 = vadd.f32 %v591, %v1473
        %v2258 = vadd.f32 %v592, %v1920
        %v2259 = vadd.f32 %v593, %v1922
        %v2260 = vadd.f32 %v594, %v1477
        %v2261 = vadd.f32 %v595, %v1479
        %v2262 = vadd.f32 %v596, %v1926
        %v2263 = vadd.f32 %v597, %v1928
        %v2264 = vadd.f32 %v598, %v1483
        %v2265 = vadd.f32 %v599, %v1485
        %v2266 = vadd.f32 %v600, %v1932
        %v2267 = vadd.f32 %v601, %v1934
        %v2268 = vadd.f32 %v602, %v1489
        %v2269 = vadd.f32 %v603, %v1491
        %v2270 = vadd.f32 %v604, %v1938
        %v2271 = vadd.f32 %v605, %v1940
        %v2272 = vadd.f32 %v606, %v1495
        %v2273 = vadd.f32 %v607, %v1497
        %v2274 = vadd.f32 %v608, %v1944
        %v2275 = vadd.f32 %v609, %v1946
        %v2276 = vadd.f32 %v610, %v1501
        %v2277 = vadd.f32 %v611, %v1503
        %v2278 = vadd.f32 %v612, %v1950
        %v2279 = vadd.f32 %v613, %v1952
        %v2280 = vadd.f32 %v614, %v1507
        %v2281 = vadd.f32 %v615, %v1509
        %v2282 = vadd.f32 %v616, %v1956
        %v2283 = vadd.f32 %v617, %v1958
        %v2284 = vadd.f32 %v618, %v1513
        %v2285 = vadd.f32 %v619, %v1515
        %v2286 = vadd.f32 %v620, %v1962
        %v2287 = vadd.f32 %v621, %v1964
        %v2288 = vadd.f32 %v622, %v1519
        %v2289 = vadd.f32 %v623, %v1521
        %v2290 = vadd.f32 %v624, %v1968
        %v2291 = vadd.f32 %v625, %v1970
        %v2292 = vadd.f32 %v626, %v1525
        %v2293 = vadd.f32 %v627, %v1527
        %v2294 = vadd.f32 %v628, %v1974
        %v2295 = vadd.f32 %v629, %v1976
        %v2296 = vadd.f32 %v630, %v1531
        %v2297 = vadd.f32 %v631, %v1533
        %v2298 = vadd.f32 %v632, %v1980
        %v2299 = vadd.f32 %v633, %v1982
        %v2300 = vadd.f32 %v634, %v1537
        %v2301 = vadd.f32 %v635, %v1539
        %v2302 = vadd.f32 %v636, %v1986
        %v2303 = vadd.f32 %v637, %v1988
        %v2304 = vadd.f32 %v638, %v1543
        %v2305 = vadd.f32 %v639, %v1545
        %v2306 = vadd.f32 %v640, %v1992
        %v2307 = vadd.f32 %v641, %v1994
        %v2308 = vadd.f32 %v642, %v1549
        %v2309 = vadd.f32 %v643, %v1551
        %v2310 = vadd.f32 %v644, %v1998
        %v2311 = vadd.f32 %v645, %v2000
        %v2312 = vadd.f32 %v646, %v1555
        %v2313 = vadd.f32 %v647, %v1557
        %v2314 = vadd.f32 %v648, %v2004
        %v2315 = vadd.f32 %v649, %v2006
        %v2316 = vadd.f32 %v650, %v1561
        %v2317 = vadd.f32 %v651, %v1563
        %v2318 = vadd.f32 %v652, %v2010
        %v2319 = vadd.f32 %v653, %v2012
        %v2320 = vadd.f32 %v654, %v1567
        %v2321 = vadd.f32 %v655, %v1569
        %v2322 = vadd.f32 %v656, %v2016
        %v2323 = vadd.f32 %v657, %v2018
        %v2324 = vadd.f32 %v658, %v1573
        %v2325 = vadd.f32 %v659, %v1575
        %v2326 = vadd.f32 %v660, %v2022
        %v2327 = vadd.f32 %v661, %v2024
        %v2328 = vadd.f32 %v662, %v1579
        %v2329 = vadd.f32 %v663, %v1581
        %v2330 = vadd.f32 %v664, %v2028
        %v2331 = vadd.f32 %v665, %v2030
        %v2332 = vadd.f32 %v666, %v1585
        %v2333 = vadd.f32 %v667, %v1587
        %v2334 = vadd.f32 %v668, %v2034
        %v2335 = vadd.f32 %v669, %v2036
        %v2336 = vadd.f32 %v670, %v1591
        %v2337 = vadd.f32 %v671, %v1593
        %v2338 = vadd.f32 %v672, %v2040
        %v2339 = vadd.f32 %v673, %v2042
        %v2340 = vadd.f32 %v674, %v1597
        %v2341 = vadd.f32 %v675, %v1599
        %v2342 = vadd.f32 %v676, %v2046
        %v2343 = vadd.f32 %v677, %v2048
        %v2344 = vadd.f32 %v678, %v1603
        %v2345 = vadd.f32 %v679, %v1605
        %v2346 = vadd.f32 %v680, %v2052
        %v2347 = vadd.f32 %v681, %v2054
        %v2348 = vadd.f32 %v682, %v1609
        %v2349 = vadd.f32 %v683, %v1611
        %v2350 = vadd.f32 %v684, %v2058
        %v2351 = vadd.f32 %v685, %v2060
        %v2352 = vadd.f32 %v686, %v1615
        %v2353 = vadd.f32 %v687, %v1617
        %v2354 = vadd.f32 %v688, %v2064
        %v2355 = vadd.f32 %v689, %v2066
        %v2356 = vadd.f32 %v690, %v1621
        %v2357 = vadd.f32 %v691, %v1623
        %v2358 = vadd.f32 %v692, %v2070
        %v2359 = vadd.f32 %v693, %v2072
        %v2360 = vadd.f32 %v694, %v1627
        %v2361 = vadd.f32 %v695, %v1629
        %v2362 = vadd.f32 %v696, %v2076
        %v2363 = vadd.f32 %v697, %v2078
        %v2364 = vadd.f32 %v698, %v1633
        %v2365 = vadd.f32 %v699, %v1635
        %v2366 = vadd.f32 %v700, %v2082
        %v2367 = vadd.f32 %v701, %v2084
        %v2368 = vadd.f32 %v702, %v1639
        %v2369 = vadd.f32 %v703, %v1641
        %v2370 = vadd.f32 %v704, %v2088
        %v2371 = vadd.f32 %v705, %v2090
        %v2372 = vadd.f32 %v706, %v1645
        %v2373 = vadd.f32 %v707, %v1647
        %v2374 = vadd.f32 %v708, %v2094
        %v2375 = vadd.f32 %v709, %v2096
        %v2376 = vadd.f32 %v710, %v1651
        %v2377 = vadd.f32 %v711, %v1653
        %v2378 = vadd.f32 %v712, %v2100
        %v2379 = vadd.f32 %v713, %v2102
        %v2380 = vadd.f32 %v714, %v1657
        %v2381 = vadd.f32 %v715, %v1659
        %v2382 = vadd.f32 %v716, %v2106
        %v2383 = vadd.f32 %v717, %v2108
        %v2384 = vadd.f32 %v718, %v1663
        %v2385 = vadd.f32 %v719, %v1665
        %v2386 = vadd.f32 %v720, %v2112
        %v2387 = vadd.f32 %v721, %v2114
        %v2388 = vadd.f32 %v722, %v1669
        %v2389 = vadd.f32 %v723, %v1671
        %v2390 = vadd.f32 %v724, %v2118
        %v2391 = vadd.f32 %v725, %v2120
        %v2392 = vadd.f32 %v726, %v1675
        %v2393 = vadd.f32 %v727, %v1677
        %v2394 = vadd.f32 %v728, %v2124
        %v2395 = vadd.f32 %v729, %v2126
        %v2396 = vadd.f32 %v730, %v1681
        %v2397 = vadd.f32 %v731, %v1683
        %v2398 = vadd.f32 %v732, %v2130
        %v2399 = vadd.f32 %v733, %v2132
        %v2400 = vadd.f32 %v734, %v1687
        %v2401 = vadd.f32 %v735, %v1689
        %v2402 = vadd.f32 %v736, %v2136
        %v2403 = vadd.f32 %v737, %v2138
        %v2404 = vadd.f32 %v738, %v1693
        %v2405 = vadd.f32 %v739, %v1695
        %v2406 = vadd.f32 %v740, %v2142
        %v2407 = vadd.f32 %v741, %v2144
        %v2408 = vadd.f32 %v742, %v1699
        %v2409 = vadd.f32 %v743, %v1701
        %v2410 = vadd.f32 %v744, %v2148
        %v2411 = vadd.f32 %v745, %v2150
        %v2412 = vadd.f32 %v746, %v1705
        %v2413 = vadd.f32 %v747, %v1707
        %v2414 = vadd.f32 %v748, %v2154
        %v2415 = vadd.f32 %v749, %v2156
        %v2416 = vadd.f32 %v750, %v1711
        %v2417 = vadd.f32 %v751, %v1713
        %v2418 = vadd.f32 %v752, %v2160
        %v2419 = vadd.f32 %v753, %v2162
        %2420 = vst [vmem:[#allocation2] sm:$0xff] %v2164
        %2421 = vst [vmem:[#allocation2 + $0x8] sm:$0xff] %v2165
        %2422 = vst [vmem:[#allocation2 + $0x10] sm:$0xff] %v2166
        %2423 = vst [vmem:[#allocation2 + $0x18] sm:$0xff] %v2167
        %2424 = vst [vmem:[#allocation2 + $0x20] sm:$0xff] %v2168
        %2425 = vst [vmem:[#allocation2 + $0x28] sm:$0xff] %v2169
        %2426 = vst [vmem:[#allocation2 + $0x30] sm:$0xff] %v2170
        %2427 = vst [vmem:[#allocation2 + $0x38] sm:$0xff] %v2171
        %2428 = vst [vmem:[#allocation2 + $0x40] sm:$0xff] %v2172
        %2429 = vst [vmem:[#allocation2 + $0x48] sm:$0xff] %v2173
        %2430 = vst [vmem:[#allocation2 + $0x50] sm:$0xff] %v2174
        %2431 = vst [vmem:[#allocation2 + $0x58] sm:$0xff] %v2175
        %2432 = vst [vmem:[#allocation2 + $0x60] sm:$0xff] %v2176
        %2433 = vst [vmem:[#allocation2 + $0x68] sm:$0xff] %v2177
        %2434 = vst [vmem:[#allocation2 + $0x70] sm:$0xff] %v2178
        %2435 = vst [vmem:[#allocation2 + $0x78] sm:$0xff] %v2179
        %2436 = vst [vmem:[#allocation2 + $0x80] sm:$0xff] %v2180
        %2437 = vst [vmem:[#allocation2 + $0x88] sm:$0xff] %v2181
        %2438 = vst [vmem:[#allocation2 + $0x90] sm:$0xff] %v2182
        %2439 = vst [vmem:[#allocation2 + $0x98] sm:$0xff] %v2183
        %2440 = vst [vmem:[#allocation2 + $0xa0] sm:$0xff] %v2184
        %2441 = vst [vmem:[#allocation2 + $0xa8] sm:$0xff] %v2185
        %2442 = vst [vmem:[#allocation2 + $0xb0] sm:$0xff] %v2186
        %2443 = vst [vmem:[#allocation2 + $0xb8] sm:$0xff] %v2187
        %2444 = vst [vmem:[#allocation2 + $0xc0] sm:$0xff] %v2188
        %2445 = vst [vmem:[#allocation2 + $0xc8] sm:$0xff] %v2189
        %2446 = vst [vmem:[#allocation2 + $0xd0] sm:$0xff] %v2190
        %2447 = vst [vmem:[#allocation2 + $0xd8] sm:$0xff] %v2191
        %2448 = vst [vmem:[#allocation2 + $0xe0] sm:$0xff] %v2192
        %2449 = vst [vmem:[#allocation2 + $0xe8] sm:$0xff] %v2193
        %2450 = vst [vmem:[#allocation2 + $0xf0] sm:$0xff] %v2194
        %2451 = vst [vmem:[#allocation2 + $0xf8] sm:$0xff] %v2195
        %2452 = vst [vmem:[#allocation2 + $0x100] sm:$0xff] %v2196
        %2453 = vst [vmem:[#allocation2 + $0x108] sm:$0xff] %v2197
        %2454 = vst [vmem:[#allocation2 + $0x110] sm:$0xff] %v2198
        %2455 = vst [vmem:[#allocation2 + $0x118] sm:$0xff] %v2199
        %2456 = vst [vmem:[#allocation2 + $0x120] sm:$0xff] %v2200
        %2457 = vst [vmem:[#allocation2 + $0x128] sm:$0xff] %v2201
        %2458 = vst [vmem:[#allocation2 + $0x130] sm:$0xff] %v2202
        %2459 = vst [vmem:[#allocation2 + $0x138] sm:$0xff] %v2203
        %2460 = vst [vmem:[#allocation2 + $0x140] sm:$0xff] %v2204
        %2461 = vst [vmem:[#allocation2 + $0x148] sm:$0xff] %v2205
        %2462 = vst [vmem:[#allocation2 + $0x150] sm:$0xff] %v2206
        %2463 = vst [vmem:[#allocation2 + $0x158] sm:$0xff] %v2207
        %2464 = vst [vmem:[#allocation2 + $0x160] sm:$0xff] %v2208
        %2465 = vst [vmem:[#allocation2 + $0x168] sm:$0xff] %v2209
        %2466 = vst [vmem:[#allocation2 + $0x170] sm:$0xff] %v2210
        %2467 = vst [vmem:[#allocation2 + $0x178] sm:$0xff] %v2211
        %2468 = vst [vmem:[#allocation2 + $0x180] sm:$0xff] %v2212
        %2469 = vst [vmem:[#allocation2 + $0x188] sm:$0xff] %v2213
        %2470 = vst [vmem:[#allocation2 + $0x190] sm:$0xff] %v2214
        %2471 = vst [vmem:[#allocation2 + $0x198] sm:$0xff] %v2215
        %2472 = vst [vmem:[#allocation2 + $0x1a0] sm:$0xff] %v2216
        %2473 = vst [vmem:[#allocation2 + $0x1a8] sm:$0xff] %v2217
        %2474 = vst [vmem:[#allocation2 + $0x1b0] sm:$0xff] %v2218
        %2475 = vst [vmem:[#allocation2 + $0x1b8] sm:$0xff] %v2219
        %2476 = vst [vmem:[#allocation2 + $0x1c0] sm:$0xff] %v2220
        %2477 = vst [vmem:[#allocation2 + $0x1c8] sm:$0xff] %v2221
        %2478 = vst [vmem:[#allocation2 + $0x1d0] sm:$0xff] %v2222
        %2479 = vst [vmem:[#allocation2 + $0x1d8] sm:$0xff] %v2223
        %2480 = vst [vmem:[#allocation2 + $0x1e0] sm:$0xff] %v2224
        %2481 = vst [vmem:[#allocation2 + $0x1e8] sm:$0xff] %v2225
        %2482 = vst [vmem:[#allocation2 + $0x1f0] sm:$0xff] %v2226
        %2483 = vst [vmem:[#allocation2 + $0x1f8] sm:$0xff] %v2227
        %2484 = vst [vmem:[#allocation2 + $0x200] sm:$0xff] %v2228
        %2485 = vst [vmem:[#allocation2 + $0x208] sm:$0xff] %v2229
        %2486 = vst [vmem:[#allocation2 + $0x210] sm:$0xff] %v2230
        %2487 = vst [vmem:[#allocation2 + $0x218] sm:$0xff] %v2231
        %2488 = vst [vmem:[#allocation2 + $0x220] sm:$0xff] %v2232
        %2489 = vst [vmem:[#allocation2 + $0x228] sm:$0xff] %v2233
        %2490 = vst [vmem:[#allocation2 + $0x230] sm:$0xff] %v2234
        %2491 = vst [vmem:[#allocation2 + $0x238] sm:$0xff] %v2235
        %2492 = vst [vmem:[#allocation2 + $0x240] sm:$0xff] %v2236
        %2493 = vst [vmem:[#allocation2 + $0x248] sm:$0xff] %v2237
        %2494 = vst [vmem:[#allocation2 + $0x250] sm:$0xff] %v2238
        %2495 = vst [vmem:[#allocation2 + $0x258] sm:$0xff] %v2239
        %2496 = vst [vmem:[#allocation2 + $0x260] sm:$0xff] %v2240
        %2497 = vst [vmem:[#allocation2 + $0x268] sm:$0xff] %v2241
        %2498 = vst [vmem:[#allocation2 + $0x270] sm:$0xff] %v2242
        %2499 = vst [vmem:[#allocation2 + $0x278] sm:$0xff] %v2243
        %2500 = vst [vmem:[#allocation2 + $0x280] sm:$0xff] %v2244
        %2501 = vst [vmem:[#allocation2 + $0x288] sm:$0xff] %v2245
        %2502 = vst [vmem:[#allocation2 + $0x290] sm:$0xff] %v2246
        %2503 = vst [vmem:[#allocation2 + $0x298] sm:$0xff] %v2247
        %2504 = vst [vmem:[#allocation2 + $0x2a0] sm:$0xff] %v2248
        %2505 = vst [vmem:[#allocation2 + $0x2a8] sm:$0xff] %v2249
        %2506 = vst [vmem:[#allocation2 + $0x2b0] sm:$0xff] %v2250
        %2507 = vst [vmem:[#allocation2 + $0x2b8] sm:$0xff] %v2251
        %2508 = vst [vmem:[#allocation2 + $0x2c0] sm:$0xff] %v2252
        %2509 = vst [vmem:[#allocation2 + $0x2c8] sm:$0xff] %v2253
        %2510 = vst [vmem:[#allocation2 + $0x2d0] sm:$0xff] %v2254
        %2511 = vst [vmem:[#allocation2 + $0x2d8] sm:$0xff] %v2255
        %2512 = vst [vmem:[#allocation2 + $0x2e0] sm:$0xff] %v2256
        %2513 = vst [vmem:[#allocation2 + $0x2e8] sm:$0xff] %v2257
        %2514 = vst [vmem:[#allocation2 + $0x2f0] sm:$0xff] %v2258
        %2515 = vst [vmem:[#allocation2 + $0x2f8] sm:$0xff] %v2259
        %2516 = vst [vmem:[#allocation2 + $0x300] sm:$0xff] %v2260
        %2517 = vst [vmem:[#allocation2 + $0x308] sm:$0xff] %v2261
        %2518 = vst [vmem:[#allocation2 + $0x310] sm:$0xff] %v2262
        %2519 = vst [vmem:[#allocation2 + $0x318] sm:$0xff] %v2263
        %2520 = vst [vmem:[#allocation2 + $0x320] sm:$0xff] %v2264
        %2521 = vst [vmem:[#allocation2 + $0x328] sm:$0xff] %v2265
        %2522 = vst [vmem:[#allocation2 + $0x330] sm:$0xff] %v2266
        %2523 = vst [vmem:[#allocation2 + $0x338] sm:$0xff] %v2267
        %2524 = vst [vmem:[#allocation2 + $0x340] sm:$0xff] %v2268
        %2525 = vst [vmem:[#allocation2 + $0x348] sm:$0xff] %v2269
        %2526 = vst [vmem:[#allocation2 + $0x350] sm:$0xff] %v2270
        %2527 = vst [vmem:[#allocation2 + $0x358] sm:$0xff] %v2271
        %2528 = vst [vmem:[#allocation2 + $0x360] sm:$0xff] %v2272
        %2529 = vst [vmem:[#allocation2 + $0x368] sm:$0xff] %v2273
        %2530 = vst [vmem:[#allocation2 + $0x370] sm:$0xff] %v2274
        %2531 = vst [vmem:[#allocation2 + $0x378] sm:$0xff] %v2275
        %2532 = vst [vmem:[#allocation2 + $0x380] sm:$0xff] %v2276
        %2533 = vst [vmem:[#allocation2 + $0x388] sm:$0xff] %v2277
        %2534 = vst [vmem:[#allocation2 + $0x390] sm:$0xff] %v2278
        %2535 = vst [vmem:[#allocation2 + $0x398] sm:$0xff] %v2279
        %2536 = vst [vmem:[#allocation2 + $0x3a0] sm:$0xff] %v2280
        %2537 = vst [vmem:[#allocation2 + $0x3a8] sm:$0xff] %v2281
        %2538 = vst [vmem:[#allocation2 + $0x3b0] sm:$0xff] %v2282
        %2539 = vst [vmem:[#allocation2 + $0x3b8] sm:$0xff] %v2283
        %2540 = vst [vmem:[#allocation2 + $0x3c0] sm:$0xff] %v2284
        %2541 = vst [vmem:[#allocation2 + $0x3c8] sm:$0xff] %v2285
        %2542 = vst [vmem:[#allocation2 + $0x3d0] sm:$0xff] %v2286
        %2543 = vst [vmem:[#allocation2 + $0x3d8] sm:$0xff] %v2287
        %2544 = vst [vmem:[#allocation2 + $0x3e0] sm:$0xff] %v2288
        %2545 = vst [vmem:[#allocation2 + $0x3e8] sm:$0xff] %v2289
        %2546 = vst [vmem:[#allocation2 + $0x3f0] sm:$0xff] %v2290
        %2547 = vst [vmem:[#allocation2 + $0x3f8] sm:$0xff] %v2291
        %2548 = vst [vmem:[#allocation2 + $0x400] sm:$0xff] %v2292
        %2549 = vst [vmem:[#allocation2 + $0x408] sm:$0xff] %v2293
        %2550 = vst [vmem:[#allocation2 + $0x410] sm:$0xff] %v2294
        %2551 = vst [vmem:[#allocation2 + $0x418] sm:$0xff] %v2295
        %2552 = vst [vmem:[#allocation2 + $0x420] sm:$0xff] %v2296
        %2553 = vst [vmem:[#allocation2 + $0x428] sm:$0xff] %v2297
        %2554 = vst [vmem:[#allocation2 + $0x430] sm:$0xff] %v2298
        %2555 = vst [vmem:[#allocation2 + $0x438] sm:$0xff] %v2299
        %2556 = vst [vmem:[#allocation2 + $0x440] sm:$0xff] %v2300
        %2557 = vst [vmem:[#allocation2 + $0x448] sm:$0xff] %v2301
        %2558 = vst [vmem:[#allocation2 + $0x450] sm:$0xff] %v2302
        %2559 = vst [vmem:[#allocation2 + $0x458] sm:$0xff] %v2303
        %2560 = vst [vmem:[#allocation2 + $0x460] sm:$0xff] %v2304
        %2561 = vst [vmem:[#allocation2 + $0x468] sm:$0xff] %v2305
        %2562 = vst [vmem:[#allocation2 + $0x470] sm:$0xff] %v2306
        %2563 = vst [vmem:[#allocation2 + $0x478] sm:$0xff] %v2307
        %2564 = vst [vmem:[#allocation2 + $0x480] sm:$0xff] %v2308
        %2565 = vst [vmem:[#allocation2 + $0x488] sm:$0xff] %v2309
        %2566 = vst [vmem:[#allocation2 + $0x490] sm:$0xff] %v2310
        %2567 = vst [vmem:[#allocation2 + $0x498] sm:$0xff] %v2311
        %2568 = vst [vmem:[#allocation2 + $0x4a0] sm:$0xff] %v2312
        %2569 = vst [vmem:[#allocation2 + $0x4a8] sm:$0xff] %v2313
        %2570 = vst [vmem:[#allocation2 + $0x4b0] sm:$0xff] %v2314
        %2571 = vst [vmem:[#allocation2 + $0x4b8] sm:$0xff] %v2315
        %2572 = vst [vmem:[#allocation2 + $0x4c0] sm:$0xff] %v2316
        %2573 = vst [vmem:[#allocation2 + $0x4c8] sm:$0xff] %v2317
        %2574 = vst [vmem:[#allocation2 + $0x4d0] sm:$0xff] %v2318
        %2575 = vst [vmem:[#allocation2 + $0x4d8] sm:$0xff] %v2319
        %2576 = vst [vmem:[#allocation2 + $0x4e0] sm:$0xff] %v2320
        %2577 = vst [vmem:[#allocation2 + $0x4e8] sm:$0xff] %v2321
        %2578 = vst [vmem:[#allocation2 + $0x4f0] sm:$0xff] %v2322
        %2579 = vst [vmem:[#allocation2 + $0x4f8] sm:$0xff] %v2323
        %2580 = vst [vmem:[#allocation2 + $0x500] sm:$0xff] %v2324
        %2581 = vst [vmem:[#allocation2 + $0x508] sm:$0xff] %v2325
        %2582 = vst [vmem:[#allocation2 + $0x510] sm:$0xff] %v2326
        %2583 = vst [vmem:[#allocation2 + $0x518] sm:$0xff] %v2327
        %2584 = vst [vmem:[#allocation2 + $0x520] sm:$0xff] %v2328
        %2585 = vst [vmem:[#allocation2 + $0x528] sm:$0xff] %v2329
        %2586 = vst [vmem:[#allocation2 + $0x530] sm:$0xff] %v2330
        %2587 = vst [vmem:[#allocation2 + $0x538] sm:$0xff] %v2331
        %2588 = vst [vmem:[#allocation2 + $0x540] sm:$0xff] %v2332
        %2589 = vst [vmem:[#allocation2 + $0x548] sm:$0xff] %v2333
        %2590 = vst [vmem:[#allocation2 + $0x550] sm:$0xff] %v2334
        %2591 = vst [vmem:[#allocation2 + $0x558] sm:$0xff] %v2335
        %2592 = vst [vmem:[#allocation2 + $0x560] sm:$0xff] %v2336
        %2593 = vst [vmem:[#allocation2 + $0x568] sm:$0xff] %v2337
        %2594 = vst [vmem:[#allocation2 + $0x570] sm:$0xff] %v2338
        %2595 = vst [vmem:[#allocation2 + $0x578] sm:$0xff] %v2339
        %2596 = vst [vmem:[#allocation2 + $0x580] sm:$0xff] %v2340
        %2597 = vst [vmem:[#allocation2 + $0x588] sm:$0xff] %v2341
        %2598 = vst [vmem:[#allocation2 + $0x590] sm:$0xff] %v2342
        %2599 = vst [vmem:[#allocation2 + $0x598] sm:$0xff] %v2343
        %2600 = vst [vmem:[#allocation2 + $0x5a0] sm:$0xff] %v2344
        %2601 = vst [vmem:[#allocation2 + $0x5a8] sm:$0xff] %v2345
        %2602 = vst [vmem:[#allocation2 + $0x5b0] sm:$0xff] %v2346
        %2603 = vst [vmem:[#allocation2 + $0x5b8] sm:$0xff] %v2347
        %2604 = vst [vmem:[#allocation2 + $0x5c0] sm:$0xff] %v2348
        %2605 = vst [vmem:[#allocation2 + $0x5c8] sm:$0xff] %v2349
        %2606 = vst [vmem:[#allocation2 + $0x5d0] sm:$0xff] %v2350
        %2607 = vst [vmem:[#allocation2 + $0x5d8] sm:$0xff] %v2351
        %2608 = vst [vmem:[#allocation2 + $0x5e0] sm:$0xff] %v2352
        %2609 = vst [vmem:[#allocation2 + $0x5e8] sm:$0xff] %v2353
        %2610 = vst [vmem:[#allocation2 + $0x5f0] sm:$0xff] %v2354
        %2611 = vst [vmem:[#allocation2 + $0x5f8] sm:$0xff] %v2355
        %2612 = vst [vmem:[#allocation2 + $0x600] sm:$0xff] %v2356
        %2613 = vst [vmem:[#allocation2 + $0x608] sm:$0xff] %v2357
        %2614 = vst [vmem:[#allocation2 + $0x610] sm:$0xff] %v2358
        %2615 = vst [vmem:[#allocation2 + $0x618] sm:$0xff] %v2359
        %2616 = vst [vmem:[#allocation2 + $0x620] sm:$0xff] %v2360
        %2617 = vst [vmem:[#allocation2 + $0x628] sm:$0xff] %v2361
        %2618 = vst [vmem:[#allocation2 + $0x630] sm:$0xff] %v2362
        %2619 = vst [vmem:[#allocation2 + $0x638] sm:$0xff] %v2363
        %2620 = vst [vmem:[#allocation2 + $0x640] sm:$0xff] %v2364
        %2621 = vst [vmem:[#allocation2 + $0x648] sm:$0xff] %v2365
        %2622 = vst [vmem:[#allocation2 + $0x650] sm:$0xff] %v2366
        %2623 = vst [vmem:[#allocation2 + $0x658] sm:$0xff] %v2367
        %2624 = vst [vmem:[#allocation2 + $0x660] sm:$0xff] %v2368
        %2625 = vst [vmem:[#allocation2 + $0x668] sm:$0xff] %v2369
        %2626 = vst [vmem:[#allocation2 + $0x670] sm:$0xff] %v2370
        %2627 = vst [vmem:[#allocation2 + $0x678] sm:$0xff] %v2371
        %2628 = vst [vmem:[#allocation2 + $0x680] sm:$0xff] %v2372
        %2629 = vst [vmem:[#allocation2 + $0x688] sm:$0xff] %v2373
        %2630 = vst [vmem:[#allocation2 + $0x690] sm:$0xff] %v2374
        %2631 = vst [vmem:[#allocation2 + $0x698] sm:$0xff] %v2375
        %2632 = vst [vmem:[#allocation2 + $0x6a0] sm:$0xff] %v2376
        %2633 = vst [vmem:[#allocation2 + $0x6a8] sm:$0xff] %v2377
        %2634 = vst [vmem:[#allocation2 + $0x6b0] sm:$0xff] %v2378
        %2635 = vst [vmem:[#allocation2 + $0x6b8] sm:$0xff] %v2379
        %2636 = vst [vmem:[#allocation2 + $0x6c0] sm:$0xff] %v2380
        %2637 = vst [vmem:[#allocation2 + $0x6c8] sm:$0xff] %v2381
        %2638 = vst [vmem:[#allocation2 + $0x6d0] sm:$0xff] %v2382
        %2639 = vst [vmem:[#allocation2 + $0x6d8] sm:$0xff] %v2383
        %2640 = vst [vmem:[#allocation2 + $0x6e0] sm:$0xff] %v2384
        %2641 = vst [vmem:[#allocation2 + $0x6e8] sm:$0xff] %v2385
        %2642 = vst [vmem:[#allocation2 + $0x6f0] sm:$0xff] %v2386
        %2643 = vst [vmem:[#allocation2 + $0x6f8] sm:$0xff] %v2387
        %2644 = vst [vmem:[#allocation2 + $0x700] sm:$0xff] %v2388
        %2645 = vst [vmem:[#allocation2 + $0x708] sm:$0xff] %v2389
        %2646 = vst [vmem:[#allocation2 + $0x710] sm:$0xff] %v2390
        %2647 = vst [vmem:[#allocation2 + $0x718] sm:$0xff] %v2391
        %2648 = vst [vmem:[#allocation2 + $0x720] sm:$0xff] %v2392
        %2649 = vst [vmem:[#allocation2 + $0x728] sm:$0xff] %v2393
        %2650 = vst [vmem:[#allocation2 + $0x730] sm:$0xff] %v2394
        %2651 = vst [vmem:[#allocation2 + $0x738] sm:$0xff] %v2395
        %2652 = vst [vmem:[#allocation2 + $0x740] sm:$0xff] %v2396
        %2653 = vst [vmem:[#allocation2 + $0x748] sm:$0xff] %v2397
        %2654 = vst [vmem:[#allocation2 + $0x750] sm:$0xff] %v2398
        %2655 = vst [vmem:[#allocation2 + $0x758] sm:$0xff] %v2399
        %2656 = vst [vmem:[#allocation2 + $0x760] sm:$0xff] %v2400
        %2657 = vst [vmem:[#allocation2 + $0x768] sm:$0xff] %v2401
        %2658 = vst [vmem:[#allocation2 + $0x770] sm:$0xff] %v2402
        %2659 = vst [vmem:[#allocation2 + $0x778] sm:$0xff] %v2403
        %2660 = vst [vmem:[#allocation2 + $0x780] sm:$0xff] %v2404
        %2661 = vst [vmem:[#allocation2 + $0x788] sm:$0xff] %v2405
        %2662 = vst [vmem:[#allocation2 + $0x790] sm:$0xff] %v2406
        %2663 = vst [vmem:[#allocation2 + $0x798] sm:$0xff] %v2407
        %2664 = vst [vmem:[#allocation2 + $0x7a0] sm:$0xff] %v2408
        %2665 = vst [vmem:[#allocation2 + $0x7a8] sm:$0xff] %v2409
        %2666 = vst [vmem:[#allocation2 + $0x7b0] sm:$0xff] %v2410
        %2667 = vst [vmem:[#allocation2 + $0x7b8] sm:$0xff] %v2411
        %2668 = vst [vmem:[#allocation2 + $0x7c0] sm:$0xff] %v2412
        %2669 = vst [vmem:[#allocation2 + $0x7c8] sm:$0xff] %v2413
        %2670 = vst [vmem:[#allocation2 + $0x7d0] sm:$0xff] %v2414
        %2671 = vst [vmem:[#allocation2 + $0x7d8] sm:$0xff] %v2415
        %2672 = vst [vmem:[#allocation2 + $0x7e0] sm:$0xff] %v2416
        %2673 = vst [vmem:[#allocation2 + $0x7e8] sm:$0xff] %v2417
        %2674 = vst [vmem:[#allocation2 + $0x7f0] sm:$0xff] %v2418
        %2675 = vst [vmem:[#allocation2 + $0x7f8] sm:$0xff] %v2419
        %p2676 = scmp.eq.s32.totalorder %s27, 1
        // Predicated region
        $region45: #{tpu_custom_call.1} parent=27 // pred_check
          %p2677 = pneg %p2676
        $region46: #{tpu_custom_call.1} parent=27 // pred_check_branch
          %2679 = sbr.rel (%p2677) target = $region48
        $region47: #{tpu_custom_call.1} parent=27 // pred_region
          %v2680 = vld [vmem:[#allocation2] sm:$0xff]
          %v2681 = vld [vmem:[#allocation2 + $0x8] sm:$0xff]
          %v2682 = vld [vmem:[#allocation2 + $0x10] sm:$0xff]
          %v2683 = vld [vmem:[#allocation2 + $0x18] sm:$0xff]
          %v2684 = vld [vmem:[#allocation2 + $0x20] sm:$0xff]
          %v2685 = vld [vmem:[#allocation2 + $0x28] sm:$0xff]
          %v2686 = vld [vmem:[#allocation2 + $0x30] sm:$0xff]
          %v2687 = vld [vmem:[#allocation2 + $0x38] sm:$0xff]
          %v2688 = vld [vmem:[#allocation2 + $0x40] sm:$0xff]
          %v2689 = vld [vmem:[#allocation2 + $0x48] sm:$0xff]
          %v2690 = vld [vmem:[#allocation2 + $0x50] sm:$0xff]
          %v2691 = vld [vmem:[#allocation2 + $0x58] sm:$0xff]
          %v2692 = vld [vmem:[#allocation2 + $0x60] sm:$0xff]
          %v2693 = vld [vmem:[#allocation2 + $0x68] sm:$0xff]
          %v2694 = vld [vmem:[#allocation2 + $0x70] sm:$0xff]
          %v2695 = vld [vmem:[#allocation2 + $0x78] sm:$0xff]
          %v2696 = vld [vmem:[#allocation2 + $0x80] sm:$0xff]
          %v2697 = vld [vmem:[#allocation2 + $0x88] sm:$0xff]
          %v2698 = vld [vmem:[#allocation2 + $0x90] sm:$0xff]
          %v2699 = vld [vmem:[#allocation2 + $0x98] sm:$0xff]
          %v2700 = vld [vmem:[#allocation2 + $0xa0] sm:$0xff]
          %v2701 = vld [vmem:[#allocation2 + $0xa8] sm:$0xff]
          %v2702 = vld [vmem:[#allocation2 + $0xb0] sm:$0xff]
          %v2703 = vld [vmem:[#allocation2 + $0xb8] sm:$0xff]
          %v2704 = vld [vmem:[#allocation2 + $0xc0] sm:$0xff]
          %v2705 = vld [vmem:[#allocation2 + $0xc8] sm:$0xff]
          %v2706 = vld [vmem:[#allocation2 + $0xd0] sm:$0xff]
          %v2707 = vld [vmem:[#allocation2 + $0xd8] sm:$0xff]
          %v2708 = vld [vmem:[#allocation2 + $0xe0] sm:$0xff]
          %v2709 = vld [vmem:[#allocation2 + $0xe8] sm:$0xff]
          %v2710 = vld [vmem:[#allocation2 + $0xf0] sm:$0xff]
          %v2711 = vld [vmem:[#allocation2 + $0xf8] sm:$0xff]
          %v2712 = vld [vmem:[#allocation2 + $0x100] sm:$0xff]
          %v2713 = vld [vmem:[#allocation2 + $0x108] sm:$0xff]
          %v2714 = vld [vmem:[#allocation2 + $0x110] sm:$0xff]
          %v2715 = vld [vmem:[#allocation2 + $0x118] sm:$0xff]
          %v2716 = vld [vmem:[#allocation2 + $0x120] sm:$0xff]
          %v2717 = vld [vmem:[#allocation2 + $0x128] sm:$0xff]
          %v2718 = vld [vmem:[#allocation2 + $0x130] sm:$0xff]
          %v2719 = vld [vmem:[#allocation2 + $0x138] sm:$0xff]
          %v2720 = vld [vmem:[#allocation2 + $0x140] sm:$0xff]
          %v2721 = vld [vmem:[#allocation2 + $0x148] sm:$0xff]
          %v2722 = vld [vmem:[#allocation2 + $0x150] sm:$0xff]
          %v2723 = vld [vmem:[#allocation2 + $0x158] sm:$0xff]
          %v2724 = vld [vmem:[#allocation2 + $0x160] sm:$0xff]
          %v2725 = vld [vmem:[#allocation2 + $0x168] sm:$0xff]
          %v2726 = vld [vmem:[#allocation2 + $0x170] sm:$0xff]
          %v2727 = vld [vmem:[#allocation2 + $0x178] sm:$0xff]
          %v2728 = vld [vmem:[#allocation2 + $0x180] sm:$0xff]
          %v2729 = vld [vmem:[#allocation2 + $0x188] sm:$0xff]
          %v2730 = vld [vmem:[#allocation2 + $0x190] sm:$0xff]
          %v2731 = vld [vmem:[#allocation2 + $0x198] sm:$0xff]
          %v2732 = vld [vmem:[#allocation2 + $0x1a0] sm:$0xff]
          %v2733 = vld [vmem:[#allocation2 + $0x1a8] sm:$0xff]
          %v2734 = vld [vmem:[#allocation2 + $0x1b0] sm:$0xff]
          %v2735 = vld [vmem:[#allocation2 + $0x1b8] sm:$0xff]
          %v2736 = vld [vmem:[#allocation2 + $0x1c0] sm:$0xff]
          %v2737 = vld [vmem:[#allocation2 + $0x1c8] sm:$0xff]
          %v2738 = vld [vmem:[#allocation2 + $0x1d0] sm:$0xff]
          %v2739 = vld [vmem:[#allocation2 + $0x1d8] sm:$0xff]
          %v2740 = vld [vmem:[#allocation2 + $0x1e0] sm:$0xff]
          %v2741 = vld [vmem:[#allocation2 + $0x1e8] sm:$0xff]
          %v2742 = vld [vmem:[#allocation2 + $0x1f0] sm:$0xff]
          %v2743 = vld [vmem:[#allocation2 + $0x1f8] sm:$0xff]
          %v2744 = vld [vmem:[#allocation2 + $0x200] sm:$0xff]
          %v2745 = vld [vmem:[#allocation2 + $0x208] sm:$0xff]
          %v2746 = vld [vmem:[#allocation2 + $0x210] sm:$0xff]
          %v2747 = vld [vmem:[#allocation2 + $0x218] sm:$0xff]
          %v2748 = vld [vmem:[#allocation2 + $0x220] sm:$0xff]
          %v2749 = vld [vmem:[#allocation2 + $0x228] sm:$0xff]
          %v2750 = vld [vmem:[#allocation2 + $0x230] sm:$0xff]
          %v2751 = vld [vmem:[#allocation2 + $0x238] sm:$0xff]
          %v2752 = vld [vmem:[#allocation2 + $0x240] sm:$0xff]
          %v2753 = vld [vmem:[#allocation2 + $0x248] sm:$0xff]
          %v2754 = vld [vmem:[#allocation2 + $0x250] sm:$0xff]
          %v2755 = vld [vmem:[#allocation2 + $0x258] sm:$0xff]
          %v2756 = vld [vmem:[#allocation2 + $0x260] sm:$0xff]
          %v2757 = vld [vmem:[#allocation2 + $0x268] sm:$0xff]
          %v2758 = vld [vmem:[#allocation2 + $0x270] sm:$0xff]
          %v2759 = vld [vmem:[#allocation2 + $0x278] sm:$0xff]
          %v2760 = vld [vmem:[#allocation2 + $0x280] sm:$0xff]
          %v2761 = vld [vmem:[#allocation2 + $0x288] sm:$0xff]
          %v2762 = vld [vmem:[#allocation2 + $0x290] sm:$0xff]
          %v2763 = vld [vmem:[#allocation2 + $0x298] sm:$0xff]
          %v2764 = vld [vmem:[#allocation2 + $0x2a0] sm:$0xff]
          %v2765 = vld [vmem:[#allocation2 + $0x2a8] sm:$0xff]
          %v2766 = vld [vmem:[#allocation2 + $0x2b0] sm:$0xff]
          %v2767 = vld [vmem:[#allocation2 + $0x2b8] sm:$0xff]
          %v2768 = vld [vmem:[#allocation2 + $0x2c0] sm:$0xff]
          %v2769 = vld [vmem:[#allocation2 + $0x2c8] sm:$0xff]
          %v2770 = vld [vmem:[#allocation2 + $0x2d0] sm:$0xff]
          %v2771 = vld [vmem:[#allocation2 + $0x2d8] sm:$0xff]
          %v2772 = vld [vmem:[#allocation2 + $0x2e0] sm:$0xff]
          %v2773 = vld [vmem:[#allocation2 + $0x2e8] sm:$0xff]
          %v2774 = vld [vmem:[#allocation2 + $0x2f0] sm:$0xff]
          %v2775 = vld [vmem:[#allocation2 + $0x2f8] sm:$0xff]
          %v2776 = vld [vmem:[#allocation2 + $0x300] sm:$0xff]
          %v2777 = vld [vmem:[#allocation2 + $0x308] sm:$0xff]
          %v2778 = vld [vmem:[#allocation2 + $0x310] sm:$0xff]
          %v2779 = vld [vmem:[#allocation2 + $0x318] sm:$0xff]
          %v2780 = vld [vmem:[#allocation2 + $0x320] sm:$0xff]
          %v2781 = vld [vmem:[#allocation2 + $0x328] sm:$0xff]
          %v2782 = vld [vmem:[#allocation2 + $0x330] sm:$0xff]
          %v2783 = vld [vmem:[#allocation2 + $0x338] sm:$0xff]
          %v2784 = vld [vmem:[#allocation2 + $0x340] sm:$0xff]
          %v2785 = vld [vmem:[#allocation2 + $0x348] sm:$0xff]
          %v2786 = vld [vmem:[#allocation2 + $0x350] sm:$0xff]
          %v2787 = vld [vmem:[#allocation2 + $0x358] sm:$0xff]
          %v2788 = vld [vmem:[#allocation2 + $0x360] sm:$0xff]
          %v2789 = vld [vmem:[#allocation2 + $0x368] sm:$0xff]
          %v2790 = vld [vmem:[#allocation2 + $0x370] sm:$0xff]
          %v2791 = vld [vmem:[#allocation2 + $0x378] sm:$0xff]
          %v2792 = vld [vmem:[#allocation2 + $0x380] sm:$0xff]
          %v2793 = vld [vmem:[#allocation2 + $0x388] sm:$0xff]
          %v2794 = vld [vmem:[#allocation2 + $0x390] sm:$0xff]
          %v2795 = vld [vmem:[#allocation2 + $0x398] sm:$0xff]
          %v2796 = vld [vmem:[#allocation2 + $0x3a0] sm:$0xff]
          %v2797 = vld [vmem:[#allocation2 + $0x3a8] sm:$0xff]
          %v2798 = vld [vmem:[#allocation2 + $0x3b0] sm:$0xff]
          %v2799 = vld [vmem:[#allocation2 + $0x3b8] sm:$0xff]
          %v2800 = vld [vmem:[#allocation2 + $0x3c0] sm:$0xff]
          %v2801 = vld [vmem:[#allocation2 + $0x3c8] sm:$0xff]
          %v2802 = vld [vmem:[#allocation2 + $0x3d0] sm:$0xff]
          %v2803 = vld [vmem:[#allocation2 + $0x3d8] sm:$0xff]
          %v2804 = vld [vmem:[#allocation2 + $0x3e0] sm:$0xff]
          %v2805 = vld [vmem:[#allocation2 + $0x3e8] sm:$0xff]
          %v2806 = vld [vmem:[#allocation2 + $0x3f0] sm:$0xff]
          %v2807 = vld [vmem:[#allocation2 + $0x3f8] sm:$0xff]
          %v2808 = vld [vmem:[#allocation2 + $0x400] sm:$0xff]
          %v2809 = vld [vmem:[#allocation2 + $0x408] sm:$0xff]
          %v2810 = vld [vmem:[#allocation2 + $0x410] sm:$0xff]
          %v2811 = vld [vmem:[#allocation2 + $0x418] sm:$0xff]
          %v2812 = vld [vmem:[#allocation2 + $0x420] sm:$0xff]
          %v2813 = vld [vmem:[#allocation2 + $0x428] sm:$0xff]
          %v2814 = vld [vmem:[#allocation2 + $0x430] sm:$0xff]
          %v2815 = vld [vmem:[#allocation2 + $0x438] sm:$0xff]
          %v2816 = vld [vmem:[#allocation2 + $0x440] sm:$0xff]
          %v2817 = vld [vmem:[#allocation2 + $0x448] sm:$0xff]
          %v2818 = vld [vmem:[#allocation2 + $0x450] sm:$0xff]
          %v2819 = vld [vmem:[#allocation2 + $0x458] sm:$0xff]
          %v2820 = vld [vmem:[#allocation2 + $0x460] sm:$0xff]
          %v2821 = vld [vmem:[#allocation2 + $0x468] sm:$0xff]
          %v2822 = vld [vmem:[#allocation2 + $0x470] sm:$0xff]
          %v2823 = vld [vmem:[#allocation2 + $0x478] sm:$0xff]
          %v2824 = vld [vmem:[#allocation2 + $0x480] sm:$0xff]
          %v2825 = vld [vmem:[#allocation2 + $0x488] sm:$0xff]
          %v2826 = vld [vmem:[#allocation2 + $0x490] sm:$0xff]
          %v2827 = vld [vmem:[#allocation2 + $0x498] sm:$0xff]
          %v2828 = vld [vmem:[#allocation2 + $0x4a0] sm:$0xff]
          %v2829 = vld [vmem:[#allocation2 + $0x4a8] sm:$0xff]
          %v2830 = vld [vmem:[#allocation2 + $0x4b0] sm:$0xff]
          %v2831 = vld [vmem:[#allocation2 + $0x4b8] sm:$0xff]
          %v2832 = vld [vmem:[#allocation2 + $0x4c0] sm:$0xff]
          %v2833 = vld [vmem:[#allocation2 + $0x4c8] sm:$0xff]
          %v2834 = vld [vmem:[#allocation2 + $0x4d0] sm:$0xff]
          %v2835 = vld [vmem:[#allocation2 + $0x4d8] sm:$0xff]
          %v2836 = vld [vmem:[#allocation2 + $0x4e0] sm:$0xff]
          %v2837 = vld [vmem:[#allocation2 + $0x4e8] sm:$0xff]
          %v2838 = vld [vmem:[#allocation2 + $0x4f0] sm:$0xff]
          %v2839 = vld [vmem:[#allocation2 + $0x4f8] sm:$0xff]
          %v2840 = vld [vmem:[#allocation2 + $0x500] sm:$0xff]
          %v2841 = vld [vmem:[#allocation2 + $0x508] sm:$0xff]
          %v2842 = vld [vmem:[#allocation2 + $0x510] sm:$0xff]
          %v2843 = vld [vmem:[#allocation2 + $0x518] sm:$0xff]
          %v2844 = vld [vmem:[#allocation2 + $0x520] sm:$0xff]
          %v2845 = vld [vmem:[#allocation2 + $0x528] sm:$0xff]
          %v2846 = vld [vmem:[#allocation2 + $0x530] sm:$0xff]
          %v2847 = vld [vmem:[#allocation2 + $0x538] sm:$0xff]
          %v2848 = vld [vmem:[#allocation2 + $0x540] sm:$0xff]
          %v2849 = vld [vmem:[#allocation2 + $0x548] sm:$0xff]
          %v2850 = vld [vmem:[#allocation2 + $0x550] sm:$0xff]
          %v2851 = vld [vmem:[#allocation2 + $0x558] sm:$0xff]
          %v2852 = vld [vmem:[#allocation2 + $0x560] sm:$0xff]
          %v2853 = vld [vmem:[#allocation2 + $0x568] sm:$0xff]
          %v2854 = vld [vmem:[#allocation2 + $0x570] sm:$0xff]
          %v2855 = vld [vmem:[#allocation2 + $0x578] sm:$0xff]
          %v2856 = vld [vmem:[#allocation2 + $0x580] sm:$0xff]
          %v2857 = vld [vmem:[#allocation2 + $0x588] sm:$0xff]
          %v2858 = vld [vmem:[#allocation2 + $0x590] sm:$0xff]
          %v2859 = vld [vmem:[#allocation2 + $0x598] sm:$0xff]
          %v2860 = vld [vmem:[#allocation2 + $0x5a0] sm:$0xff]
          %v2861 = vld [vmem:[#allocation2 + $0x5a8] sm:$0xff]
          %v2862 = vld [vmem:[#allocation2 + $0x5b0] sm:$0xff]
          %v2863 = vld [vmem:[#allocation2 + $0x5b8] sm:$0xff]
          %v2864 = vld [vmem:[#allocation2 + $0x5c0] sm:$0xff]
          %v2865 = vld [vmem:[#allocation2 + $0x5c8] sm:$0xff]
          %v2866 = vld [vmem:[#allocation2 + $0x5d0] sm:$0xff]
          %v2867 = vld [vmem:[#allocation2 + $0x5d8] sm:$0xff]
          %v2868 = vld [vmem:[#allocation2 + $0x5e0] sm:$0xff]
          %v2869 = vld [vmem:[#allocation2 + $0x5e8] sm:$0xff]
          %v2870 = vld [vmem:[#allocation2 + $0x5f0] sm:$0xff]
          %v2871 = vld [vmem:[#allocation2 + $0x5f8] sm:$0xff]
          %v2872 = vld [vmem:[#allocation2 + $0x600] sm:$0xff]
          %v2873 = vld [vmem:[#allocation2 + $0x608] sm:$0xff]
          %v2874 = vld [vmem:[#allocation2 + $0x610] sm:$0xff]
          %v2875 = vld [vmem:[#allocation2 + $0x618] sm:$0xff]
          %v2876 = vld [vmem:[#allocation2 + $0x620] sm:$0xff]
          %v2877 = vld [vmem:[#allocation2 + $0x628] sm:$0xff]
          %v2878 = vld [vmem:[#allocation2 + $0x630] sm:$0xff]
          %v2879 = vld [vmem:[#allocation2 + $0x638] sm:$0xff]
          %v2880 = vld [vmem:[#allocation2 + $0x640] sm:$0xff]
          %v2881 = vld [vmem:[#allocation2 + $0x648] sm:$0xff]
          %v2882 = vld [vmem:[#allocation2 + $0x650] sm:$0xff]
          %v2883 = vld [vmem:[#allocation2 + $0x658] sm:$0xff]
          %v2884 = vld [vmem:[#allocation2 + $0x660] sm:$0xff]
          %v2885 = vld [vmem:[#allocation2 + $0x668] sm:$0xff]
          %v2886 = vld [vmem:[#allocation2 + $0x670] sm:$0xff]
          %v2887 = vld [vmem:[#allocation2 + $0x678] sm:$0xff]
          %v2888 = vld [vmem:[#allocation2 + $0x680] sm:$0xff]
          %v2889 = vld [vmem:[#allocation2 + $0x688] sm:$0xff]
          %v2890 = vld [vmem:[#allocation2 + $0x690] sm:$0xff]
          %v2891 = vld [vmem:[#allocation2 + $0x698] sm:$0xff]
          %v2892 = vld [vmem:[#allocation2 + $0x6a0] sm:$0xff]
          %v2893 = vld [vmem:[#allocation2 + $0x6a8] sm:$0xff]
          %v2894 = vld [vmem:[#allocation2 + $0x6b0] sm:$0xff]
          %v2895 = vld [vmem:[#allocation2 + $0x6b8] sm:$0xff]
          %v2896 = vld [vmem:[#allocation2 + $0x6c0] sm:$0xff]
          %v2897 = vld [vmem:[#allocation2 + $0x6c8] sm:$0xff]
          %v2898 = vld [vmem:[#allocation2 + $0x6d0] sm:$0xff]
          %v2899 = vld [vmem:[#allocation2 + $0x6d8] sm:$0xff]
          %v2900 = vld [vmem:[#allocation2 + $0x6e0] sm:$0xff]
          %v2901 = vld [vmem:[#allocation2 + $0x6e8] sm:$0xff]
          %v2902 = vld [vmem:[#allocation2 + $0x6f0] sm:$0xff]
          %v2903 = vld [vmem:[#allocation2 + $0x6f8] sm:$0xff]
          %v2904 = vld [vmem:[#allocation2 + $0x700] sm:$0xff]
          %v2905 = vld [vmem:[#allocation2 + $0x708] sm:$0xff]
          %v2906 = vld [vmem:[#allocation2 + $0x710] sm:$0xff]
          %v2907 = vld [vmem:[#allocation2 + $0x718] sm:$0xff]
          %v2908 = vld [vmem:[#allocation2 + $0x720] sm:$0xff]
          %v2909 = vld [vmem:[#allocation2 + $0x728] sm:$0xff]
          %v2910 = vld [vmem:[#allocation2 + $0x730] sm:$0xff]
          %v2911 = vld [vmem:[#allocation2 + $0x738] sm:$0xff]
          %v2912 = vld [vmem:[#allocation2 + $0x740] sm:$0xff]
          %v2913 = vld [vmem:[#allocation2 + $0x748] sm:$0xff]
          %v2914 = vld [vmem:[#allocation2 + $0x750] sm:$0xff]
          %v2915 = vld [vmem:[#allocation2 + $0x758] sm:$0xff]
          %v2916 = vld [vmem:[#allocation2 + $0x760] sm:$0xff]
          %v2917 = vld [vmem:[#allocation2 + $0x768] sm:$0xff]
          %v2918 = vld [vmem:[#allocation2 + $0x770] sm:$0xff]
          %v2919 = vld [vmem:[#allocation2 + $0x778] sm:$0xff]
          %v2920 = vld [vmem:[#allocation2 + $0x780] sm:$0xff]
          %v2921 = vld [vmem:[#allocation2 + $0x788] sm:$0xff]
          %v2922 = vld [vmem:[#allocation2 + $0x790] sm:$0xff]
          %v2923 = vld [vmem:[#allocation2 + $0x798] sm:$0xff]
          %v2924 = vld [vmem:[#allocation2 + $0x7a0] sm:$0xff]
          %v2925 = vld [vmem:[#allocation2 + $0x7a8] sm:$0xff]
          %v2926 = vld [vmem:[#allocation2 + $0x7b0] sm:$0xff]
          %v2927 = vld [vmem:[#allocation2 + $0x7b8] sm:$0xff]
          %v2928 = vld [vmem:[#allocation2 + $0x7c0] sm:$0xff]
          %v2929 = vld [vmem:[#allocation2 + $0x7c8] sm:$0xff]
          %v2930 = vld [vmem:[#allocation2 + $0x7d0] sm:$0xff]
          %v2931 = vld [vmem:[#allocation2 + $0x7d8] sm:$0xff]
          %v2932 = vld [vmem:[#allocation2 + $0x7e0] sm:$0xff]
          %v2933 = vld [vmem:[#allocation2 + $0x7e8] sm:$0xff]
          %v2934 = vld [vmem:[#allocation2 + $0x7f0] sm:$0xff]
          %v2935 = vld [vmem:[#allocation2 + $0x7f8] sm:$0xff]
          %v2936 = vmul.f32 %v2680, 0.001953125
          %v2937 = vmul.f32 %v2681, 0.001953125
          %v2938 = vmul.f32 %v2682, 0.001953125
          %v2939 = vmul.f32 %v2683, 0.001953125
          %v2940 = vmul.f32 %v2684, 0.001953125
          %v2941 = vmul.f32 %v2685, 0.001953125
          %v2942 = vmul.f32 %v2686, 0.001953125
          %v2943 = vmul.f32 %v2687, 0.001953125
          %v2944 = vmul.f32 %v2688, 0.001953125
          %v2945 = vmul.f32 %v2689, 0.001953125
          %v2946 = vmul.f32 %v2690, 0.001953125
          %v2947 = vmul.f32 %v2691, 0.001953125
          %v2948 = vmul.f32 %v2692, 0.001953125
          %v2949 = vmul.f32 %v2693, 0.001953125
          %v2950 = vmul.f32 %v2694, 0.001953125
          %v2951 = vmul.f32 %v2695, 0.001953125
          %v2952 = vmul.f32 %v2696, 0.001953125
          %v2953 = vmul.f32 %v2697, 0.001953125
          %v2954 = vmul.f32 %v2698, 0.001953125
          %v2955 = vmul.f32 %v2699, 0.001953125
          %v2956 = vmul.f32 %v2700, 0.001953125
          %v2957 = vmul.f32 %v2701, 0.001953125
          %v2958 = vmul.f32 %v2702, 0.001953125
          %v2959 = vmul.f32 %v2703, 0.001953125
          %v2960 = vmul.f32 %v2704, 0.001953125
          %v2961 = vmul.f32 %v2705, 0.001953125
          %v2962 = vmul.f32 %v2706, 0.001953125
          %v2963 = vmul.f32 %v2707, 0.001953125
          %v2964 = vmul.f32 %v2708, 0.001953125
          %v2965 = vmul.f32 %v2709, 0.001953125
          %v2966 = vmul.f32 %v2710, 0.001953125
          %v2967 = vmul.f32 %v2711, 0.001953125
          %v2968 = vmul.f32 %v2712, 0.001953125
          %v2969 = vmul.f32 %v2713, 0.001953125
          %v2970 = vmul.f32 %v2714, 0.001953125
          %v2971 = vmul.f32 %v2715, 0.001953125
          %v2972 = vmul.f32 %v2716, 0.001953125
          %v2973 = vmul.f32 %v2717, 0.001953125
          %v2974 = vmul.f32 %v2718, 0.001953125
          %v2975 = vmul.f32 %v2719, 0.001953125
          %v2976 = vmul.f32 %v2720, 0.001953125
          %v2977 = vmul.f32 %v2721, 0.001953125
          %v2978 = vmul.f32 %v2722, 0.001953125
          %v2979 = vmul.f32 %v2723, 0.001953125
          %v2980 = vmul.f32 %v2724, 0.001953125
          %v2981 = vmul.f32 %v2725, 0.001953125
          %v2982 = vmul.f32 %v2726, 0.001953125
          %v2983 = vmul.f32 %v2727, 0.001953125
          %v2984 = vmul.f32 %v2728, 0.001953125
          %v2985 = vmul.f32 %v2729, 0.001953125
          %v2986 = vmul.f32 %v2730, 0.001953125
          %v2987 = vmul.f32 %v2731, 0.001953125
          %v2988 = vmul.f32 %v2732, 0.001953125
          %v2989 = vmul.f32 %v2733, 0.001953125
          %v2990 = vmul.f32 %v2734, 0.001953125
          %v2991 = vmul.f32 %v2735, 0.001953125
          %v2992 = vmul.f32 %v2736, 0.001953125
          %v2993 = vmul.f32 %v2737, 0.001953125
          %v2994 = vmul.f32 %v2738, 0.001953125
          %v2995 = vmul.f32 %v2739, 0.001953125
          %v2996 = vmul.f32 %v2740, 0.001953125
          %v2997 = vmul.f32 %v2741, 0.001953125
          %v2998 = vmul.f32 %v2742, 0.001953125
          %v2999 = vmul.f32 %v2743, 0.001953125
          %v3000 = vmul.f32 %v2744, 0.001953125
          %v3001 = vmul.f32 %v2745, 0.001953125
          %v3002 = vmul.f32 %v2746, 0.001953125
          %v3003 = vmul.f32 %v2747, 0.001953125
          %v3004 = vmul.f32 %v2748, 0.001953125
          %v3005 = vmul.f32 %v2749, 0.001953125
          %v3006 = vmul.f32 %v2750, 0.001953125
          %v3007 = vmul.f32 %v2751, 0.001953125
          %v3008 = vmul.f32 %v2752, 0.001953125
          %v3009 = vmul.f32 %v2753, 0.001953125
          %v3010 = vmul.f32 %v2754, 0.001953125
          %v3011 = vmul.f32 %v2755, 0.001953125
          %v3012 = vmul.f32 %v2756, 0.001953125
          %v3013 = vmul.f32 %v2757, 0.001953125
          %v3014 = vmul.f32 %v2758, 0.001953125
          %v3015 = vmul.f32 %v2759, 0.001953125
          %v3016 = vmul.f32 %v2760, 0.001953125
          %v3017 = vmul.f32 %v2761, 0.001953125
          %v3018 = vmul.f32 %v2762, 0.001953125
          %v3019 = vmul.f32 %v2763, 0.001953125
          %v3020 = vmul.f32 %v2764, 0.001953125
          %v3021 = vmul.f32 %v2765, 0.001953125
          %v3022 = vmul.f32 %v2766, 0.001953125
          %v3023 = vmul.f32 %v2767, 0.001953125
          %v3024 = vmul.f32 %v2768, 0.001953125
          %v3025 = vmul.f32 %v2769, 0.001953125
          %v3026 = vmul.f32 %v2770, 0.001953125
          %v3027 = vmul.f32 %v2771, 0.001953125
          %v3028 = vmul.f32 %v2772, 0.001953125
          %v3029 = vmul.f32 %v2773, 0.001953125
          %v3030 = vmul.f32 %v2774, 0.001953125
          %v3031 = vmul.f32 %v2775, 0.001953125
          %v3032 = vmul.f32 %v2776, 0.001953125
          %v3033 = vmul.f32 %v2777, 0.001953125
          %v3034 = vmul.f32 %v2778, 0.001953125
          %v3035 = vmul.f32 %v2779, 0.001953125
          %v3036 = vmul.f32 %v2780, 0.001953125
          %v3037 = vmul.f32 %v2781, 0.001953125
          %v3038 = vmul.f32 %v2782, 0.001953125
          %v3039 = vmul.f32 %v2783, 0.001953125
          %v3040 = vmul.f32 %v2784, 0.001953125
          %v3041 = vmul.f32 %v2785, 0.001953125
          %v3042 = vmul.f32 %v2786, 0.001953125
          %v3043 = vmul.f32 %v2787, 0.001953125
          %v3044 = vmul.f32 %v2788, 0.001953125
          %v3045 = vmul.f32 %v2789, 0.001953125
          %v3046 = vmul.f32 %v2790, 0.001953125
          %v3047 = vmul.f32 %v2791, 0.001953125
          %v3048 = vmul.f32 %v2792, 0.001953125
          %v3049 = vmul.f32 %v2793, 0.001953125
          %v3050 = vmul.f32 %v2794, 0.001953125
          %v3051 = vmul.f32 %v2795, 0.001953125
          %v3052 = vmul.f32 %v2796, 0.001953125
          %v3053 = vmul.f32 %v2797, 0.001953125
          %v3054 = vmul.f32 %v2798, 0.001953125
          %v3055 = vmul.f32 %v2799, 0.001953125
          %v3056 = vmul.f32 %v2800, 0.001953125
          %v3057 = vmul.f32 %v2801, 0.001953125
          %v3058 = vmul.f32 %v2802, 0.001953125
          %v3059 = vmul.f32 %v2803, 0.001953125
          %v3060 = vmul.f32 %v2804, 0.001953125
          %v3061 = vmul.f32 %v2805, 0.001953125
          %v3062 = vmul.f32 %v2806, 0.001953125
          %v3063 = vmul.f32 %v2807, 0.001953125
          %v3064 = vmul.f32 %v2808, 0.001953125
          %v3065 = vmul.f32 %v2809, 0.001953125
          %v3066 = vmul.f32 %v2810, 0.001953125
          %v3067 = vmul.f32 %v2811, 0.001953125
          %v3068 = vmul.f32 %v2812, 0.001953125
          %v3069 = vmul.f32 %v2813, 0.001953125
          %v3070 = vmul.f32 %v2814, 0.001953125
          %v3071 = vmul.f32 %v2815, 0.001953125
          %v3072 = vmul.f32 %v2816, 0.001953125
          %v3073 = vmul.f32 %v2817, 0.001953125
          %v3074 = vmul.f32 %v2818, 0.001953125
          %v3075 = vmul.f32 %v2819, 0.001953125
          %v3076 = vmul.f32 %v2820, 0.001953125
          %v3077 = vmul.f32 %v2821, 0.001953125
          %v3078 = vmul.f32 %v2822, 0.001953125
          %v3079 = vmul.f32 %v2823, 0.001953125
          %v3080 = vmul.f32 %v2824, 0.001953125
          %v3081 = vmul.f32 %v2825, 0.001953125
          %v3082 = vmul.f32 %v2826, 0.001953125
          %v3083 = vmul.f32 %v2827, 0.001953125
          %v3084 = vmul.f32 %v2828, 0.001953125
          %v3085 = vmul.f32 %v2829, 0.001953125
          %v3086 = vmul.f32 %v2830, 0.001953125
          %v3087 = vmul.f32 %v2831, 0.001953125
          %v3088 = vmul.f32 %v2832, 0.001953125
          %v3089 = vmul.f32 %v2833, 0.001953125
          %v3090 = vmul.f32 %v2834, 0.001953125
          %v3091 = vmul.f32 %v2835, 0.001953125
          %v3092 = vmul.f32 %v2836, 0.001953125
          %v3093 = vmul.f32 %v2837, 0.001953125
          %v3094 = vmul.f32 %v2838, 0.001953125
          %v3095 = vmul.f32 %v2839, 0.001953125
          %v3096 = vmul.f32 %v2840, 0.001953125
          %v3097 = vmul.f32 %v2841, 0.001953125
          %v3098 = vmul.f32 %v2842, 0.001953125
          %v3099 = vmul.f32 %v2843, 0.001953125
          %v3100 = vmul.f32 %v2844, 0.001953125
          %v3101 = vmul.f32 %v2845, 0.001953125
          %v3102 = vmul.f32 %v2846, 0.001953125
          %v3103 = vmul.f32 %v2847, 0.001953125
          %v3104 = vmul.f32 %v2848, 0.001953125
          %v3105 = vmul.f32 %v2849, 0.001953125
          %v3106 = vmul.f32 %v2850, 0.001953125
          %v3107 = vmul.f32 %v2851, 0.001953125
          %v3108 = vmul.f32 %v2852, 0.001953125
          %v3109 = vmul.f32 %v2853, 0.001953125
          %v3110 = vmul.f32 %v2854, 0.001953125
          %v3111 = vmul.f32 %v2855, 0.001953125
          %v3112 = vmul.f32 %v2856, 0.001953125
          %v3113 = vmul.f32 %v2857, 0.001953125
          %v3114 = vmul.f32 %v2858, 0.001953125
          %v3115 = vmul.f32 %v2859, 0.001953125
          %v3116 = vmul.f32 %v2860, 0.001953125
          %v3117 = vmul.f32 %v2861, 0.001953125
          %v3118 = vmul.f32 %v2862, 0.001953125
          %v3119 = vmul.f32 %v2863, 0.001953125
          %v3120 = vmul.f32 %v2864, 0.001953125
          %v3121 = vmul.f32 %v2865, 0.001953125
          %v3122 = vmul.f32 %v2866, 0.001953125
          %v3123 = vmul.f32 %v2867, 0.001953125
          %v3124 = vmul.f32 %v2868, 0.001953125
          %v3125 = vmul.f32 %v2869, 0.001953125
          %v3126 = vmul.f32 %v2870, 0.001953125
          %v3127 = vmul.f32 %v2871, 0.001953125
          %v3128 = vmul.f32 %v2872, 0.001953125
          %v3129 = vmul.f32 %v2873, 0.001953125
          %v3130 = vmul.f32 %v2874, 0.001953125
          %v3131 = vmul.f32 %v2875, 0.001953125
          %v3132 = vmul.f32 %v2876, 0.001953125
          %v3133 = vmul.f32 %v2877, 0.001953125
          %v3134 = vmul.f32 %v2878, 0.001953125
          %v3135 = vmul.f32 %v2879, 0.001953125
          %v3136 = vmul.f32 %v2880, 0.001953125
          %v3137 = vmul.f32 %v2881, 0.001953125
          %v3138 = vmul.f32 %v2882, 0.001953125
          %v3139 = vmul.f32 %v2883, 0.001953125
          %v3140 = vmul.f32 %v2884, 0.001953125
          %v3141 = vmul.f32 %v2885, 0.001953125
          %v3142 = vmul.f32 %v2886, 0.001953125
          %v3143 = vmul.f32 %v2887, 0.001953125
          %v3144 = vmul.f32 %v2888, 0.001953125
          %v3145 = vmul.f32 %v2889, 0.001953125
          %v3146 = vmul.f32 %v2890, 0.001953125
          %v3147 = vmul.f32 %v2891, 0.001953125
          %v3148 = vmul.f32 %v2892, 0.001953125
          %v3149 = vmul.f32 %v2893, 0.001953125
          %v3150 = vmul.f32 %v2894, 0.001953125
          %v3151 = vmul.f32 %v2895, 0.001953125
          %v3152 = vmul.f32 %v2896, 0.001953125
          %v3153 = vmul.f32 %v2897, 0.001953125
          %v3154 = vmul.f32 %v2898, 0.001953125
          %v3155 = vmul.f32 %v2899, 0.001953125
          %v3156 = vmul.f32 %v2900, 0.001953125
          %v3157 = vmul.f32 %v2901, 0.001953125
          %v3158 = vmul.f32 %v2902, 0.001953125
          %v3159 = vmul.f32 %v2903, 0.001953125
          %v3160 = vmul.f32 %v2904, 0.001953125
          %v3161 = vmul.f32 %v2905, 0.001953125
          %v3162 = vmul.f32 %v2906, 0.001953125
          %v3163 = vmul.f32 %v2907, 0.001953125
          %v3164 = vmul.f32 %v2908, 0.001953125
          %v3165 = vmul.f32 %v2909, 0.001953125
          %v3166 = vmul.f32 %v2910, 0.001953125
          %v3167 = vmul.f32 %v2911, 0.001953125
          %v3168 = vmul.f32 %v2912, 0.001953125
          %v3169 = vmul.f32 %v2913, 0.001953125
          %v3170 = vmul.f32 %v2914, 0.001953125
          %v3171 = vmul.f32 %v2915, 0.001953125
          %v3172 = vmul.f32 %v2916, 0.001953125
          %v3173 = vmul.f32 %v2917, 0.001953125
          %v3174 = vmul.f32 %v2918, 0.001953125
          %v3175 = vmul.f32 %v2919, 0.001953125
          %v3176 = vmul.f32 %v2920, 0.001953125
          %v3177 = vmul.f32 %v2921, 0.001953125
          %v3178 = vmul.f32 %v2922, 0.001953125
          %v3179 = vmul.f32 %v2923, 0.001953125
          %v3180 = vmul.f32 %v2924, 0.001953125
          %v3181 = vmul.f32 %v2925, 0.001953125
          %v3182 = vmul.f32 %v2926, 0.001953125
          %v3183 = vmul.f32 %v2927, 0.001953125
          %v3184 = vmul.f32 %v2928, 0.001953125
          %v3185 = vmul.f32 %v2929, 0.001953125
          %v3186 = vmul.f32 %v2930, 0.001953125
          %v3187 = vmul.f32 %v2931, 0.001953125
          %v3188 = vmul.f32 %v2932, 0.001953125
          %v3189 = vmul.f32 %v2933, 0.001953125
          %v3190 = vmul.f32 %v2934, 0.001953125
          %v3191 = vmul.f32 %v2935, 0.001953125
          %v3192 = vmul.f32 %v2936, %v2936
          %v3193 = vmul.f32 %v2937, %v2937
          %v3194 = vmul.f32 %v2938, %v2938
          %v3195 = vmul.f32 %v2939, %v2939
          %v3196 = vmul.f32 %v2940, %v2940
          %v3197 = vmul.f32 %v2941, %v2941
          %v3198 = vmul.f32 %v2942, %v2942
          %v3199 = vmul.f32 %v2943, %v2943
          %v3200 = vmul.f32 %v2944, %v2944
          %v3201 = vmul.f32 %v2945, %v2945
          %v3202 = vmul.f32 %v2946, %v2946
          %v3203 = vmul.f32 %v2947, %v2947
          %v3204 = vmul.f32 %v2948, %v2948
          %v3205 = vmul.f32 %v2949, %v2949
          %v3206 = vmul.f32 %v2950, %v2950
          %v3207 = vmul.f32 %v2951, %v2951
          %v3208 = vmul.f32 %v2952, %v2952
          %v3209 = vmul.f32 %v2953, %v2953
          %v3210 = vmul.f32 %v2954, %v2954
          %v3211 = vmul.f32 %v2955, %v2955
          %v3212 = vmul.f32 %v2956, %v2956
          %v3213 = vmul.f32 %v2957, %v2957
          %v3214 = vmul.f32 %v2958, %v2958
          %v3215 = vmul.f32 %v2959, %v2959
          %v3216 = vmul.f32 %v2960, %v2960
          %v3217 = vmul.f32 %v2961, %v2961
          %v3218 = vmul.f32 %v2962, %v2962
          %v3219 = vmul.f32 %v2963, %v2963
          %v3220 = vmul.f32 %v2964, %v2964
          %v3221 = vmul.f32 %v2965, %v2965
          %v3222 = vmul.f32 %v2966, %v2966
          %v3223 = vmul.f32 %v2967, %v2967
          %v3224 = vmul.f32 %v2968, %v2968
          %v3225 = vmul.f32 %v2969, %v2969
          %v3226 = vmul.f32 %v2970, %v2970
          %v3227 = vmul.f32 %v2971, %v2971
          %v3228 = vmul.f32 %v2972, %v2972
          %v3229 = vmul.f32 %v2973, %v2973
          %v3230 = vmul.f32 %v2974, %v2974
          %v3231 = vmul.f32 %v2975, %v2975
          %v3232 = vmul.f32 %v2976, %v2976
          %v3233 = vmul.f32 %v2977, %v2977
          %v3234 = vmul.f32 %v2978, %v2978
          %v3235 = vmul.f32 %v2979, %v2979
          %v3236 = vmul.f32 %v2980, %v2980
          %v3237 = vmul.f32 %v2981, %v2981
          %v3238 = vmul.f32 %v2982, %v2982
          %v3239 = vmul.f32 %v2983, %v2983
          %v3240 = vmul.f32 %v2984, %v2984
          %v3241 = vmul.f32 %v2985, %v2985
          %v3242 = vmul.f32 %v2986, %v2986
          %v3243 = vmul.f32 %v2987, %v2987
          %v3244 = vmul.f32 %v2988, %v2988
          %v3245 = vmul.f32 %v2989, %v2989
          %v3246 = vmul.f32 %v2990, %v2990
          %v3247 = vmul.f32 %v2991, %v2991
          %v3248 = vmul.f32 %v2992, %v2992
          %v3249 = vmul.f32 %v2993, %v2993
          %v3250 = vmul.f32 %v2994, %v2994
          %v3251 = vmul.f32 %v2995, %v2995
          %v3252 = vmul.f32 %v2996, %v2996
          %v3253 = vmul.f32 %v2997, %v2997
          %v3254 = vmul.f32 %v2998, %v2998
          %v3255 = vmul.f32 %v2999, %v2999
          %v3256 = vmul.f32 %v3000, %v3000
          %v3257 = vmul.f32 %v3001, %v3001
          %v3258 = vmul.f32 %v3002, %v3002
          %v3259 = vmul.f32 %v3003, %v3003
          %v3260 = vmul.f32 %v3004, %v3004
          %v3261 = vmul.f32 %v3005, %v3005
          %v3262 = vmul.f32 %v3006, %v3006
          %v3263 = vmul.f32 %v3007, %v3007
          %v3264 = vmul.f32 %v3008, %v3008
          %v3265 = vmul.f32 %v3009, %v3009
          %v3266 = vmul.f32 %v3010, %v3010
          %v3267 = vmul.f32 %v3011, %v3011
          %v3268 = vmul.f32 %v3012, %v3012
          %v3269 = vmul.f32 %v3013, %v3013
          %v3270 = vmul.f32 %v3014, %v3014
          %v3271 = vmul.f32 %v3015, %v3015
          %v3272 = vmul.f32 %v3016, %v3016
          %v3273 = vmul.f32 %v3017, %v3017
          %v3274 = vmul.f32 %v3018, %v3018
          %v3275 = vmul.f32 %v3019, %v3019
          %v3276 = vmul.f32 %v3020, %v3020
          %v3277 = vmul.f32 %v3021, %v3021
          %v3278 = vmul.f32 %v3022, %v3022
          %v3279 = vmul.f32 %v3023, %v3023
          %v3280 = vmul.f32 %v3024, %v3024
          %v3281 = vmul.f32 %v3025, %v3025
          %v3282 = vmul.f32 %v3026, %v3026
          %v3283 = vmul.f32 %v3027, %v3027
          %v3284 = vmul.f32 %v3028, %v3028
          %v3285 = vmul.f32 %v3029, %v3029
          %v3286 = vmul.f32 %v3030, %v3030
          %v3287 = vmul.f32 %v3031, %v3031
          %v3288 = vmul.f32 %v3032, %v3032
          %v3289 = vmul.f32 %v3033, %v3033
          %v3290 = vmul.f32 %v3034, %v3034
          %v3291 = vmul.f32 %v3035, %v3035
          %v3292 = vmul.f32 %v3036, %v3036
          %v3293 = vmul.f32 %v3037, %v3037
          %v3294 = vmul.f32 %v3038, %v3038
          %v3295 = vmul.f32 %v3039, %v3039
          %v3296 = vmul.f32 %v3040, %v3040
          %v3297 = vmul.f32 %v3041, %v3041
          %v3298 = vmul.f32 %v3042, %v3042
          %v3299 = vmul.f32 %v3043, %v3043
          %v3300 = vmul.f32 %v3044, %v3044
          %v3301 = vmul.f32 %v3045, %v3045
          %v3302 = vmul.f32 %v3046, %v3046
          %v3303 = vmul.f32 %v3047, %v3047
          %v3304 = vmul.f32 %v3048, %v3048
          %v3305 = vmul.f32 %v3049, %v3049
          %v3306 = vmul.f32 %v3050, %v3050
          %v3307 = vmul.f32 %v3051, %v3051
          %v3308 = vmul.f32 %v3052, %v3052
          %v3309 = vmul.f32 %v3053, %v3053
          %v3310 = vmul.f32 %v3054, %v3054
          %v3311 = vmul.f32 %v3055, %v3055
          %v3312 = vmul.f32 %v3056, %v3056
          %v3313 = vmul.f32 %v3057, %v3057
          %v3314 = vmul.f32 %v3058, %v3058
          %v3315 = vmul.f32 %v3059, %v3059
          %v3316 = vmul.f32 %v3060, %v3060
          %v3317 = vmul.f32 %v3061, %v3061
          %v3318 = vmul.f32 %v3062, %v3062
          %v3319 = vmul.f32 %v3063, %v3063
          %v3320 = vmul.f32 %v3064, %v3064
          %v3321 = vmul.f32 %v3065, %v3065
          %v3322 = vmul.f32 %v3066, %v3066
          %v3323 = vmul.f32 %v3067, %v3067
          %v3324 = vmul.f32 %v3068, %v3068
          %v3325 = vmul.f32 %v3069, %v3069
          %v3326 = vmul.f32 %v3070, %v3070
          %v3327 = vmul.f32 %v3071, %v3071
          %v3328 = vmul.f32 %v3072, %v3072
          %v3329 = vmul.f32 %v3073, %v3073
          %v3330 = vmul.f32 %v3074, %v3074
          %v3331 = vmul.f32 %v3075, %v3075
          %v3332 = vmul.f32 %v3076, %v3076
          %v3333 = vmul.f32 %v3077, %v3077
          %v3334 = vmul.f32 %v3078, %v3078
          %v3335 = vmul.f32 %v3079, %v3079
          %v3336 = vmul.f32 %v3080, %v3080
          %v3337 = vmul.f32 %v3081, %v3081
          %v3338 = vmul.f32 %v3082, %v3082
          %v3339 = vmul.f32 %v3083, %v3083
          %v3340 = vmul.f32 %v3084, %v3084
          %v3341 = vmul.f32 %v3085, %v3085
          %v3342 = vmul.f32 %v3086, %v3086
          %v3343 = vmul.f32 %v3087, %v3087
          %v3344 = vmul.f32 %v3088, %v3088
          %v3345 = vmul.f32 %v3089, %v3089
          %v3346 = vmul.f32 %v3090, %v3090
          %v3347 = vmul.f32 %v3091, %v3091
          %v3348 = vmul.f32 %v3092, %v3092
          %v3349 = vmul.f32 %v3093, %v3093
          %v3350 = vmul.f32 %v3094, %v3094
          %v3351 = vmul.f32 %v3095, %v3095
          %v3352 = vmul.f32 %v3096, %v3096
          %v3353 = vmul.f32 %v3097, %v3097
          %v3354 = vmul.f32 %v3098, %v3098
          %v3355 = vmul.f32 %v3099, %v3099
          %v3356 = vmul.f32 %v3100, %v3100
          %v3357 = vmul.f32 %v3101, %v3101
          %v3358 = vmul.f32 %v3102, %v3102
          %v3359 = vmul.f32 %v3103, %v3103
          %v3360 = vmul.f32 %v3104, %v3104
          %v3361 = vmul.f32 %v3105, %v3105
          %v3362 = vmul.f32 %v3106, %v3106
          %v3363 = vmul.f32 %v3107, %v3107
          %v3364 = vmul.f32 %v3108, %v3108
          %v3365 = vmul.f32 %v3109, %v3109
          %v3366 = vmul.f32 %v3110, %v3110
          %v3367 = vmul.f32 %v3111, %v3111
          %v3368 = vmul.f32 %v3112, %v3112
          %v3369 = vmul.f32 %v3113, %v3113
          %v3370 = vmul.f32 %v3114, %v3114
          %v3371 = vmul.f32 %v3115, %v3115
          %v3372 = vmul.f32 %v3116, %v3116
          %v3373 = vmul.f32 %v3117, %v3117
          %v3374 = vmul.f32 %v3118, %v3118
          %v3375 = vmul.f32 %v3119, %v3119
          %v3376 = vmul.f32 %v3120, %v3120
          %v3377 = vmul.f32 %v3121, %v3121
          %v3378 = vmul.f32 %v3122, %v3122
          %v3379 = vmul.f32 %v3123, %v3123
          %v3380 = vmul.f32 %v3124, %v3124
          %v3381 = vmul.f32 %v3125, %v3125
          %v3382 = vmul.f32 %v3126, %v3126
          %v3383 = vmul.f32 %v3127, %v3127
          %v3384 = vmul.f32 %v3128, %v3128
          %v3385 = vmul.f32 %v3129, %v3129
          %v3386 = vmul.f32 %v3130, %v3130
          %v3387 = vmul.f32 %v3131, %v3131
          %v3388 = vmul.f32 %v3132, %v3132
          %v3389 = vmul.f32 %v3133, %v3133
          %v3390 = vmul.f32 %v3134, %v3134
          %v3391 = vmul.f32 %v3135, %v3135
          %v3392 = vmul.f32 %v3136, %v3136
          %v3393 = vmul.f32 %v3137, %v3137
          %v3394 = vmul.f32 %v3138, %v3138
          %v3395 = vmul.f32 %v3139, %v3139
          %v3396 = vmul.f32 %v3140, %v3140
          %v3397 = vmul.f32 %v3141, %v3141
          %v3398 = vmul.f32 %v3142, %v3142
          %v3399 = vmul.f32 %v3143, %v3143
          %v3400 = vmul.f32 %v3144, %v3144
          %v3401 = vmul.f32 %v3145, %v3145
          %v3402 = vmul.f32 %v3146, %v3146
          %v3403 = vmul.f32 %v3147, %v3147
          %v3404 = vmul.f32 %v3148, %v3148
          %v3405 = vmul.f32 %v3149, %v3149
          %v3406 = vmul.f32 %v3150, %v3150
          %v3407 = vmul.f32 %v3151, %v3151
          %v3408 = vmul.f32 %v3152, %v3152
          %v3409 = vmul.f32 %v3153, %v3153
          %v3410 = vmul.f32 %v3154, %v3154
          %v3411 = vmul.f32 %v3155, %v3155
          %v3412 = vmul.f32 %v3156, %v3156
          %v3413 = vmul.f32 %v3157, %v3157
          %v3414 = vmul.f32 %v3158, %v3158
          %v3415 = vmul.f32 %v3159, %v3159
          %v3416 = vmul.f32 %v3160, %v3160
          %v3417 = vmul.f32 %v3161, %v3161
          %v3418 = vmul.f32 %v3162, %v3162
          %v3419 = vmul.f32 %v3163, %v3163
          %v3420 = vmul.f32 %v3164, %v3164
          %v3421 = vmul.f32 %v3165, %v3165
          %v3422 = vmul.f32 %v3166, %v3166
          %v3423 = vmul.f32 %v3167, %v3167
          %v3424 = vmul.f32 %v3168, %v3168
          %v3425 = vmul.f32 %v3169, %v3169
          %v3426 = vmul.f32 %v3170, %v3170
          %v3427 = vmul.f32 %v3171, %v3171
          %v3428 = vmul.f32 %v3172, %v3172
          %v3429 = vmul.f32 %v3173, %v3173
          %v3430 = vmul.f32 %v3174, %v3174
          %v3431 = vmul.f32 %v3175, %v3175
          %v3432 = vmul.f32 %v3176, %v3176
          %v3433 = vmul.f32 %v3177, %v3177
          %v3434 = vmul.f32 %v3178, %v3178
          %v3435 = vmul.f32 %v3179, %v3179
          %v3436 = vmul.f32 %v3180, %v3180
          %v3437 = vmul.f32 %v3181, %v3181
          %v3438 = vmul.f32 %v3182, %v3182
          %v3439 = vmul.f32 %v3183, %v3183
          %v3440 = vmul.f32 %v3184, %v3184
          %v3441 = vmul.f32 %v3185, %v3185
          %v3442 = vmul.f32 %v3186, %v3186
          %v3443 = vmul.f32 %v3187, %v3187
          %v3444 = vmul.f32 %v3188, %v3188
          %v3445 = vmul.f32 %v3189, %v3189
          %v3446 = vmul.f32 %v3190, %v3190
          %v3447 = vmul.f32 %v3191, %v3191
          %v3448 = vadd.f32 %v3192, %v3196
          %v3449 = vadd.f32 %v3448, %v3200
          %v3450 = vadd.f32 %v3449, %v3204
          %v3451 = vadd.f32 %v3450, %v3208
          %v3452 = vadd.f32 %v3451, %v3212
          %v3453 = vadd.f32 %v3452, %v3216
          %v3454 = vadd.f32 %v3453, %v3220
          %v3455 = vadd.f32 %v3454, %v3224
          %v3456 = vadd.f32 %v3455, %v3228
          %v3457 = vadd.f32 %v3456, %v3232
          %v3458 = vadd.f32 %v3457, %v3236
          %v3459 = vadd.f32 %v3458, %v3240
          %v3460 = vadd.f32 %v3459, %v3244
          %v3461 = vadd.f32 %v3460, %v3248
          %v3462 = vadd.f32 %v3461, %v3252
          %v3463 = vadd.f32 %v3462, %v3256
          %v3464 = vadd.f32 %v3463, %v3260
          %v3465 = vadd.f32 %v3464, %v3264
          %v3466 = vadd.f32 %v3465, %v3268
          %v3467 = vadd.f32 %v3466, %v3272
          %v3468 = vadd.f32 %v3467, %v3276
          %v3469 = vadd.f32 %v3468, %v3280
          %v3470 = vadd.f32 %v3469, %v3284
          %v3471 = vadd.f32 %v3470, %v3288
          %v3472 = vadd.f32 %v3471, %v3292
          %v3473 = vadd.f32 %v3472, %v3296
          %v3474 = vadd.f32 %v3473, %v3300
          %v3475 = vadd.f32 %v3474, %v3304
          %v3476 = vadd.f32 %v3475, %v3308
          %v3477 = vadd.f32 %v3476, %v3312
          %v3478 = vadd.f32 %v3477, %v3316
          %v3479 = vadd.f32 %v3478, %v3320
          %v3480 = vadd.f32 %v3479, %v3324
          %v3481 = vadd.f32 %v3480, %v3328
          %v3482 = vadd.f32 %v3481, %v3332
          %v3483 = vadd.f32 %v3482, %v3336
          %v3484 = vadd.f32 %v3483, %v3340
          %v3485 = vadd.f32 %v3484, %v3344
          %v3486 = vadd.f32 %v3485, %v3348
          %v3487 = vadd.f32 %v3486, %v3352
          %v3488 = vadd.f32 %v3487, %v3356
          %v3489 = vadd.f32 %v3488, %v3360
          %v3490 = vadd.f32 %v3489, %v3364
          %v3491 = vadd.f32 %v3490, %v3368
          %v3492 = vadd.f32 %v3491, %v3372
          %v3493 = vadd.f32 %v3492, %v3376
          %v3494 = vadd.f32 %v3493, %v3380
          %v3495 = vadd.f32 %v3494, %v3384
          %v3496 = vadd.f32 %v3495, %v3388
          %v3497 = vadd.f32 %v3496, %v3392
          %v3498 = vadd.f32 %v3497, %v3396
          %v3499 = vadd.f32 %v3498, %v3400
          %v3500 = vadd.f32 %v3499, %v3404
          %v3501 = vadd.f32 %v3500, %v3408
          %v3502 = vadd.f32 %v3501, %v3412
          %v3503 = vadd.f32 %v3502, %v3416
          %v3504 = vadd.f32 %v3503, %v3420
          %v3505 = vadd.f32 %v3504, %v3424
          %v3506 = vadd.f32 %v3505, %v3428
          %v3507 = vadd.f32 %v3506, %v3432
          %v3508 = vadd.f32 %v3507, %v3436
          %v3509 = vadd.f32 %v3508, %v3440
          %v3510 = vadd.f32 %v3509, %v3444
          %v3511 = vrot.slane %v3510, 4
          %v3512 = vadd.f32 %v3510, %v3511
          %v3513 = vrot.slane %v3512, 2
          %v3514 = vadd.f32 %v3512, %v3513
          %v3515 = vrot.slane %v3514, 1
          %v3516 = vadd.f32 %v3514, %v3515
          %v3517 = vadd.f32 %v3193, %v3197
          %v3518 = vadd.f32 %v3517, %v3201
          %v3519 = vadd.f32 %v3518, %v3205
          %v3520 = vadd.f32 %v3519, %v3209
          %v3521 = vadd.f32 %v3520, %v3213
          %v3522 = vadd.f32 %v3521, %v3217
          %v3523 = vadd.f32 %v3522, %v3221
          %v3524 = vadd.f32 %v3523, %v3225
          %v3525 = vadd.f32 %v3524, %v3229
          %v3526 = vadd.f32 %v3525, %v3233
          %v3527 = vadd.f32 %v3526, %v3237
          %v3528 = vadd.f32 %v3527, %v3241
          %v3529 = vadd.f32 %v3528, %v3245
          %v3530 = vadd.f32 %v3529, %v3249
          %v3531 = vadd.f32 %v3530, %v3253
          %v3532 = vadd.f32 %v3531, %v3257
          %v3533 = vadd.f32 %v3532, %v3261
          %v3534 = vadd.f32 %v3533, %v3265
          %v3535 = vadd.f32 %v3534, %v3269
          %v3536 = vadd.f32 %v3535, %v3273
          %v3537 = vadd.f32 %v3536, %v3277
          %v3538 = vadd.f32 %v3537, %v3281
          %v3539 = vadd.f32 %v3538, %v3285
          %v3540 = vadd.f32 %v3539, %v3289
          %v3541 = vadd.f32 %v3540, %v3293
          %v3542 = vadd.f32 %v3541, %v3297
          %v3543 = vadd.f32 %v3542, %v3301
          %v3544 = vadd.f32 %v3543, %v3305
          %v3545 = vadd.f32 %v3544, %v3309
          %v3546 = vadd.f32 %v3545, %v3313
          %v3547 = vadd.f32 %v3546, %v3317
          %v3548 = vadd.f32 %v3547, %v3321
          %v3549 = vadd.f32 %v3548, %v3325
          %v3550 = vadd.f32 %v3549, %v3329
          %v3551 = vadd.f32 %v3550, %v3333
          %v3552 = vadd.f32 %v3551, %v3337
          %v3553 = vadd.f32 %v3552, %v3341
          %v3554 = vadd.f32 %v3553, %v3345
          %v3555 = vadd.f32 %v3554, %v3349
          %v3556 = vadd.f32 %v3555, %v3353
          %v3557 = vadd.f32 %v3556, %v3357
          %v3558 = vadd.f32 %v3557, %v3361
          %v3559 = vadd.f32 %v3558, %v3365
          %v3560 = vadd.f32 %v3559, %v3369
          %v3561 = vadd.f32 %v3560, %v3373
          %v3562 = vadd.f32 %v3561, %v3377
          %v3563 = vadd.f32 %v3562, %v3381
          %v3564 = vadd.f32 %v3563, %v3385
          %v3565 = vadd.f32 %v3564, %v3389
          %v3566 = vadd.f32 %v3565, %v3393
          %v3567 = vadd.f32 %v3566, %v3397
          %v3568 = vadd.f32 %v3567, %v3401
          %v3569 = vadd.f32 %v3568, %v3405
          %v3570 = vadd.f32 %v3569, %v3409
          %v3571 = vadd.f32 %v3570, %v3413
          %v3572 = vadd.f32 %v3571, %v3417
          %v3573 = vadd.f32 %v3572, %v3421
          %v3574 = vadd.f32 %v3573, %v3425
          %v3575 = vadd.f32 %v3574, %v3429
          %v3576 = vadd.f32 %v3575, %v3433
          %v3577 = vadd.f32 %v3576, %v3437
          %v3578 = vadd.f32 %v3577, %v3441
          %v3579 = vadd.f32 %v3578, %v3445
          %v3580 = vrot.slane %v3579, 4
          %v3581 = vadd.f32 %v3579, %v3580
          %v3582 = vrot.slane %v3581, 2
          %v3583 = vadd.f32 %v3581, %v3582
          %v3584 = vrot.slane %v3583, 1
          %v3585 = vadd.f32 %v3583, %v3584
          %v3586 = vadd.f32 %v3194, %v3198
          %v3587 = vadd.f32 %v3586, %v3202
          %v3588 = vadd.f32 %v3587, %v3206
          %v3589 = vadd.f32 %v3588, %v3210
          %v3590 = vadd.f32 %v3589, %v3214
          %v3591 = vadd.f32 %v3590, %v3218
          %v3592 = vadd.f32 %v3591, %v3222
          %v3593 = vadd.f32 %v3592, %v3226
          %v3594 = vadd.f32 %v3593, %v3230
          %v3595 = vadd.f32 %v3594, %v3234
          %v3596 = vadd.f32 %v3595, %v3238
          %v3597 = vadd.f32 %v3596, %v3242
          %v3598 = vadd.f32 %v3597, %v3246
          %v3599 = vadd.f32 %v3598, %v3250
          %v3600 = vadd.f32 %v3599, %v3254
          %v3601 = vadd.f32 %v3600, %v3258
          %v3602 = vadd.f32 %v3601, %v3262
          %v3603 = vadd.f32 %v3602, %v3266
          %v3604 = vadd.f32 %v3603, %v3270
          %v3605 = vadd.f32 %v3604, %v3274
          %v3606 = vadd.f32 %v3605, %v3278
          %v3607 = vadd.f32 %v3606, %v3282
          %v3608 = vadd.f32 %v3607, %v3286
          %v3609 = vadd.f32 %v3608, %v3290
          %v3610 = vadd.f32 %v3609, %v3294
          %v3611 = vadd.f32 %v3610, %v3298
          %v3612 = vadd.f32 %v3611, %v3302
          %v3613 = vadd.f32 %v3612, %v3306
          %v3614 = vadd.f32 %v3613, %v3310
          %v3615 = vadd.f32 %v3614, %v3314
          %v3616 = vadd.f32 %v3615, %v3318
          %v3617 = vadd.f32 %v3616, %v3322
          %v3618 = vadd.f32 %v3617, %v3326
          %v3619 = vadd.f32 %v3618, %v3330
          %v3620 = vadd.f32 %v3619, %v3334
          %v3621 = vadd.f32 %v3620, %v3338
          %v3622 = vadd.f32 %v3621, %v3342
          %v3623 = vadd.f32 %v3622, %v3346
          %v3624 = vadd.f32 %v3623, %v3350
          %v3625 = vadd.f32 %v3624, %v3354
          %v3626 = vadd.f32 %v3625, %v3358
          %v3627 = vadd.f32 %v3626, %v3362
          %v3628 = vadd.f32 %v3627, %v3366
          %v3629 = vadd.f32 %v3628, %v3370
          %v3630 = vadd.f32 %v3629, %v3374
          %v3631 = vadd.f32 %v3630, %v3378
          %v3632 = vadd.f32 %v3631, %v3382
          %v3633 = vadd.f32 %v3632, %v3386
          %v3634 = vadd.f32 %v3633, %v3390
          %v3635 = vadd.f32 %v3634, %v3394
          %v3636 = vadd.f32 %v3635, %v3398
          %v3637 = vadd.f32 %v3636, %v3402
          %v3638 = vadd.f32 %v3637, %v3406
          %v3639 = vadd.f32 %v3638, %v3410
          %v3640 = vadd.f32 %v3639, %v3414
          %v3641 = vadd.f32 %v3640, %v3418
          %v3642 = vadd.f32 %v3641, %v3422
          %v3643 = vadd.f32 %v3642, %v3426
          %v3644 = vadd.f32 %v3643, %v3430
          %v3645 = vadd.f32 %v3644, %v3434
          %v3646 = vadd.f32 %v3645, %v3438
          %v3647 = vadd.f32 %v3646, %v3442
          %v3648 = vadd.f32 %v3647, %v3446
          %v3649 = vrot.slane %v3648, 4
          %v3650 = vadd.f32 %v3648, %v3649
          %v3651 = vrot.slane %v3650, 2
          %v3652 = vadd.f32 %v3650, %v3651
          %v3653 = vrot.slane %v3652, 1
          %v3654 = vadd.f32 %v3652, %v3653
          %v3655 = vadd.f32 %v3195, %v3199
          %v3656 = vadd.f32 %v3655, %v3203
          %v3657 = vadd.f32 %v3656, %v3207
          %v3658 = vadd.f32 %v3657, %v3211
          %v3659 = vadd.f32 %v3658, %v3215
          %v3660 = vadd.f32 %v3659, %v3219
          %v3661 = vadd.f32 %v3660, %v3223
          %v3662 = vadd.f32 %v3661, %v3227
          %v3663 = vadd.f32 %v3662, %v3231
          %v3664 = vadd.f32 %v3663, %v3235
          %v3665 = vadd.f32 %v3664, %v3239
          %v3666 = vadd.f32 %v3665, %v3243
          %v3667 = vadd.f32 %v3666, %v3247
          %v3668 = vadd.f32 %v3667, %v3251
          %v3669 = vadd.f32 %v3668, %v3255
          %v3670 = vadd.f32 %v3669, %v3259
          %v3671 = vadd.f32 %v3670, %v3263
          %v3672 = vadd.f32 %v3671, %v3267
          %v3673 = vadd.f32 %v3672, %v3271
          %v3674 = vadd.f32 %v3673, %v3275
          %v3675 = vadd.f32 %v3674, %v3279
          %v3676 = vadd.f32 %v3675, %v3283
          %v3677 = vadd.f32 %v3676, %v3287
          %v3678 = vadd.f32 %v3677, %v3291
          %v3679 = vadd.f32 %v3678, %v3295
          %v3680 = vadd.f32 %v3679, %v3299
          %v3681 = vadd.f32 %v3680, %v3303
          %v3682 = vadd.f32 %v3681, %v3307
          %v3683 = vadd.f32 %v3682, %v3311
          %v3684 = vadd.f32 %v3683, %v3315
          %v3685 = vadd.f32 %v3684, %v3319
          %v3686 = vadd.f32 %v3685, %v3323
          %v3687 = vadd.f32 %v3686, %v3327
          %v3688 = vadd.f32 %v3687, %v3331
          %v3689 = vadd.f32 %v3688, %v3335
          %v3690 = vadd.f32 %v3689, %v3339
          %v3691 = vadd.f32 %v3690, %v3343
          %v3692 = vadd.f32 %v3691, %v3347
          %v3693 = vadd.f32 %v3692, %v3351
          %v3694 = vadd.f32 %v3693, %v3355
          %v3695 = vadd.f32 %v3694, %v3359
          %v3696 = vadd.f32 %v3695, %v3363
          %v3697 = vadd.f32 %v3696, %v3367
          %v3698 = vadd.f32 %v3697, %v3371
          %v3699 = vadd.f32 %v3698, %v3375
          %v3700 = vadd.f32 %v3699, %v3379
          %v3701 = vadd.f32 %v3700, %v3383
          %v3702 = vadd.f32 %v3701, %v3387
          %v3703 = vadd.f32 %v3702, %v3391
          %v3704 = vadd.f32 %v3703, %v3395
          %v3705 = vadd.f32 %v3704, %v3399
          %v3706 = vadd.f32 %v3705, %v3403
          %v3707 = vadd.f32 %v3706, %v3407
          %v3708 = vadd.f32 %v3707, %v3411
          %v3709 = vadd.f32 %v3708, %v3415
          %v3710 = vadd.f32 %v3709, %v3419
          %v3711 = vadd.f32 %v3710, %v3423
          %v3712 = vadd.f32 %v3711, %v3427
          %v3713 = vadd.f32 %v3712, %v3431
          %v3714 = vadd.f32 %v3713, %v3435
          %v3715 = vadd.f32 %v3714, %v3439
          %v3716 = vadd.f32 %v3715, %v3443
          %v3717 = vadd.f32 %v3716, %v3447
          %v3718 = vrot.slane %v3717, 4
          %v3719 = vadd.f32 %v3717, %v3718
          %v3720 = vrot.slane %v3719, 2
          %v3721 = vadd.f32 %v3719, %v3720
          %v3722 = vrot.slane %v3721, 1
          %v3723 = vadd.f32 %v3721, %v3722
          %v3724 = vld [vmem:[#allocation8] sm:$0xf]
          %v3729 = vcombine.low %v3516, %v3585
          %v3730 = vcombine.low %v3654, %v3723
          %v3732 = vunpack.c.l.s4 1966171168
          %v3733 = vunpack.c.0.s8 %v3732
          %v3734 = vlaneseq
          %v3735 = vshrl.u32 %v3734, 7
          %v3736 = vsub.s32 %v3733, %v3735
          %v3737 = vrot.slane %v3729, %v3736
          %v3739 = vunpack.c.l.s4 1966171168
          %v3740 = vunpack.c.0.s8 %v3739
          %v3741 = vlaneseq
          %v3742 = vshrl.u32 %v3741, 7
          %v3743 = vsub.s32 %v3740, %v3742
          %v3744 = vrot.slane %v3730, %v3743
          %v3745 = vcombine.low %v3737, %v3744
          %v3747 = vunpack.c.l.s4 1966171168
          %v3748 = vunpack.c.0.s8 %v3747
          %v3749 = vlaneseq
          %v3750 = vshrl.u32 %v3749, 7
          %v3751 = vsub.s32 %v3748, %v3750
          %v3752 = vrot.slane %v3745, %v3751
          %v3754 = vadd.f32 %v3724, %v3752
          %v3755 = vlaneseq
          %vm3756 = vcmp.ge.s32.totalorder %v3755, 0
          %vm3757 = vcmp.lt.s32.totalorder %v3755, 512
          %vm3758 = vmand %vm3756, %vm3757
          %3759 = vst.msk [vmem:[#allocation8] sm:$0xf] %vm3758, %v3754
        $region48: #{tpu_custom_call.1} parent=27 // pred_fallthru
          _
        // Predicated region
        $region49: #{tpu_custom_call.1} parent=27 // pred_check
          %p3760 = pneg %p113
        $region50: #{tpu_custom_call.1} parent=27 // pred_check_branch
          %3762 = sbr.rel (%p3760) target = $region52
        $region51: #{tpu_custom_call.1} parent=27 // pred_region
          %s3764 = ssub.s32 64, 64
          %3765 = vsyncadd [#allocation5], %s3764
          %s3766 = smul.addr %s25, 4
          %s3767 = smul.addr %s3766, 16
          %s3768 = scalar_lea.hbm %s2, %s3767
          %s3770 = sshll.u32 [#allocation8], 4
          %s3771 = int_to_ptr.vmem [resolvable:$true] %s3770
          %3773 = dma.vmem_to_hbm [thread:$0]  %s3771, 64, %s3768, [#allocation5]
        $region52: #{tpu_custom_call.1} parent=27 // pred_fallthru
          _
        // Predicated region
        $region53: #{tpu_custom_call.1} parent=27 // pred_check
          %p3774 = pneg %p113
        $region54: #{tpu_custom_call.1} parent=27 // pred_check_branch
          %3776 = sbr.rel (%p3774) target = $region56
        $region55: #{tpu_custom_call.1} parent=27 // pred_region
          %3777 = dma.done [#allocation5], 64
        $region56: #{tpu_custom_call.1} parent=27 // pred_fallthru
          _
      $region28: #{tpu_custom_call.1} parent=5 // pred_fallthru
        _
      %p3778 = scmp.le.s32.totalorder 2, %s15
      // Predicated region
      $region57: #{tpu_custom_call.1} parent=5 // pred_check
        %p3779 = pneg %p3778
      $region58: #{tpu_custom_call.1} parent=5 // pred_check_branch
        %3781 = sbr.rel (%p3779) target = $region60
      $region59: #{tpu_custom_call.1} parent=5 // pred_region
        %s3782 = ssub.s32 %s15, 2
      $region60: #{tpu_custom_call.1} parent=5 // pred_fallthru
        _
    $region6: #{tpu_custom_call.1} parent=1 // loop_footer
      %s19 = sadd.s32 1, %s15
    $region7: #{tpu_custom_call.1} parent=1 // loop_footer_branch
      %14 = sbr.rel target = $region3
    $region8: #{tpu_custom_call.1} parent=1 // loop_exit
      _
    %3783 = vsyncpa [#allocation4], 1
    %s3784 = scalar_lea.sflag [#allocation4], 1
    %3785 = vsyncpa %s3784, 1
    %3786 = vsyncpa [#allocation7], 1
    %s3787 = scalar_lea.sflag [#allocation7], 1
    %3788 = vsyncpa %s3787, 1
    %3789 = vsyncpa [#allocation5], 1
    %s3790 = scalar_lea.sflag [#allocation5], 1
    %3791 = vsyncpa %s3790, 1

</llo_original>
